<compile_context>
chip_gen: v5e
topology: v5e:2x2
jax: 0.10.0
libtpu: 0.0.40
codegen_flags: <defaults>
</compile_context>

<pallas_src>
import functools
import types

import jax
import jax.numpy as jnp
from jax.experimental import pallas as pl
from jax.experimental.pallas import tpu as pltpu


# Kernel parameter order (must match _prep_kernel_params).
_MERGED_NAMES = ("wcp1", "bcp1", "wcp2", "bcp2", "wkv1", "wkv2",
                 "wep1", "bep1", "wep2", "bep2",
                 "mask", "g1", "lnb1", "g2", "lnb2")
_SPLIT_NAMES = ("w1y", "w1u", "b1y", "b1u", "w2y", "w2u", "b2y", "b2u",
                "wk1", "wv1", "wk2", "wv2",
                "we1y", "we1a", "be1", "we2y", "we2a", "be2",
                "mask", "g1", "lnb1", "g2", "lnb2")


def _params_ns(refs, merged):
    names = _MERGED_NAMES if merged else _SPLIT_NAMES
    assert len(refs) == len(names), (len(refs), len(names))
    return types.SimpleNamespace(**dict(zip(names, refs)))


# ---------------------------------------------------------------------------
# In-kernel helpers (shared by the fused and the N-tiled kernels)
# ---------------------------------------------------------------------------
def _channel_proj(xb, P, merged, Cr, path, need_y=True):
    """channel_projN(x) -> ReLU -> (y, u), each (R, Cr) f32.  y may be None."""
    if merged:
        w, b = (P.wcp1, P.bcp1) if path == 1 else (P.wcp2, P.bcp2)
        pr = jnp.maximum(
            jnp.dot(xb, w[...], preferred_element_type=jnp.float32) + b[...], 0.0)
        return pr[:, :Cr], pr[:, Cr:]
    wy, wu, by, bu = ((P.w1y, P.w1u, P.b1y, P.b1u) if path == 1
                      else (P.w2y, P.w2u, P.b2y, P.b2u))
    u = jnp.maximum(
        jnp.dot(xb, wu[...], preferred_element_type=jnp.float32) + bu[...], 0.0)
    y = None
    if need_y:
        y = jnp.maximum(
            jnp.dot(xb, wy[...], preferred_element_type=jnp.float32) + by[...], 0.0)
    return y, u


def _kv_proj(ub, P, merged, Cr, path):
    """kvN(u) -> (k, v), each (R, Cr) f32 (attention scale pre-folded into k)."""
    if merged:
        w = P.wkv1 if path == 1 else P.wkv2
        kv = jnp.dot(ub, w[...], preferred_element_type=jnp.float32)
        return kv[:, :Cr], kv[:, Cr:]
    wk, wv = (P.wk1, P.wv1) if path == 1 else (P.wk2, P.wv2)
    return (jnp.dot(ub, wk[...], preferred_element_type=jnp.float32),
            jnp.dot(ub, wv[...], preferred_element_type=jnp.float32))


def _end_proj(y, attn, P, merged, path):
    """end_projN(concat(y, attn)) -> (R, C) f32."""
    if merged:
        w, b = (P.wep1, P.bep1) if path == 1 else (P.wep2, P.bep2)
        ya = jnp.concatenate(
            [y.astype(jnp.bfloat16), attn.astype(jnp.bfloat16)], axis=-1)
        return jnp.dot(ya, w[...], preferred_element_type=jnp.float32) + b[...]
    # Split form (Cr not 128-aligned); on v7x the two-dot sum accumulates in-MRB.
    wy, wa, b = (P.we1y, P.we1a, P.be1) if path == 1 else (P.we2y, P.we2a, P.be2)
    return (jnp.dot(y.astype(jnp.bfloat16), wy[...],
                    preferred_element_type=jnp.float32)
            + jnp.dot(attn.astype(jnp.bfloat16), wa[...],
                      preferred_element_type=jnp.float32)
            + b[...])


def _kt_v(k, v, BB, TN, Cr):
    """(BB*TN, Cr) k, v -> (BB, Cr, Cr) K^T.V, contracting over the token axis."""
    kb = k.reshape(BB, TN, Cr).astype(jnp.bfloat16)
    vb = v.reshape(BB, TN, Cr).astype(jnp.bfloat16)
    # TODO(synk): verify in the Mosaic dump that this contraction does not emit
    # an explicit XLU transpose of the (TN, Cr) K tile; restructure if it does.
    return jnp.einsum("bnc,bnd->bcd", kb, vb, preferred_element_type=jnp.float32)


def _masked_softmax(s, mask):
    """Softmax over rows (dim=-2) with an additive block-diagonal head mask."""
    s = s + mask
    m = jnp.max(s, axis=-2, keepdims=True)
    e = jnp.exp(s - m)
    d = jnp.sum(e, axis=-2, keepdims=True)
    return e * pl.reciprocal(d, approx=True)


def _layer_norm(r, g, b, eps):
    """One-pass LayerNorm: var = E[x^2] - mu^2."""
    mu = jnp.mean(r, axis=-1, keepdims=True)
    ms = jnp.mean(r * r, axis=-1, keepdims=True)
    var = jnp.maximum(ms - mu * mu, 0.0)
    return (r - mu) * jax.lax.rsqrt(var + eps) * g + b


# ---------------------------------------------------------------------------
# Kernel 1: whole-N fused kernel (gridded over batch tiles)
# ---------------------------------------------------------------------------
def _crosspath_fused_kernel(x1_ref, x2_ref, *rest, merged, eps):
    o1_ref, o2_ref = rest[-2:]
    P = _params_ns(rest[:-2], merged)
    BB, N, C = x1_ref.shape
    Cr = P.mask.shape[0]
    R = BB * N

    x1b = x1_ref[...].reshape(R, C).astype(jnp.bfloat16)
    x2b = x2_ref[...].reshape(R, C).astype(jnp.bfloat16)

    y1, u1 = _channel_proj(x1b, P, merged, Cr, 1)
    y2, u2 = _channel_proj(x2b, P, merged, Cr, 2)
    u1b = u1.astype(jnp.bfloat16)
    u2b = u2.astype(jnp.bfloat16)

    k1, v1 = _kv_proj(u1b, P, merged, Cr, 1)
    k2, v2 = _kv_proj(u2b, P, merged, Cr, 2)

    mask = P.mask[...]
    ctx1 = _masked_softmax(_kt_v(k1, v1, BB, N, Cr), mask).astype(jnp.bfloat16)
    ctx2 = _masked_softmax(_kt_v(k2, v2, BB, N, Cr), mask).astype(jnp.bfloat16)

    # Cross attention: path-1 queries use ctx2, path-2 queries use ctx1.
    attn1 = jnp.einsum("bnc,bcd->bnd", u1b.reshape(BB, N, Cr), ctx2,
                       preferred_element_type=jnp.float32).reshape(R, Cr)
    attn2 = jnp.einsum("bnc,bcd->bnd", u2b.reshape(BB, N, Cr), ctx1,
                       preferred_element_type=jnp.float32).reshape(R, Cr)

    e1 = _end_proj(y1, attn1, P, merged, 1)
    e2 = _end_proj(y2, attn2, P, merged, 2)

    # Residual source is re-read here (keeps the f32 x copy out of the live set).
    r1 = x1_ref[...].reshape(R, C).astype(jnp.float32) + e1
    r2 = x2_ref[...].reshape(R, C).astype(jnp.float32) + e2

    o1_ref[...] = _layer_norm(r1, P.g1[...], P.lnb1[...], eps
                              ).reshape(BB, N, C).astype(o1_ref.dtype)
    o2_ref[...] = _layer_norm(r2, P.g2[...], P.lnb2[...], eps
                              ).reshape(BB, N, C).astype(o2_ref.dtype)


# ---------------------------------------------------------------------------
# Kernel 2: two-phase N-tiled kernel (for working sets too big for one block)
#   grid = (B, 2, N // TN):  phase 0 accumulates K^T.V into VMEM scratch,
#   phase 1 does the row-parallel part per N tile and writes the outputs.
# ---------------------------------------------------------------------------
def _crosspath_tiled_kernel(x1_ref, x2_ref, *rest, merged, eps):
    o1_ref, o2_ref, s1_ref, s2_ref = rest[-4:]
    P = _params_ns(rest[:-4], merged)
    BB, TN, C = x1_ref.shape
    Cr = P.mask.shape[0]
    R = BB * TN

    phase = pl.program_id(1)
    n = pl.program_id(2)
    n_last = pl.num_programs(2) - 1

    @pl.when(phase == 0)
    def _phase0():
        @pl.when(n == 0)
        def _():
            s1_ref[...] = jnp.zeros_like(s1_ref)
            s2_ref[...] = jnp.zeros_like(s2_ref)

        x1b = x1_ref[...].reshape(R, C).astype(jnp.bfloat16)
        x2b = x2_ref[...].reshape(R, C).astype(jnp.bfloat16)
        _, u1 = _channel_proj(x1b, P, merged, Cr, 1, need_y=False)
        _, u2 = _channel_proj(x2b, P, merged, Cr, 2, need_y=False)
        k1, v1 = _kv_proj(u1.astype(jnp.bfloat16), P, merged, Cr, 1)
        k2, v2 = _kv_proj(u2.astype(jnp.bfloat16), P, merged, Cr, 2)
        s1_ref[...] += _kt_v(k1, v1, BB, TN, Cr)
        s2_ref[...] += _kt_v(k2, v2, BB, TN, Cr)

        @pl.when(n == n_last)
        def _():
            mask = P.mask[...]
            s1_ref[...] = _masked_softmax(s1_ref[...], mask)
            s2_ref[...] = _masked_softmax(s2_ref[...], mask)

    @pl.when(phase == 1)
    def _phase1():
        x1b = x1_ref[...].reshape(R, C).astype(jnp.bfloat16)
        x2b = x2_ref[...].reshape(R, C).astype(jnp.bfloat16)
        y1, u1 = _channel_proj(x1b, P, merged, Cr, 1)
        y2, u2 = _channel_proj(x2b, P, merged, Cr, 2)
        u1b = u1.astype(jnp.bfloat16)
        u2b = u2.astype(jnp.bfloat16)

        ctx1 = s1_ref[...].astype(jnp.bfloat16)
        ctx2 = s2_ref[...].astype(jnp.bfloat16)
        attn1 = jnp.einsum("bnc,bcd->bnd", u1b.reshape(BB, TN, Cr), ctx2,
                           preferred_element_type=jnp.float32).reshape(R, Cr)
        attn2 = jnp.einsum("bnc,bcd->bnd", u2b.reshape(BB, TN, Cr), ctx1,
                           preferred_element_type=jnp.float32).reshape(R, Cr)

        e1 = _end_proj(y1, attn1, P, merged, 1)
        e2 = _end_proj(y2, attn2, P, merged, 2)

        r1 = x1_ref[...].reshape(R, C).astype(jnp.float32) + e1
        r2 = x2_ref[...].reshape(R, C).astype(jnp.float32) + e2

        o1_ref[...] = _layer_norm(r1, P.g1[...], P.lnb1[...], eps
                                  ).reshape(BB, TN, C).astype(o1_ref.dtype)
        o2_ref[...] = _layer_norm(r2, P.g2[...], P.lnb2[...], eps
                                  ).reshape(BB, TN, C).astype(o2_ref.dtype)


# ---------------------------------------------------------------------------
# Host-side parameter preparation (layout glue; torch-shaped -> kernel-shaped)
# ---------------------------------------------------------------------------
def _prep_kernel_params(p, dim, reduction, num_heads, merged):
    Cr = dim // reduction
    hd = Cr // num_heads
    scale = hd ** (-0.5)
    bf = jnp.bfloat16
    f32 = jnp.float32

    wcp1t = p["w_cp1"].T.astype(f32)          # (dim, 2Cr)
    wcp2t = p["w_cp2"].T.astype(f32)
    wep1t = p["w_ep1"].T.astype(f32)          # (2Cr, dim)
    wep2t = p["w_ep2"].T.astype(f32)
    # Fold the attention scale into the k half of the kv projection (no bias).
    col_scale = jnp.concatenate([jnp.full((Cr,), scale, f32), jnp.ones((Cr,), f32)])
    wkv1t = p["w_kv1"].T.astype(f32) * col_scale[None, :]   # (Cr, 2Cr)
    wkv2t = p["w_kv2"].T.astype(f32) * col_scale[None, :]

    # Additive block-diagonal head mask for the (Cr, Cr) context softmax.
    row_h = jnp.arange(Cr, dtype=jnp.int32)[:, None] // hd
    col_h = jnp.arange(Cr, dtype=jnp.int32)[None, :] // hd
    mask = jnp.where(row_h == col_h, 0.0, -1e30).astype(f32)

    ln = [p["g1"][None, :].astype(f32), p["beta1"][None, :].astype(f32),
          p["g2"][None, :].astype(f32), p["beta2"][None, :].astype(f32)]

    if merged:
        out = [wcp1t.astype(bf), p["b_cp1"][None, :].astype(f32),
               wcp2t.astype(bf), p["b_cp2"][None, :].astype(f32),
               wkv1t.astype(bf), wkv2t.astype(bf),
               wep1t.astype(bf), p["b_ep1"][None, :].astype(f32),
               wep2t.astype(bf), p["b_ep2"][None, :].astype(f32),
               mask] + ln
        assert len(out) == len(_MERGED_NAMES)
    else:
        out = [wcp1t[:, :Cr].astype(bf), wcp1t[:, Cr:].astype(bf),
               p["b_cp1"][None, :Cr].astype(f32), p["b_cp1"][None, Cr:].astype(f32),
               wcp2t[:, :Cr].astype(bf), wcp2t[:, Cr:].astype(bf),
               p["b_cp2"][None, :Cr].astype(f32), p["b_cp2"][None, Cr:].astype(f32),
               wkv1t[:, :Cr].astype(bf), wkv1t[:, Cr:].astype(bf),
               wkv2t[:, :Cr].astype(bf), wkv2t[:, Cr:].astype(bf),
               wep1t[:Cr, :].astype(bf), wep1t[Cr:, :].astype(bf),
               p["b_ep1"][None, :].astype(f32),
               wep2t[:Cr, :].astype(bf), wep2t[Cr:, :].astype(bf),
               p["b_ep2"][None, :].astype(f32),
               mask] + ln
        assert len(out) == len(_SPLIT_NAMES)
    return out


def _vmem_cap_bytes():
    try:
        return int(pltpu.get_tpu_info().vmem_capacity_bytes)
    except Exception:
        return 64 << 20   # conservative fallback: v7x per-TensorCore VMEM


# ---------------------------------------------------------------------------
# Wrapper
# ---------------------------------------------------------------------------
def crosspath_pallas(x1, x2, torch_params, *, dim, reduction, num_heads,
                     eps=1e-5, block_b=None, tile_n=None,
                     act_budget_bytes=8 << 20):
    B, N, C = x1.shape
    assert C == dim
    assert dim % reduction == 0, "dim must be divisible by reduction"
    Cr = dim // reduction
    assert Cr % num_heads == 0, "dim//reduction must be divisible by num_heads"
    # TODO(synk): production shapes should have C (and ideally Cr) padded to a
    # multiple of 128 so output stores are lane-dense (not done for toy C=32).

    # Merged (full-width) matmuls only when lane slices/concat at Cr are aligned.
    merged = (Cr % 128 == 0)
    params = _prep_kernel_params(torch_params, dim, reduction, num_heads, merged)
    param_bytes = sum(int(pa.size) * pa.dtype.itemsize for pa in params)
    itemsize = x1.dtype.itemsize

    def act_bytes(bb, tokens):   # rough peak of live f32/bf16 activation slabs
        return bb * (tokens * (22 * C + 52 * Cr) + 14 * Cr * Cr)

    def io_bytes(bb, tokens):    # x1,x2 in + o1,o2 out, double buffered
        return bb * 4 * 2 * tokens * C * itemsize

    # ---- choose between the whole-N fused kernel and the two-phase tiled one
    use_tiled = tile_n is not None and tile_n < N
    if tile_n is None:
        use_tiled = act_bytes(1, N) + io_bytes(1, N) > act_budget_bytes

    if use_tiled:
        if tile_n is None:
            cands = sorted(d for d in range(8, N, 8) if N % d == 0)
            tile_n = cands[0] if cands else N
            for d in reversed(cands):
                if act_bytes(1, d) + io_bytes(1, d) <= act_budget_bytes:
                    tile_n = d
                    break
        assert N % tile_n == 0 and (tile_n % 8 == 0 or tile_n == N)
        grid = (B, 2, N // tile_n)
        dim_sem = ("parallel", "arbitrary", "arbitrary")
        x_spec = pl.BlockSpec((1, tile_n, C), lambda b, p, n: (b, n, 0))
        # Phase 0 parks the (unwritten) output window on n=0; phase 1 writes it.
        out_spec = pl.BlockSpec((1, tile_n, C), lambda b, p, n: (b, n * p, 0))
        zero_map = lambda b, p, n: (0, 0)
        scratch = [pltpu.VMEM((1, Cr, Cr), jnp.float32),
                   pltpu.VMEM((1, Cr, Cr), jnp.float32)]
        kernel = functools.partial(_crosspath_tiled_kernel, merged=merged, eps=eps)
        bb, tokens = 1, tile_n
    else:
        if block_b is None:
            # Largest divisor of B that fits the budget, capped at B//2 so the
            # grid has >= 2 steps (pipeline overlap + both v7x TensorCores).
            cap_b = max(1, B // 2)
            block_b = 1
            for d in range(1, cap_b + 1):
                if B % d == 0 and act_bytes(d, N) + io_bytes(d, N) <= act_budget_bytes:
                    block_b = d
        assert B % block_b == 0
        grid = (B // block_b,)
        dim_sem = ("parallel",)
        x_spec = pl.BlockSpec((block_b, N, C), lambda i: (i, 0, 0))
        out_spec = x_spec
        zero_map = lambda i: (0, 0)
        scratch = []
        kernel = functools.partial(_crosspath_fused_kernel, merged=merged, eps=eps)
        bb, tokens = block_b, N

    est = act_bytes(bb, tokens) + io_bytes(bb, tokens) + 2 * param_bytes
    if use_tiled:
        est += 2 * bb * Cr * Cr * 4
    vmem_limit = min(max(int(est * 1.5), 32 << 20), (_vmem_cap_bytes() * 3) // 4)

    out_shape = [jax.ShapeDtypeStruct((B, N, C), x1.dtype),
                 jax.ShapeDtypeStruct((B, N, C), x2.dtype)]
    compiler_params = pltpu.CompilerParams(
        dimension_semantics=dim_sem, vmem_limit_bytes=vmem_limit)

    def _call(single_buffer_params):
        if single_buffer_params:
            # Grid-invariant params: a second pipeline buffer is wasted VMEM.
            pspecs = [pl.BlockSpec(pa.shape, zero_map, pipeline_mode=pl.Buffered(1))
                      for pa in params]
        else:
            pspecs = [pl.BlockSpec(pa.shape, zero_map) for pa in params]
        return pl.pallas_call(
            kernel,
            grid=grid,
            in_specs=[x_spec, x_spec] + pspecs,
            out_specs=[out_spec, out_spec],
            out_shape=out_shape,
            scratch_shapes=scratch,
            compiler_params=compiler_params,
        )(x1, x2, *params)

    try:
        return _call(True)
    except Exception:
        # Fallback if this JAX build rejects Buffered(1) for pipelined inputs.
        return _call(False)


# ---------------------------------------------------------------------------
# Deterministic PyTorch-shaped parameters + pure-JAX reference for validation
# ---------------------------------------------------------------------------
def make_params(key, dim, reduction, num_heads):
    del num_heads
    Cr = dim // reduction
    ks = jax.random.split(key, 10)

    def lin_w(k, out_f, in_f):   # PyTorch nn.Linear weight shape: (out, in)
        bound = 1.0 / (in_f ** 0.5)
        return jax.random.uniform(k, (out_f, in_f), jnp.float32, -bound, bound)

    def lin_b(k, out_f, in_f):
        bound = 1.0 / (in_f ** 0.5)
        return jax.random.uniform(k, (out_f,), jnp.float32, -bound, bound)

    return dict(
        w_cp1=lin_w(ks[0], 2 * Cr, dim), b_cp1=lin_b(ks[1], 2 * Cr, dim),
        w_cp2=lin_w(ks[2], 2 * Cr, dim), b_cp2=lin_b(ks[3], 2 * Cr, dim),
        w_kv1=lin_w(ks[4], 2 * Cr, Cr), w_kv2=lin_w(ks[5], 2 * Cr, Cr),
        w_ep1=lin_w(ks[6], dim, 2 * Cr), b_ep1=lin_b(ks[7], dim, 2 * Cr),
        w_ep2=lin_w(ks[8], dim, 2 * Cr), b_ep2=lin_b(ks[9], dim, 2 * Cr),
        g1=jnp.ones((dim,), jnp.float32), beta1=jnp.zeros((dim,), jnp.float32),
        g2=jnp.ones((dim,), jnp.float32), beta2=jnp.zeros((dim,), jnp.float32),
    )


def crosspath_ref(x1, x2, p, *, dim, reduction, num_heads, eps=1e-5):
    Cr = dim // reduction
    hd = Cr // num_heads
    scale = hd ** (-0.5)
    B, N, C = x1.shape

    def lin(x, w, b=None):
        y = jnp.einsum('bnc,oc->bno', x, w)
        return y if b is None else y + b

    p1 = jax.nn.relu(lin(x1, p['w_cp1'], p['b_cp1']))
    p2 = jax.nn.relu(lin(x2, p['w_cp2'], p['b_cp2']))
    y1, u1 = p1[..., :Cr], p1[..., Cr:]
    y2, u2 = p2[..., :Cr], p2[..., Cr:]

    def heads(t):  # (B,N,Cr) -> (B,H,N,hd)
        return t.reshape(B, N, num_heads, hd).transpose(0, 2, 1, 3)

    q1, q2 = heads(u1), heads(u2)
    kv1 = lin(u1, p['w_kv1']); kv2 = lin(u2, p['w_kv2'])
    k1, v1 = heads(kv1[..., :Cr]), heads(kv1[..., Cr:])
    k2, v2 = heads(kv2[..., :Cr]), heads(kv2[..., Cr:])

    ctx1 = jax.nn.softmax(jnp.einsum('bhnd,bhne->bhde', k1, v1) * scale, axis=-2)
    ctx2 = jax.nn.softmax(jnp.einsum('bhnd,bhne->bhde', k2, v2) * scale, axis=-2)
    a1 = jnp.einsum('bhnd,bhde->bhne', q1, ctx2).transpose(0, 2, 1, 3).reshape(B, N, Cr)
    a2 = jnp.einsum('bhnd,bhde->bhne', q2, ctx1).transpose(0, 2, 1, 3).reshape(B, N, Cr)

    e1 = lin(jnp.concatenate([y1, a1], -1), p['w_ep1'], p['b_ep1'])
    e2 = lin(jnp.concatenate([y2, a2], -1), p['w_ep2'], p['b_ep2'])

    def layer_norm(r, g, b):
        mu = jnp.mean(r, -1, keepdims=True)
        var = jnp.mean((r - mu) ** 2, -1, keepdims=True)
        return (r - mu) * jax.lax.rsqrt(var + eps) * g + b

    return (layer_norm(x1 + e1, p['g1'], p['beta1']),
            layer_norm(x2 + e2, p['g2'], p['beta2']))


if __name__ == "__main__":
    def run_case(key, B, N, dim, reduction, num_heads, tile_n=None, tol=7e-2):
        kx1, kx2, kp = jax.random.split(key, 3)
        x1 = jax.random.normal(kx1, (B, N, dim), jnp.float32)
        x2 = jax.random.normal(kx2, (B, N, dim), jnp.float32)
        p = make_params(kp, dim, reduction, num_heads)
        o1, o2 = crosspath_pallas(x1, x2, p, dim=dim, reduction=reduction,
                                  num_heads=num_heads, tile_n=tile_n)
        jax.block_until_ready((o1, o2))
        r1, r2 = crosspath_ref(x1, x2, p, dim=dim, reduction=reduction,
                               num_heads=num_heads)
        # bf16 MXU operands (f32 accumulation) + approx reciprocal -> loose tol.
        assert jnp.allclose(o1, r1, atol=tol, rtol=tol), \
            float(jnp.max(jnp.abs(o1 - r1)))
        assert jnp.allclose(o2, r2, atol=tol, rtol=tol), \
            float(jnp.max(jnp.abs(o2 - r2)))

    k0, k1, k2 = jax.random.split(jax.random.PRNGKey(0), 3)
    # 1) split-matmul fused path (Cr = 32 is not 128-aligned)
    run_case(k0, B=2, N=8, dim=32, reduction=1, num_heads=4)
    # 2) 128-aligned Cr -> merged full-width matmul path
    run_case(k1, B=2, N=16, dim=128, reduction=1, num_heads=4)
    # 3) force the two-phase N-tiled path (ctx accumulated across N tiles)
    run_case(k2, B=2, N=16, dim=32, reduction=1, num_heads=4, tile_n=8)
    print("KERNEL_OK")
</pallas_src>

<mosaic_0001>
module attributes {stable_mosaic.version = 11 : i64} {
  func.func @_crosspath_fused_kernel(%arg0: i32, %arg1: memref<1x8x32xf32, #tpu.memory_space<vmem>>, %arg2: memref<1x8x32xf32, #tpu.memory_space<vmem>>, %arg3: memref<32x32xbf16, #tpu.memory_space<vmem>>, %arg4: memref<32x32xbf16, #tpu.memory_space<vmem>>, %arg5: memref<1x32xf32, #tpu.memory_space<vmem>>, %arg6: memref<1x32xf32, #tpu.memory_space<vmem>>, %arg7: memref<32x32xbf16, #tpu.memory_space<vmem>>, %arg8: memref<32x32xbf16, #tpu.memory_space<vmem>>, %arg9: memref<1x32xf32, #tpu.memory_space<vmem>>, %arg10: memref<1x32xf32, #tpu.memory_space<vmem>>, %arg11: memref<32x32xbf16, #tpu.memory_space<vmem>>, %arg12: memref<32x32xbf16, #tpu.memory_space<vmem>>, %arg13: memref<32x32xbf16, #tpu.memory_space<vmem>>, %arg14: memref<32x32xbf16, #tpu.memory_space<vmem>>, %arg15: memref<32x32xbf16, #tpu.memory_space<vmem>>, %arg16: memref<32x32xbf16, #tpu.memory_space<vmem>>, %arg17: memref<1x32xf32, #tpu.memory_space<vmem>>, %arg18: memref<32x32xbf16, #tpu.memory_space<vmem>>, %arg19: memref<32x32xbf16, #tpu.memory_space<vmem>>, %arg20: memref<1x32xf32, #tpu.memory_space<vmem>>, %arg21: memref<32x32xf32, #tpu.memory_space<vmem>>, %arg22: memref<1x32xf32, #tpu.memory_space<vmem>>, %arg23: memref<1x32xf32, #tpu.memory_space<vmem>>, %arg24: memref<1x32xf32, #tpu.memory_space<vmem>>, %arg25: memref<1x32xf32, #tpu.memory_space<vmem>>, %arg26: memref<1x8x32xf32, #tpu.memory_space<vmem>>, %arg27: memref<1x8x32xf32, #tpu.memory_space<vmem>>) attributes {dimension_semantics = [#tpu.dimension_semantics<parallel>], iteration_bounds = array<i64: 2>, scalar_prefetch = 0 : i64, scratch_operands = 0 : i64, tpu.core_type = #tpu.core_type<tc>, window_params = [{transform_indices = @transform_0, window_bounds = array<i64: 1, 8, 32>}, {transform_indices = @transform_1, window_bounds = array<i64: 1, 8, 32>}, {pipeline_mode = #tpu.pipeline_mode<synchronous>, transform_indices = @transform_2, window_bounds = array<i64: 32, 32>}, {pipeline_mode = #tpu.pipeline_mode<synchronous>, transform_indices = @transform_3, window_bounds = array<i64: 32, 32>}, {pipeline_mode = #tpu.pipeline_mode<synchronous>, transform_indices = @transform_4, window_bounds = array<i64: 1, 32>}, {pipeline_mode = #tpu.pipeline_mode<synchronous>, transform_indices = @transform_5, window_bounds = array<i64: 1, 32>}, {pipeline_mode = #tpu.pipeline_mode<synchronous>, transform_indices = @transform_6, window_bounds = array<i64: 32, 32>}, {pipeline_mode = #tpu.pipeline_mode<synchronous>, transform_indices = @transform_7, window_bounds = array<i64: 32, 32>}, {pipeline_mode = #tpu.pipeline_mode<synchronous>, transform_indices = @transform_8, window_bounds = array<i64: 1, 32>}, {pipeline_mode = #tpu.pipeline_mode<synchronous>, transform_indices = @transform_9, window_bounds = array<i64: 1, 32>}, {pipeline_mode = #tpu.pipeline_mode<synchronous>, transform_indices = @transform_10, window_bounds = array<i64: 32, 32>}, {pipeline_mode = #tpu.pipeline_mode<synchronous>, transform_indices = @transform_11, window_bounds = array<i64: 32, 32>}, {pipeline_mode = #tpu.pipeline_mode<synchronous>, transform_indices = @transform_12, window_bounds = array<i64: 32, 32>}, {pipeline_mode = #tpu.pipeline_mode<synchronous>, transform_indices = @transform_13, window_bounds = array<i64: 32, 32>}, {pipeline_mode = #tpu.pipeline_mode<synchronous>, transform_indices = @transform_14, window_bounds = array<i64: 32, 32>}, {pipeline_mode = #tpu.pipeline_mode<synchronous>, transform_indices = @transform_15, window_bounds = array<i64: 32, 32>}, {pipeline_mode = #tpu.pipeline_mode<synchronous>, transform_indices = @transform_16, window_bounds = array<i64: 1, 32>}, {pipeline_mode = #tpu.pipeline_mode<synchronous>, transform_indices = @transform_17, window_bounds = array<i64: 32, 32>}, {pipeline_mode = #tpu.pipeline_mode<synchronous>, transform_indices = @transform_18, window_bounds = array<i64: 32, 32>}, {pipeline_mode = #tpu.pipeline_mode<synchronous>, transform_indices = @transform_19, window_bounds = array<i64: 1, 32>}, {pipeline_mode = #tpu.pipeline_mode<synchronous>, transform_indices = @transform_20, window_bounds = array<i64: 32, 32>}, {pipeline_mode = #tpu.pipeline_mode<synchronous>, transform_indices = @transform_21, window_bounds = array<i64: 1, 32>}, {pipeline_mode = #tpu.pipeline_mode<synchronous>, transform_indices = @transform_22, window_bounds = array<i64: 1, 32>}, {pipeline_mode = #tpu.pipeline_mode<synchronous>, transform_indices = @transform_23, window_bounds = array<i64: 1, 32>}, {pipeline_mode = #tpu.pipeline_mode<synchronous>, transform_indices = @transform_24, window_bounds = array<i64: 1, 32>}, {transform_indices = @transform_25, window_bounds = array<i64: 1, 8, 32>}, {transform_indices = @transform_26, window_bounds = array<i64: 1, 8, 32>}]} {
    %c0 = arith.constant 0 : index
    %c0_0 = arith.constant 0 : index
    %c0_1 = arith.constant 0 : index
    %0 = vector.load %arg1[%c0, %c0_0, %c0_1] : memref<1x8x32xf32, #tpu.memory_space<vmem>>, vector<1x8x32xf32>
    %1 = vector.shape_cast %0 : vector<1x8x32xf32> to vector<8x32xf32>
    %2 = arith.truncf %1 : vector<8x32xf32> to vector<8x32xbf16>
    %c0_2 = arith.constant 0 : index
    %c0_3 = arith.constant 0 : index
    %c0_4 = arith.constant 0 : index
    %3 = vector.load %arg2[%c0_2, %c0_3, %c0_4] : memref<1x8x32xf32, #tpu.memory_space<vmem>>, vector<1x8x32xf32>
    %4 = vector.shape_cast %3 : vector<1x8x32xf32> to vector<8x32xf32>
    %5 = arith.truncf %4 : vector<8x32xf32> to vector<8x32xbf16>
    %c0_5 = arith.constant 0 : index
    %c0_6 = arith.constant 0 : index
    %6 = vector.load %arg4[%c0_5, %c0_6] : memref<32x32xbf16, #tpu.memory_space<vmem>>, vector<32x32xbf16>
    %cst = arith.constant dense<0.000000e+00> : vector<8x32xf32>
    %7 = tpu.matmul %2, %6, %cst {dimension_numbers = #tpu.dot_dimension_numbers<[1], [0], [0], [1], [0, 0, 1, 1], [], []>} : vector<8x32xbf16>, vector<32x32xbf16>, vector<8x32xf32> -> vector<8x32xf32>
    %c0_7 = arith.constant 0 : index
    %c0_8 = arith.constant 0 : index
    %8 = vector.load %arg6[%c0_7, %c0_8] : memref<1x32xf32, #tpu.memory_space<vmem>>, vector<1x32xf32>
    %9 = vector.broadcast %8 : vector<1x32xf32> to vector<8x32xf32>
    %10 = arith.addf %7, %9 : vector<8x32xf32>
    %cst_9 = arith.constant 0.000000e+00 : f32
    %11 = vector.broadcast %cst_9 : f32 to vector<8x32xf32>
    %12 = arith.maximumf %10, %11 : vector<8x32xf32>
    %c0_10 = arith.constant 0 : index
    %c0_11 = arith.constant 0 : index
    %13 = vector.load %arg3[%c0_10, %c0_11] : memref<32x32xbf16, #tpu.memory_space<vmem>>, vector<32x32xbf16>
    %cst_12 = arith.constant dense<0.000000e+00> : vector<8x32xf32>
    %14 = tpu.matmul %2, %13, %cst_12 {dimension_numbers = #tpu.dot_dimension_numbers<[1], [0], [0], [1], [0, 0, 1, 1], [], []>} : vector<8x32xbf16>, vector<32x32xbf16>, vector<8x32xf32> -> vector<8x32xf32>
    %c0_13 = arith.constant 0 : index
    %c0_14 = arith.constant 0 : index
    %15 = vector.load %arg5[%c0_13, %c0_14] : memref<1x32xf32, #tpu.memory_space<vmem>>, vector<1x32xf32>
    %16 = vector.broadcast %15 : vector<1x32xf32> to vector<8x32xf32>
    %17 = arith.addf %14, %16 : vector<8x32xf32>
    %cst_15 = arith.constant 0.000000e+00 : f32
    %18 = vector.broadcast %cst_15 : f32 to vector<8x32xf32>
    %19 = arith.maximumf %17, %18 : vector<8x32xf32>
    %c0_16 = arith.constant 0 : index
    %c0_17 = arith.constant 0 : index
    %20 = vector.load %arg8[%c0_16, %c0_17] : memref<32x32xbf16, #tpu.memory_space<vmem>>, vector<32x32xbf16>
    %cst_18 = arith.constant dense<0.000000e+00> : vector<8x32xf32>
    %21 = tpu.matmul %5, %20, %cst_18 {dimension_numbers = #tpu.dot_dimension_numbers<[1], [0], [0], [1], [0, 0, 1, 1], [], []>} : vector<8x32xbf16>, vector<32x32xbf16>, vector<8x32xf32> -> vector<8x32xf32>
    %c0_19 = arith.constant 0 : index
    %c0_20 = arith.constant 0 : index
    %22 = vector.load %arg10[%c0_19, %c0_20] : memref<1x32xf32, #tpu.memory_space<vmem>>, vector<1x32xf32>
    %23 = vector.broadcast %22 : vector<1x32xf32> to vector<8x32xf32>
    %24 = arith.addf %21, %23 : vector<8x32xf32>
    %cst_21 = arith.constant 0.000000e+00 : f32
    %25 = vector.broadcast %cst_21 : f32 to vector<8x32xf32>
    %26 = arith.maximumf %24, %25 : vector<8x32xf32>
    %c0_22 = arith.constant 0 : index
    %c0_23 = arith.constant 0 : index
    %27 = vector.load %arg7[%c0_22, %c0_23] : memref<32x32xbf16, #tpu.memory_space<vmem>>, vector<32x32xbf16>
    %cst_24 = arith.constant dense<0.000000e+00> : vector<8x32xf32>
    %28 = tpu.matmul %5, %27, %cst_24 {dimension_numbers = #tpu.dot_dimension_numbers<[1], [0], [0], [1], [0, 0, 1, 1], [], []>} : vector<8x32xbf16>, vector<32x32xbf16>, vector<8x32xf32> -> vector<8x32xf32>
    %c0_25 = arith.constant 0 : index
    %c0_26 = arith.constant 0 : index
    %29 = vector.load %arg9[%c0_25, %c0_26] : memref<1x32xf32, #tpu.memory_space<vmem>>, vector<1x32xf32>
    %30 = vector.broadcast %29 : vector<1x32xf32> to vector<8x32xf32>
    %31 = arith.addf %28, %30 : vector<8x32xf32>
    %cst_27 = arith.constant 0.000000e+00 : f32
    %32 = vector.broadcast %cst_27 : f32 to vector<8x32xf32>
    %33 = arith.maximumf %31, %32 : vector<8x32xf32>
    %34 = arith.truncf %12 : vector<8x32xf32> to vector<8x32xbf16>
    %35 = arith.truncf %26 : vector<8x32xf32> to vector<8x32xbf16>
    %c0_28 = arith.constant 0 : index
    %c0_29 = arith.constant 0 : index
    %36 = vector.load %arg11[%c0_28, %c0_29] : memref<32x32xbf16, #tpu.memory_space<vmem>>, vector<32x32xbf16>
    %cst_30 = arith.constant dense<0.000000e+00> : vector<8x32xf32>
    %37 = tpu.matmul %34, %36, %cst_30 {dimension_numbers = #tpu.dot_dimension_numbers<[1], [0], [0], [1], [0, 0, 1, 1], [], []>} : vector<8x32xbf16>, vector<32x32xbf16>, vector<8x32xf32> -> vector<8x32xf32>
    %c0_31 = arith.constant 0 : index
    %c0_32 = arith.constant 0 : index
    %38 = vector.load %arg12[%c0_31, %c0_32] : memref<32x32xbf16, #tpu.memory_space<vmem>>, vector<32x32xbf16>
    %cst_33 = arith.constant dense<0.000000e+00> : vector<8x32xf32>
    %39 = tpu.matmul %34, %38, %cst_33 {dimension_numbers = #tpu.dot_dimension_numbers<[1], [0], [0], [1], [0, 0, 1, 1], [], []>} : vector<8x32xbf16>, vector<32x32xbf16>, vector<8x32xf32> -> vector<8x32xf32>
    %c0_34 = arith.constant 0 : index
    %c0_35 = arith.constant 0 : index
    %40 = vector.load %arg13[%c0_34, %c0_35] : memref<32x32xbf16, #tpu.memory_space<vmem>>, vector<32x32xbf16>
    %cst_36 = arith.constant dense<0.000000e+00> : vector<8x32xf32>
    %41 = tpu.matmul %35, %40, %cst_36 {dimension_numbers = #tpu.dot_dimension_numbers<[1], [0], [0], [1], [0, 0, 1, 1], [], []>} : vector<8x32xbf16>, vector<32x32xbf16>, vector<8x32xf32> -> vector<8x32xf32>
    %c0_37 = arith.constant 0 : index
    %c0_38 = arith.constant 0 : index
    %42 = vector.load %arg14[%c0_37, %c0_38] : memref<32x32xbf16, #tpu.memory_space<vmem>>, vector<32x32xbf16>
    %cst_39 = arith.constant dense<0.000000e+00> : vector<8x32xf32>
    %43 = tpu.matmul %35, %42, %cst_39 {dimension_numbers = #tpu.dot_dimension_numbers<[1], [0], [0], [1], [0, 0, 1, 1], [], []>} : vector<8x32xbf16>, vector<32x32xbf16>, vector<8x32xf32> -> vector<8x32xf32>
    %c0_40 = arith.constant 0 : index
    %c0_41 = arith.constant 0 : index
    %44 = vector.load %arg21[%c0_40, %c0_41] : memref<32x32xf32, #tpu.memory_space<vmem>>, vector<32x32xf32>
    %45 = vector.shape_cast %37 : vector<8x32xf32> to vector<1x8x32xf32>
    %46 = arith.truncf %45 : vector<1x8x32xf32> to vector<1x8x32xbf16>
    %47 = vector.shape_cast %39 : vector<8x32xf32> to vector<1x8x32xf32>
    %48 = arith.truncf %47 : vector<1x8x32xf32> to vector<1x8x32xbf16>
    "tpu.trace_start"() <{level = 10 : i32, message = "bnc,bnd->bcd"}> : () -> ()
    %cst_42 = arith.constant dense<0.000000e+00> : vector<1x32x32xf32>
    %49 = tpu.matmul %46, %48, %cst_42 {dimension_numbers = #tpu.dot_dimension_numbers<[1], [1], [2], [2], [0, 0, 0, 2, 1, 2], [0], [0]>} : vector<1x8x32xbf16>, vector<1x8x32xbf16>, vector<1x32x32xf32> -> vector<1x32x32xf32>
    "tpu.trace_stop"() : () -> ()
    %50 = vector.shape_cast %44 : vector<32x32xf32> to vector<1x32x32xf32>
    %51 = arith.addf %49, %50 : vector<1x32x32xf32>
    %cst_43 = arith.constant dense<0xFF800000> : vector<1x32xf32>
    %52 = vector.multi_reduction <maximumf>, %51, %cst_43 [1] : vector<1x32x32xf32> to vector<1x32xf32>
    %53 = vector.shape_cast %52 : vector<1x32xf32> to vector<1x1x32xf32>
    %54 = vector.broadcast %53 : vector<1x1x32xf32> to vector<1x32x32xf32>
    %55 = arith.subf %51, %54 : vector<1x32x32xf32>
    %56 = math.exp %55 : vector<1x32x32xf32>
    %cst_44 = arith.constant dense<0.000000e+00> : vector<1x32xf32>
    %57 = vector.multi_reduction <add>, %56, %cst_44 [1] : vector<1x32x32xf32> to vector<1x32xf32>
    %58 = vector.shape_cast %57 : vector<1x32xf32> to vector<1x1x32xf32>
    %59 = tpu.reciprocal %58 {approx = true} : vector<1x1x32xf32> -> vector<1x1x32xf32>
    %60 = vector.broadcast %59 : vector<1x1x32xf32> to vector<1x32x32xf32>
    %61 = arith.mulf %56, %60 : vector<1x32x32xf32>
    %62 = arith.truncf %61 : vector<1x32x32xf32> to vector<1x32x32xbf16>
    %63 = vector.shape_cast %41 : vector<8x32xf32> to vector<1x8x32xf32>
    %64 = arith.truncf %63 : vector<1x8x32xf32> to vector<1x8x32xbf16>
    %65 = vector.shape_cast %43 : vector<8x32xf32> to vector<1x8x32xf32>
    %66 = arith.truncf %65 : vector<1x8x32xf32> to vector<1x8x32xbf16>
    "tpu.trace_start"() <{level = 10 : i32, message = "bnc,bnd->bcd"}> : () -> ()
    %cst_45 = arith.constant dense<0.000000e+00> : vector<1x32x32xf32>
    %67 = tpu.matmul %64, %66, %cst_45 {dimension_numbers = #tpu.dot_dimension_numbers<[1], [1], [2], [2], [0, 0, 0, 2, 1, 2], [0], [0]>} : vector<1x8x32xbf16>, vector<1x8x32xbf16>, vector<1x32x32xf32> -> vector<1x32x32xf32>
    "tpu.trace_stop"() : () -> ()
    %68 = vector.shape_cast %44 : vector<32x32xf32> to vector<1x32x32xf32>
    %69 = arith.addf %67, %68 : vector<1x32x32xf32>
    %cst_46 = arith.constant dense<0xFF800000> : vector<1x32xf32>
    %70 = vector.multi_reduction <maximumf>, %69, %cst_46 [1] : vector<1x32x32xf32> to vector<1x32xf32>
    %71 = vector.shape_cast %70 : vector<1x32xf32> to vector<1x1x32xf32>
    %72 = vector.broadcast %71 : vector<1x1x32xf32> to vector<1x32x32xf32>
    %73 = arith.subf %69, %72 : vector<1x32x32xf32>
    %74 = math.exp %73 : vector<1x32x32xf32>
    %cst_47 = arith.constant dense<0.000000e+00> : vector<1x32xf32>
    %75 = vector.multi_reduction <add>, %74, %cst_47 [1] : vector<1x32x32xf32> to vector<1x32xf32>
    %76 = vector.shape_cast %75 : vector<1x32xf32> to vector<1x1x32xf32>
    %77 = tpu.reciprocal %76 {approx = true} : vector<1x1x32xf32> -> vector<1x1x32xf32>
    %78 = vector.broadcast %77 : vector<1x1x32xf32> to vector<1x32x32xf32>
    %79 = arith.mulf %74, %78 : vector<1x32x32xf32>
    %80 = arith.truncf %79 : vector<1x32x32xf32> to vector<1x32x32xbf16>
    %81 = vector.shape_cast %34 : vector<8x32xbf16> to vector<1x8x32xbf16>
    "tpu.trace_start"() <{level = 10 : i32, message = "bnc,bcd->bnd"}> : () -> ()
    %cst_48 = arith.constant dense<0.000000e+00> : vector<1x8x32xf32>
    %82 = tpu.matmul %81, %80, %cst_48 {dimension_numbers = #tpu.dot_dimension_numbers<[2], [1], [1], [2], [0, 0, 0, 1, 1, 2], [0], [0]>} : vector<1x8x32xbf16>, vector<1x32x32xbf16>, vector<1x8x32xf32> -> vector<1x8x32xf32>
    "tpu.trace_stop"() : () -> ()
    %83 = vector.shape_cast %82 : vector<1x8x32xf32> to vector<8x32xf32>
    %84 = vector.shape_cast %35 : vector<8x32xbf16> to vector<1x8x32xbf16>
    "tpu.trace_start"() <{level = 10 : i32, message = "bnc,bcd->bnd"}> : () -> ()
    %cst_49 = arith.constant dense<0.000000e+00> : vector<1x8x32xf32>
    %85 = tpu.matmul %84, %62, %cst_49 {dimension_numbers = #tpu.dot_dimension_numbers<[2], [1], [1], [2], [0, 0, 0, 1, 1, 2], [0], [0]>} : vector<1x8x32xbf16>, vector<1x32x32xbf16>, vector<1x8x32xf32> -> vector<1x8x32xf32>
    "tpu.trace_stop"() : () -> ()
    %86 = vector.shape_cast %85 : vector<1x8x32xf32> to vector<8x32xf32>
    %87 = arith.truncf %19 : vector<8x32xf32> to vector<8x32xbf16>
    %c0_50 = arith.constant 0 : index
    %c0_51 = arith.constant 0 : index
    %88 = vector.load %arg15[%c0_50, %c0_51] : memref<32x32xbf16, #tpu.memory_space<vmem>>, vector<32x32xbf16>
    %cst_52 = arith.constant dense<0.000000e+00> : vector<8x32xf32>
    %89 = tpu.matmul %87, %88, %cst_52 {dimension_numbers = #tpu.dot_dimension_numbers<[1], [0], [0], [1], [0, 0, 1, 1], [], []>} : vector<8x32xbf16>, vector<32x32xbf16>, vector<8x32xf32> -> vector<8x32xf32>
    %90 = arith.truncf %83 : vector<8x32xf32> to vector<8x32xbf16>
    %c0_53 = arith.constant 0 : index
    %c0_54 = arith.constant 0 : index
    %91 = vector.load %arg16[%c0_53, %c0_54] : memref<32x32xbf16, #tpu.memory_space<vmem>>, vector<32x32xbf16>
    %cst_55 = arith.constant dense<0.000000e+00> : vector<8x32xf32>
    %92 = tpu.matmul %90, %91, %cst_55 {dimension_numbers = #tpu.dot_dimension_numbers<[1], [0], [0], [1], [0, 0, 1, 1], [], []>} : vector<8x32xbf16>, vector<32x32xbf16>, vector<8x32xf32> -> vector<8x32xf32>
    %93 = arith.addf %89, %92 : vector<8x32xf32>
    %c0_56 = arith.constant 0 : index
    %c0_57 = arith.constant 0 : index
    %94 = vector.load %arg17[%c0_56, %c0_57] : memref<1x32xf32, #tpu.memory_space<vmem>>, vector<1x32xf32>
    %95 = vector.broadcast %94 : vector<1x32xf32> to vector<8x32xf32>
    %96 = arith.addf %93, %95 : vector<8x32xf32>
    %97 = arith.truncf %33 : vector<8x32xf32> to vector<8x32xbf16>
    %c0_58 = arith.constant 0 : index
    %c0_59 = arith.constant 0 : index
    %98 = vector.load %arg18[%c0_58, %c0_59] : memref<32x32xbf16, #tpu.memory_space<vmem>>, vector<32x32xbf16>
    %cst_60 = arith.constant dense<0.000000e+00> : vector<8x32xf32>
    %99 = tpu.matmul %97, %98, %cst_60 {dimension_numbers = #tpu.dot_dimension_numbers<[1], [0], [0], [1], [0, 0, 1, 1], [], []>} : vector<8x32xbf16>, vector<32x32xbf16>, vector<8x32xf32> -> vector<8x32xf32>
    %100 = arith.truncf %86 : vector<8x32xf32> to vector<8x32xbf16>
    %c0_61 = arith.constant 0 : index
    %c0_62 = arith.constant 0 : index
    %101 = vector.load %arg19[%c0_61, %c0_62] : memref<32x32xbf16, #tpu.memory_space<vmem>>, vector<32x32xbf16>
    %cst_63 = arith.constant dense<0.000000e+00> : vector<8x32xf32>
    %102 = tpu.matmul %100, %101, %cst_63 {dimension_numbers = #tpu.dot_dimension_numbers<[1], [0], [0], [1], [0, 0, 1, 1], [], []>} : vector<8x32xbf16>, vector<32x32xbf16>, vector<8x32xf32> -> vector<8x32xf32>
    %103 = arith.addf %99, %102 : vector<8x32xf32>
    %c0_64 = arith.constant 0 : index
    %c0_65 = arith.constant 0 : index
    %104 = vector.load %arg20[%c0_64, %c0_65] : memref<1x32xf32, #tpu.memory_space<vmem>>, vector<1x32xf32>
    %105 = vector.broadcast %104 : vector<1x32xf32> to vector<8x32xf32>
    %106 = arith.addf %103, %105 : vector<8x32xf32>
    %c0_66 = arith.constant 0 : index
    %c0_67 = arith.constant 0 : index
    %c0_68 = arith.constant 0 : index
    %107 = vector.load %arg1[%c0_66, %c0_67, %c0_68] : memref<1x8x32xf32, #tpu.memory_space<vmem>>, vector<1x8x32xf32>
    %108 = vector.shape_cast %107 : vector<1x8x32xf32> to vector<8x32xf32>
    %109 = arith.addf %108, %96 : vector<8x32xf32>
    %c0_69 = arith.constant 0 : index
    %c0_70 = arith.constant 0 : index
    %c0_71 = arith.constant 0 : index
    %110 = vector.load %arg2[%c0_69, %c0_70, %c0_71] : memref<1x8x32xf32, #tpu.memory_space<vmem>>, vector<1x8x32xf32>
    %111 = vector.shape_cast %110 : vector<1x8x32xf32> to vector<8x32xf32>
    %112 = arith.addf %111, %106 : vector<8x32xf32>
    %c0_72 = arith.constant 0 : index
    %c0_73 = arith.constant 0 : index
    %113 = vector.load %arg22[%c0_72, %c0_73] : memref<1x32xf32, #tpu.memory_space<vmem>>, vector<1x32xf32>
    %c0_74 = arith.constant 0 : index
    %c0_75 = arith.constant 0 : index
    %114 = vector.load %arg23[%c0_74, %c0_75] : memref<1x32xf32, #tpu.memory_space<vmem>>, vector<1x32xf32>
    %cst_76 = arith.constant dense<0.000000e+00> : vector<8xf32>
    %115 = vector.multi_reduction <add>, %109, %cst_76 [1] : vector<8x32xf32> to vector<8xf32>
    %116 = vector.shape_cast %115 : vector<8xf32> to vector<8x1xf32>
    %cst_77 = arith.constant 3.200000e+01 : f32
    %117 = vector.broadcast %cst_77 : f32 to vector<8x1xf32>
    %118 = arith.divf %116, %117 : vector<8x1xf32>
    %119 = arith.mulf %109, %109 : vector<8x32xf32>
    %cst_78 = arith.constant dense<0.000000e+00> : vector<8xf32>
    %120 = vector.multi_reduction <add>, %119, %cst_78 [1] : vector<8x32xf32> to vector<8xf32>
    %121 = vector.shape_cast %120 : vector<8xf32> to vector<8x1xf32>
    %cst_79 = arith.constant 3.200000e+01 : f32
    %122 = vector.broadcast %cst_79 : f32 to vector<8x1xf32>
    %123 = arith.divf %121, %122 : vector<8x1xf32>
    %124 = arith.mulf %118, %118 : vector<8x1xf32>
    %125 = arith.subf %123, %124 : vector<8x1xf32>
    %cst_80 = arith.constant 0.000000e+00 : f32
    %126 = vector.broadcast %cst_80 : f32 to vector<8x1xf32>
    %127 = arith.maximumf %125, %126 : vector<8x1xf32>
    %128 = vector.broadcast %118 : vector<8x1xf32> to vector<8x32xf32>
    %129 = arith.subf %109, %128 : vector<8x32xf32>
    %cst_81 = arith.constant 9.99999974E-6 : f32
    %130 = vector.broadcast %cst_81 : f32 to vector<8x1xf32>
    %131 = arith.addf %127, %130 : vector<8x1xf32>
    %132 = math.rsqrt %131 : vector<8x1xf32>
    %133 = vector.broadcast %132 : vector<8x1xf32> to vector<8x32xf32>
    %134 = arith.mulf %129, %133 : vector<8x32xf32>
    %135 = vector.broadcast %113 : vector<1x32xf32> to vector<8x32xf32>
    %136 = arith.mulf %134, %135 : vector<8x32xf32>
    %137 = vector.broadcast %114 : vector<1x32xf32> to vector<8x32xf32>
    %138 = arith.addf %136, %137 : vector<8x32xf32>
    %139 = vector.shape_cast %138 : vector<8x32xf32> to vector<1x8x32xf32>
    %c0_82 = arith.constant 0 : index
    %c0_83 = arith.constant 0 : index
    %c0_84 = arith.constant 0 : index
    %140 = vector.load %arg26[%c0_82, %c0_83, %c0_84] : memref<1x8x32xf32, #tpu.memory_space<vmem>>, vector<1x8x32xf32>
    tpu.vector_store %arg26[%c0_82, %c0_83, %c0_84], %139 {strides = array<i32>} : memref<1x8x32xf32, #tpu.memory_space<vmem>>, vector<1x8x32xf32>,
    %c0_85 = arith.constant 0 : index
    %c0_86 = arith.constant 0 : index
    %141 = vector.load %arg24[%c0_85, %c0_86] : memref<1x32xf32, #tpu.memory_space<vmem>>, vector<1x32xf32>
    %c0_87 = arith.constant 0 : index
    %c0_88 = arith.constant 0 : index
    %142 = vector.load %arg25[%c0_87, %c0_88] : memref<1x32xf32, #tpu.memory_space<vmem>>, vector<1x32xf32>
    %cst_89 = arith.constant dense<0.000000e+00> : vector<8xf32>
    %143 = vector.multi_reduction <add>, %112, %cst_89 [1] : vector<8x32xf32> to vector<8xf32>
    %144 = vector.shape_cast %143 : vector<8xf32> to vector<8x1xf32>
    %cst_90 = arith.constant 3.200000e+01 : f32
    %145 = vector.broadcast %cst_90 : f32 to vector<8x1xf32>
    %146 = arith.divf %144, %145 : vector<8x1xf32>
    %147 = arith.mulf %112, %112 : vector<8x32xf32>
    %cst_91 = arith.constant dense<0.000000e+00> : vector<8xf32>
    %148 = vector.multi_reduction <add>, %147, %cst_91 [1] : vector<8x32xf32> to vector<8xf32>
    %149 = vector.shape_cast %148 : vector<8xf32> to vector<8x1xf32>
    %cst_92 = arith.constant 3.200000e+01 : f32
    %150 = vector.broadcast %cst_92 : f32 to vector<8x1xf32>
    %151 = arith.divf %149, %150 : vector<8x1xf32>
    %152 = arith.mulf %146, %146 : vector<8x1xf32>
    %153 = arith.subf %151, %152 : vector<8x1xf32>
    %cst_93 = arith.constant 0.000000e+00 : f32
    %154 = vector.broadcast %cst_93 : f32 to vector<8x1xf32>
    %155 = arith.maximumf %153, %154 : vector<8x1xf32>
    %156 = vector.broadcast %146 : vector<8x1xf32> to vector<8x32xf32>
    %157 = arith.subf %112, %156 : vector<8x32xf32>
    %cst_94 = arith.constant 9.99999974E-6 : f32
    %158 = vector.broadcast %cst_94 : f32 to vector<8x1xf32>
    %159 = arith.addf %155, %158 : vector<8x1xf32>
    %160 = math.rsqrt %159 : vector<8x1xf32>
    %161 = vector.broadcast %160 : vector<8x1xf32> to vector<8x32xf32>
    %162 = arith.mulf %157, %161 : vector<8x32xf32>
    %163 = vector.broadcast %141 : vector<1x32xf32> to vector<8x32xf32>
    %164 = arith.mulf %162, %163 : vector<8x32xf32>
    %165 = vector.broadcast %142 : vector<1x32xf32> to vector<8x32xf32>
    %166 = arith.addf %164, %165 : vector<8x32xf32>
    %167 = vector.shape_cast %166 : vector<8x32xf32> to vector<1x8x32xf32>
    %c0_95 = arith.constant 0 : index
    %c0_96 = arith.constant 0 : index
    %c0_97 = arith.constant 0 : index
    %168 = vector.load %arg27[%c0_95, %c0_96, %c0_97] : memref<1x8x32xf32, #tpu.memory_space<vmem>>, vector<1x8x32xf32>
    tpu.vector_store %arg27[%c0_95, %c0_96, %c0_97], %167 {strides = array<i32>} : memref<1x8x32xf32, #tpu.memory_space<vmem>>, vector<1x8x32xf32>,
    return
  }
  func.func @transform_0(%arg0: i32) -> (i32, i32, i32) {
    %c0_i32 = arith.constant 0 : i32
    %c0_i32_0 = arith.constant 0 : i32
    %c0_i32_1 = arith.constant 0 : i32
    return %arg0, %c0_i32, %c0_i32_0 : i32, i32, i32
  }
  func.func @transform_1(%arg0: i32) -> (i32, i32, i32) {
    %c0_i32 = arith.constant 0 : i32
    %c0_i32_0 = arith.constant 0 : i32
    %c0_i32_1 = arith.constant 0 : i32
    return %arg0, %c0_i32, %c0_i32_0 : i32, i32, i32
  }
  func.func @transform_2(%arg0: i32) -> (i32, i32) {
    %c0_i32 = arith.constant 0 : i32
    %c0_i32_0 = arith.constant 0 : i32
    %c0_i32_1 = arith.constant 0 : i32
    return %c0_i32, %c0_i32_0 : i32, i32
  }
  func.func @transform_3(%arg0: i32) -> (i32, i32) {
    %c0_i32 = arith.constant 0 : i32
    %c0_i32_0 = arith.constant 0 : i32
    %c0_i32_1 = arith.constant 0 : i32
    return %c0_i32, %c0_i32_0 : i32, i32
  }
  func.func @transform_4(%arg0: i32) -> (i32, i32) {
    %c0_i32 = arith.constant 0 : i32
    %c0_i32_0 = arith.constant 0 : i32
    %c0_i32_1 = arith.constant 0 : i32
    return %c0_i32, %c0_i32_0 : i32, i32
  }
  func.func @transform_5(%arg0: i32) -> (i32, i32) {
    %c0_i32 = arith.constant 0 : i32
    %c0_i32_0 = arith.constant 0 : i32
    %c0_i32_1 = arith.constant 0 : i32
    return %c0_i32, %c0_i32_0 : i32, i32
  }
  func.func @transform_6(%arg0: i32) -> (i32, i32) {
    %c0_i32 = arith.constant 0 : i32
    %c0_i32_0 = arith.constant 0 : i32
    %c0_i32_1 = arith.constant 0 : i32
    return %c0_i32, %c0_i32_0 : i32, i32
  }
  func.func @transform_7(%arg0: i32) -> (i32, i32) {
    %c0_i32 = arith.constant 0 : i32
    %c0_i32_0 = arith.constant 0 : i32
    %c0_i32_1 = arith.constant 0 : i32
    return %c0_i32, %c0_i32_0 : i32, i32
  }
  func.func @transform_8(%arg0: i32) -> (i32, i32) {
    %c0_i32 = arith.constant 0 : i32
    %c0_i32_0 = arith.constant 0 : i32
    %c0_i32_1 = arith.constant 0 : i32
    return %c0_i32, %c0_i32_0 : i32, i32
  }
  func.func @transform_9(%arg0: i32) -> (i32, i32) {
    %c0_i32 = arith.constant 0 : i32
    %c0_i32_0 = arith.constant 0 : i32
    %c0_i32_1 = arith.constant 0 : i32
    return %c0_i32, %c0_i32_0 : i32, i32
  }
  func.func @transform_10(%arg0: i32) -> (i32, i32) {
    %c0_i32 = arith.constant 0 : i32
    %c0_i32_0 = arith.constant 0 : i32
    %c0_i32_1 = arith.constant 0 : i32
    return %c0_i32, %c0_i32_0 : i32, i32
  }
  func.func @transform_11(%arg0: i32) -> (i32, i32) {
    %c0_i32 = arith.constant 0 : i32
    %c0_i32_0 = arith.constant 0 : i32
    %c0_i32_1 = arith.constant 0 : i32
    return %c0_i32, %c0_i32_0 : i32, i32
  }
  func.func @transform_12(%arg0: i32) -> (i32, i32) {
    %c0_i32 = arith.constant 0 : i32
    %c0_i32_0 = arith.constant 0 : i32
    %c0_i32_1 = arith.constant 0 : i32
    return %c0_i32, %c0_i32_0 : i32, i32
  }
  func.func @transform_13(%arg0: i32) -> (i32, i32) {
    %c0_i32 = arith.constant 0 : i32
    %c0_i32_0 = arith.constant 0 : i32
    %c0_i32_1 = arith.constant 0 : i32
    return %c0_i32, %c0_i32_0 : i32, i32
  }
  func.func @transform_14(%arg0: i32) -> (i32, i32) {
    %c0_i32 = arith.constant 0 : i32
    %c0_i32_0 = arith.constant 0 : i32
    %c0_i32_1 = arith.constant 0 : i32
    return %c0_i32, %c0_i32_0 : i32, i32
  }
  func.func @transform_15(%arg0: i32) -> (i32, i32) {
    %c0_i32 = arith.constant 0 : i32
    %c0_i32_0 = arith.constant 0 : i32
    %c0_i32_1 = arith.constant 0 : i32
    return %c0_i32, %c0_i32_0 : i32, i32
  }
  func.func @transform_16(%arg0: i32) -> (i32, i32) {
    %c0_i32 = arith.constant 0 : i32
    %c0_i32_0 = arith.constant 0 : i32
    %c0_i32_1 = arith.constant 0 : i32
    return %c0_i32, %c0_i32_0 : i32, i32
  }
  func.func @transform_17(%arg0: i32) -> (i32, i32) {
    %c0_i32 = arith.constant 0 : i32
    %c0_i32_0 = arith.constant 0 : i32
    %c0_i32_1 = arith.constant 0 : i32
    return %c0_i32, %c0_i32_0 : i32, i32
  }
  func.func @transform_18(%arg0: i32) -> (i32, i32) {
    %c0_i32 = arith.constant 0 : i32
    %c0_i32_0 = arith.constant 0 : i32
    %c0_i32_1 = arith.constant 0 : i32
    return %c0_i32, %c0_i32_0 : i32, i32
  }
  func.func @transform_19(%arg0: i32) -> (i32, i32) {
    %c0_i32 = arith.constant 0 : i32
    %c0_i32_0 = arith.constant 0 : i32
    %c0_i32_1 = arith.constant 0 : i32
    return %c0_i32, %c0_i32_0 : i32, i32
  }
  func.func @transform_20(%arg0: i32) -> (i32, i32) {
    %c0_i32 = arith.constant 0 : i32
    %c0_i32_0 = arith.constant 0 : i32
    %c0_i32_1 = arith.constant 0 : i32
    return %c0_i32, %c0_i32_0 : i32, i32
  }
  func.func @transform_21(%arg0: i32) -> (i32, i32) {
    %c0_i32 = arith.constant 0 : i32
    %c0_i32_0 = arith.constant 0 : i32
    %c0_i32_1 = arith.constant 0 : i32
    return %c0_i32, %c0_i32_0 : i32, i32
  }
  func.func @transform_22(%arg0: i32) -> (i32, i32) {
    %c0_i32 = arith.constant 0 : i32
    %c0_i32_0 = arith.constant 0 : i32
    %c0_i32_1 = arith.constant 0 : i32
    return %c0_i32, %c0_i32_0 : i32, i32
  }
  func.func @transform_23(%arg0: i32) -> (i32, i32) {
    %c0_i32 = arith.constant 0 : i32
    %c0_i32_0 = arith.constant 0 : i32
    %c0_i32_1 = arith.constant 0 : i32
    return %c0_i32, %c0_i32_0 : i32, i32
  }
  func.func @transform_24(%arg0: i32) -> (i32, i32) {
    %c0_i32 = arith.constant 0 : i32
    %c0_i32_0 = arith.constant 0 : i32
    %c0_i32_1 = arith.constant 0 : i32
    return %c0_i32, %c0_i32_0 : i32, i32
  }
  func.func @transform_25(%arg0: i32) -> (i32, i32, i32) {
    %c0_i32 = arith.constant 0 : i32
    %c0_i32_0 = arith.constant 0 : i32
    %c0_i32_1 = arith.constant 0 : i32
    return %arg0, %c0_i32, %c0_i32_0 : i32, i32, i32
  }
  func.func @transform_26(%arg0: i32) -> (i32, i32, i32) {
    %c0_i32 = arith.constant 0 : i32
    %c0_i32_0 = arith.constant 0 : i32
    %c0_i32_1 = arith.constant 0 : i32
    return %arg0, %c0_i32, %c0_i32_0 : i32, i32, i32
  }
}

module attributes {stable_mosaic.version = 11 : i64} {
  func.func @_crosspath_fused_kernel(%arg0: i32, %arg1: memref<1x8x32xf32, #tpu.memory_space<vmem>>, %arg2: memref<1x8x32xf32, #tpu.memory_space<vmem>>, %arg3: memref<32x32xbf16, #tpu.memory_space<vmem>>, %arg4: memref<32x32xbf16, #tpu.memory_space<vmem>>, %arg5: memref<1x32xf32, #tpu.memory_space<vmem>>, %arg6: memref<1x32xf32, #tpu.memory_space<vmem>>, %arg7: memref<32x32xbf16, #tpu.memory_space<vmem>>, %arg8: memref<32x32xbf16, #tpu.memory_space<vmem>>, %arg9: memref<1x32xf32, #tpu.memory_space<vmem>>, %arg10: memref<1x32xf32, #tpu.memory_space<vmem>>, %arg11: memref<32x32xbf16, #tpu.memory_space<vmem>>, %arg12: memref<32x32xbf16, #tpu.memory_space<vmem>>, %arg13: memref<32x32xbf16, #tpu.memory_space<vmem>>, %arg14: memref<32x32xbf16, #tpu.memory_space<vmem>>, %arg15: memref<32x32xbf16, #tpu.memory_space<vmem>>, %arg16: memref<32x32xbf16, #tpu.memory_space<vmem>>, %arg17: memref<1x32xf32, #tpu.memory_space<vmem>>, %arg18: memref<32x32xbf16, #tpu.memory_space<vmem>>, %arg19: memref<32x32xbf16, #tpu.memory_space<vmem>>, %arg20: memref<1x32xf32, #tpu.memory_space<vmem>>, %arg21: memref<32x32xf32, #tpu.memory_space<vmem>>, %arg22: memref<1x32xf32, #tpu.memory_space<vmem>>, %arg23: memref<1x32xf32, #tpu.memory_space<vmem>>, %arg24: memref<1x32xf32, #tpu.memory_space<vmem>>, %arg25: memref<1x32xf32, #tpu.memory_space<vmem>>, %arg26: memref<1x8x32xf32, #tpu.memory_space<vmem>>, %arg27: memref<1x8x32xf32, #tpu.memory_space<vmem>>) attributes {dimension_semantics = [#tpu.dimension_semantics<parallel>], iteration_bounds = array<i64: 2>, scalar_prefetch = 0 : i64, scratch_operands = 0 : i64, tpu.core_type = #tpu.core_type<tc>, window_params = [{transform_indices = @transform_0, window_bounds = array<i64: 1, 8, 32>}, {transform_indices = @transform_1, window_bounds = array<i64: 1, 8, 32>}, {pipeline_mode = #tpu.pipeline_mode<synchronous>, transform_indices = @transform_2, window_bounds = array<i64: 32, 32>}, {pipeline_mode = #tpu.pipeline_mode<synchronous>, transform_indices = @transform_3, window_bounds = array<i64: 32, 32>}, {pipeline_mode = #tpu.pipeline_mode<synchronous>, transform_indices = @transform_4, window_bounds = array<i64: 1, 32>}, {pipeline_mode = #tpu.pipeline_mode<synchronous>, transform_indices = @transform_5, window_bounds = array<i64: 1, 32>}, {pipeline_mode = #tpu.pipeline_mode<synchronous>, transform_indices = @transform_6, window_bounds = array<i64: 32, 32>}, {pipeline_mode = #tpu.pipeline_mode<synchronous>, transform_indices = @transform_7, window_bounds = array<i64: 32, 32>}, {pipeline_mode = #tpu.pipeline_mode<synchronous>, transform_indices = @transform_8, window_bounds = array<i64: 1, 32>}, {pipeline_mode = #tpu.pipeline_mode<synchronous>, transform_indices = @transform_9, window_bounds = array<i64: 1, 32>}, {pipeline_mode = #tpu.pipeline_mode<synchronous>, transform_indices = @transform_10, window_bounds = array<i64: 32, 32>}, {pipeline_mode = #tpu.pipeline_mode<synchronous>, transform_indices = @transform_11, window_bounds = array<i64: 32, 32>}, {pipeline_mode = #tpu.pipeline_mode<synchronous>, transform_indices = @transform_12, window_bounds = array<i64: 32, 32>}, {pipeline_mode = #tpu.pipeline_mode<synchronous>, transform_indices = @transform_13, window_bounds = array<i64: 32, 32>}, {pipeline_mode = #tpu.pipeline_mode<synchronous>, transform_indices = @transform_14, window_bounds = array<i64: 32, 32>}, {pipeline_mode = #tpu.pipeline_mode<synchronous>, transform_indices = @transform_15, window_bounds = array<i64: 32, 32>}, {pipeline_mode = #tpu.pipeline_mode<synchronous>, transform_indices = @transform_16, window_bounds = array<i64: 1, 32>}, {pipeline_mode = #tpu.pipeline_mode<synchronous>, transform_indices = @transform_17, window_bounds = array<i64: 32, 32>}, {pipeline_mode = #tpu.pipeline_mode<synchronous>, transform_indices = @transform_18, window_bounds = array<i64: 32, 32>}, {pipeline_mode = #tpu.pipeline_mode<synchronous>, transform_indices = @transform_19, window_bounds = array<i64: 1, 32>}, {pipeline_mode = #tpu.pipeline_mode<synchronous>, transform_indices = @transform_20, window_bounds = array<i64: 32, 32>}, {pipeline_mode = #tpu.pipeline_mode<synchronous>, transform_indices = @transform_21, window_bounds = array<i64: 1, 32>}, {pipeline_mode = #tpu.pipeline_mode<synchronous>, transform_indices = @transform_22, window_bounds = array<i64: 1, 32>}, {pipeline_mode = #tpu.pipeline_mode<synchronous>, transform_indices = @transform_23, window_bounds = array<i64: 1, 32>}, {pipeline_mode = #tpu.pipeline_mode<synchronous>, transform_indices = @transform_24, window_bounds = array<i64: 1, 32>}, {transform_indices = @transform_25, window_bounds = array<i64: 1, 8, 32>}, {transform_indices = @transform_26, window_bounds = array<i64: 1, 8, 32>}]} {
    %c0 = arith.constant 0 : index
    %c0_0 = arith.constant 0 : index
    %c0_1 = arith.constant 0 : index
    %0 = vector.load %arg1[%c0, %c0_0, %c0_1] : memref<1x8x32xf32, #tpu.memory_space<vmem>>, vector<1x8x32xf32>
    %1 = vector.shape_cast %0 : vector<1x8x32xf32> to vector<8x32xf32>
    %2 = arith.truncf %1 : vector<8x32xf32> to vector<8x32xbf16>
    %c0_2 = arith.constant 0 : index
    %c0_3 = arith.constant 0 : index
    %c0_4 = arith.constant 0 : index
    %3 = vector.load %arg2[%c0_2, %c0_3, %c0_4] : memref<1x8x32xf32, #tpu.memory_space<vmem>>, vector<1x8x32xf32>
    %4 = vector.shape_cast %3 : vector<1x8x32xf32> to vector<8x32xf32>
    %5 = arith.truncf %4 : vector<8x32xf32> to vector<8x32xbf16>
    %c0_5 = arith.constant 0 : index
    %c0_6 = arith.constant 0 : index
    %6 = vector.load %arg4[%c0_5, %c0_6] : memref<32x32xbf16, #tpu.memory_space<vmem>>, vector<32x32xbf16>
    %cst = arith.constant dense<0.000000e+00> : vector<8x32xf32>
    %7 = tpu.matmul %2, %6, %cst {dimension_numbers = #tpu.dot_dimension_numbers<[1], [0], [0], [1], [0, 0, 1, 1], [], []>} : vector<8x32xbf16>, vector<32x32xbf16>, vector<8x32xf32> -> vector<8x32xf32>
    %c0_7 = arith.constant 0 : index
    %c0_8 = arith.constant 0 : index
    %8 = vector.load %arg6[%c0_7, %c0_8] : memref<1x32xf32, #tpu.memory_space<vmem>>, vector<1x32xf32>
    %9 = vector.broadcast %8 : vector<1x32xf32> to vector<8x32xf32>
    %10 = arith.addf %7, %9 : vector<8x32xf32>
    %cst_9 = arith.constant 0.000000e+00 : f32
    %11 = vector.broadcast %cst_9 : f32 to vector<8x32xf32>
    %12 = arith.maximumf %10, %11 : vector<8x32xf32>
    %c0_10 = arith.constant 0 : index
    %c0_11 = arith.constant 0 : index
    %13 = vector.load %arg3[%c0_10, %c0_11] : memref<32x32xbf16, #tpu.memory_space<vmem>>, vector<32x32xbf16>
    %cst_12 = arith.constant dense<0.000000e+00> : vector<8x32xf32>
    %14 = tpu.matmul %2, %13, %cst_12 {dimension_numbers = #tpu.dot_dimension_numbers<[1], [0], [0], [1], [0, 0, 1, 1], [], []>} : vector<8x32xbf16>, vector<32x32xbf16>, vector<8x32xf32> -> vector<8x32xf32>
    %c0_13 = arith.constant 0 : index
    %c0_14 = arith.constant 0 : index
    %15 = vector.load %arg5[%c0_13, %c0_14] : memref<1x32xf32, #tpu.memory_space<vmem>>, vector<1x32xf32>
    %16 = vector.broadcast %15 : vector<1x32xf32> to vector<8x32xf32>
    %17 = arith.addf %14, %16 : vector<8x32xf32>
    %cst_15 = arith.constant 0.000000e+00 : f32
    %18 = vector.broadcast %cst_15 : f32 to vector<8x32xf32>
    %19 = arith.maximumf %17, %18 : vector<8x32xf32>
    %c0_16 = arith.constant 0 : index
    %c0_17 = arith.constant 0 : index
    %20 = vector.load %arg8[%c0_16, %c0_17] : memref<32x32xbf16, #tpu.memory_space<vmem>>, vector<32x32xbf16>
    %cst_18 = arith.constant dense<0.000000e+00> : vector<8x32xf32>
    %21 = tpu.matmul %5, %20, %cst_18 {dimension_numbers = #tpu.dot_dimension_numbers<[1], [0], [0], [1], [0, 0, 1, 1], [], []>} : vector<8x32xbf16>, vector<32x32xbf16>, vector<8x32xf32> -> vector<8x32xf32>
    %c0_19 = arith.constant 0 : index
    %c0_20 = arith.constant 0 : index
    %22 = vector.load %arg10[%c0_19, %c0_20] : memref<1x32xf32, #tpu.memory_space<vmem>>, vector<1x32xf32>
    %23 = vector.broadcast %22 : vector<1x32xf32> to vector<8x32xf32>
    %24 = arith.addf %21, %23 : vector<8x32xf32>
    %cst_21 = arith.constant 0.000000e+00 : f32
    %25 = vector.broadcast %cst_21 : f32 to vector<8x32xf32>
    %26 = arith.maximumf %24, %25 : vector<8x32xf32>
    %c0_22 = arith.constant 0 : index
    %c0_23 = arith.constant 0 : index
    %27 = vector.load %arg7[%c0_22, %c0_23] : memref<32x32xbf16, #tpu.memory_space<vmem>>, vector<32x32xbf16>
    %cst_24 = arith.constant dense<0.000000e+00> : vector<8x32xf32>
    %28 = tpu.matmul %5, %27, %cst_24 {dimension_numbers = #tpu.dot_dimension_numbers<[1], [0], [0], [1], [0, 0, 1, 1], [], []>} : vector<8x32xbf16>, vector<32x32xbf16>, vector<8x32xf32> -> vector<8x32xf32>
    %c0_25 = arith.constant 0 : index
    %c0_26 = arith.constant 0 : index
    %29 = vector.load %arg9[%c0_25, %c0_26] : memref<1x32xf32, #tpu.memory_space<vmem>>, vector<1x32xf32>
    %30 = vector.broadcast %29 : vector<1x32xf32> to vector<8x32xf32>
    %31 = arith.addf %28, %30 : vector<8x32xf32>
    %cst_27 = arith.constant 0.000000e+00 : f32
    %32 = vector.broadcast %cst_27 : f32 to vector<8x32xf32>
    %33 = arith.maximumf %31, %32 : vector<8x32xf32>
    %34 = arith.truncf %12 : vector<8x32xf32> to vector<8x32xbf16>
    %35 = arith.truncf %26 : vector<8x32xf32> to vector<8x32xbf16>
    %c0_28 = arith.constant 0 : index
    %c0_29 = arith.constant 0 : index
    %36 = vector.load %arg11[%c0_28, %c0_29] : memref<32x32xbf16, #tpu.memory_space<vmem>>, vector<32x32xbf16>
    %cst_30 = arith.constant dense<0.000000e+00> : vector<8x32xf32>
    %37 = tpu.matmul %34, %36, %cst_30 {dimension_numbers = #tpu.dot_dimension_numbers<[1], [0], [0], [1], [0, 0, 1, 1], [], []>} : vector<8x32xbf16>, vector<32x32xbf16>, vector<8x32xf32> -> vector<8x32xf32>
    %c0_31 = arith.constant 0 : index
    %c0_32 = arith.constant 0 : index
    %38 = vector.load %arg12[%c0_31, %c0_32] : memref<32x32xbf16, #tpu.memory_space<vmem>>, vector<32x32xbf16>
    %cst_33 = arith.constant dense<0.000000e+00> : vector<8x32xf32>
    %39 = tpu.matmul %34, %38, %cst_33 {dimension_numbers = #tpu.dot_dimension_numbers<[1], [0], [0], [1], [0, 0, 1, 1], [], []>} : vector<8x32xbf16>, vector<32x32xbf16>, vector<8x32xf32> -> vector<8x32xf32>
    %c0_34 = arith.constant 0 : index
    %c0_35 = arith.constant 0 : index
    %40 = vector.load %arg13[%c0_34, %c0_35] : memref<32x32xbf16, #tpu.memory_space<vmem>>, vector<32x32xbf16>
    %cst_36 = arith.constant dense<0.000000e+00> : vector<8x32xf32>
    %41 = tpu.matmul %35, %40, %cst_36 {dimension_numbers = #tpu.dot_dimension_numbers<[1], [0], [0], [1], [0, 0, 1, 1], [], []>} : vector<8x32xbf16>, vector<32x32xbf16>, vector<8x32xf32> -> vector<8x32xf32>
    %c0_37 = arith.constant 0 : index
    %c0_38 = arith.constant 0 : index
    %42 = vector.load %arg14[%c0_37, %c0_38] : memref<32x32xbf16, #tpu.memory_space<vmem>>, vector<32x32xbf16>
    %cst_39 = arith.constant dense<0.000000e+00> : vector<8x32xf32>
    %43 = tpu.matmul %35, %42, %cst_39 {dimension_numbers = #tpu.dot_dimension_numbers<[1], [0], [0], [1], [0, 0, 1, 1], [], []>} : vector<8x32xbf16>, vector<32x32xbf16>, vector<8x32xf32> -> vector<8x32xf32>
    %c0_40 = arith.constant 0 : index
    %c0_41 = arith.constant 0 : index
    %44 = vector.load %arg21[%c0_40, %c0_41] : memref<32x32xf32, #tpu.memory_space<vmem>>, vector<32x32xf32>
    %45 = vector.shape_cast %37 : vector<8x32xf32> to vector<1x8x32xf32>
    %46 = arith.truncf %45 : vector<1x8x32xf32> to vector<1x8x32xbf16>
    %47 = vector.shape_cast %39 : vector<8x32xf32> to vector<1x8x32xf32>
    %48 = arith.truncf %47 : vector<1x8x32xf32> to vector<1x8x32xbf16>
    "tpu.trace_start"() <{level = 10 : i32, message = "bnc,bnd->bcd"}> : () -> ()
    %cst_42 = arith.constant dense<0.000000e+00> : vector<1x32x32xf32>
    %49 = tpu.matmul %46, %48, %cst_42 {dimension_numbers = #tpu.dot_dimension_numbers<[1], [1], [2], [2], [0, 0, 0, 2, 1, 2], [0], [0]>} : vector<1x8x32xbf16>, vector<1x8x32xbf16>, vector<1x32x32xf32> -> vector<1x32x32xf32>
    "tpu.trace_stop"() : () -> ()
    %50 = vector.shape_cast %44 : vector<32x32xf32> to vector<1x32x32xf32>
    %51 = arith.addf %49, %50 : vector<1x32x32xf32>
    %cst_43 = arith.constant dense<0xFF800000> : vector<1x32xf32>
    %52 = vector.multi_reduction <maximumf>, %51, %cst_43 [1] : vector<1x32x32xf32> to vector<1x32xf32>
    %53 = vector.shape_cast %52 : vector<1x32xf32> to vector<1x1x32xf32>
    %54 = vector.broadcast %53 : vector<1x1x32xf32> to vector<1x32x32xf32>
    %55 = arith.subf %51, %54 : vector<1x32x32xf32>
    %56 = math.exp %55 : vector<1x32x32xf32>
    %cst_44 = arith.constant dense<0.000000e+00> : vector<1x32xf32>
    %57 = vector.multi_reduction <add>, %56, %cst_44 [1] : vector<1x32x32xf32> to vector<1x32xf32>
    %58 = vector.shape_cast %57 : vector<1x32xf32> to vector<1x1x32xf32>
    %59 = tpu.reciprocal %58 {approx = true} : vector<1x1x32xf32> -> vector<1x1x32xf32>
    %60 = vector.broadcast %59 : vector<1x1x32xf32> to vector<1x32x32xf32>
    %61 = arith.mulf %56, %60 : vector<1x32x32xf32>
    %62 = arith.truncf %61 : vector<1x32x32xf32> to vector<1x32x32xbf16>
    %63 = vector.shape_cast %41 : vector<8x32xf32> to vector<1x8x32xf32>
    %64 = arith.truncf %63 : vector<1x8x32xf32> to vector<1x8x32xbf16>
    %65 = vector.shape_cast %43 : vector<8x32xf32> to vector<1x8x32xf32>
    %66 = arith.truncf %65 : vector<1x8x32xf32> to vector<1x8x32xbf16>
    "tpu.trace_start"() <{level = 10 : i32, message = "bnc,bnd->bcd"}> : () -> ()
    %cst_45 = arith.constant dense<0.000000e+00> : vector<1x32x32xf32>
    %67 = tpu.matmul %64, %66, %cst_45 {dimension_numbers = #tpu.dot_dimension_numbers<[1], [1], [2], [2], [0, 0, 0, 2, 1, 2], [0], [0]>} : vector<1x8x32xbf16>, vector<1x8x32xbf16>, vector<1x32x32xf32> -> vector<1x32x32xf32>
    "tpu.trace_stop"() : () -> ()
    %68 = vector.shape_cast %44 : vector<32x32xf32> to vector<1x32x32xf32>
    %69 = arith.addf %67, %68 : vector<1x32x32xf32>
    %cst_46 = arith.constant dense<0xFF800000> : vector<1x32xf32>
    %70 = vector.multi_reduction <maximumf>, %69, %cst_46 [1] : vector<1x32x32xf32> to vector<1x32xf32>
    %71 = vector.shape_cast %70 : vector<1x32xf32> to vector<1x1x32xf32>
    %72 = vector.broadcast %71 : vector<1x1x32xf32> to vector<1x32x32xf32>
    %73 = arith.subf %69, %72 : vector<1x32x32xf32>
    %74 = math.exp %73 : vector<1x32x32xf32>
    %cst_47 = arith.constant dense<0.000000e+00> : vector<1x32xf32>
    %75 = vector.multi_reduction <add>, %74, %cst_47 [1] : vector<1x32x32xf32> to vector<1x32xf32>
    %76 = vector.shape_cast %75 : vector<1x32xf32> to vector<1x1x32xf32>
    %77 = tpu.reciprocal %76 {approx = true} : vector<1x1x32xf32> -> vector<1x1x32xf32>
    %78 = vector.broadcast %77 : vector<1x1x32xf32> to vector<1x32x32xf32>
    %79 = arith.mulf %74, %78 : vector<1x32x32xf32>
    %80 = arith.truncf %79 : vector<1x32x32xf32> to vector<1x32x32xbf16>
    %81 = vector.shape_cast %34 : vector<8x32xbf16> to vector<1x8x32xbf16>
    "tpu.trace_start"() <{level = 10 : i32, message = "bnc,bcd->bnd"}> : () -> ()
    %cst_48 = arith.constant dense<0.000000e+00> : vector<1x8x32xf32>
    %82 = tpu.matmul %81, %80, %cst_48 {dimension_numbers = #tpu.dot_dimension_numbers<[2], [1], [1], [2], [0, 0, 0, 1, 1, 2], [0], [0]>} : vector<1x8x32xbf16>, vector<1x32x32xbf16>, vector<1x8x32xf32> -> vector<1x8x32xf32>
    "tpu.trace_stop"() : () -> ()
    %83 = vector.shape_cast %82 : vector<1x8x32xf32> to vector<8x32xf32>
    %84 = vector.shape_cast %35 : vector<8x32xbf16> to vector<1x8x32xbf16>
    "tpu.trace_start"() <{level = 10 : i32, message = "bnc,bcd->bnd"}> : () -> ()
    %cst_49 = arith.constant dense<0.000000e+00> : vector<1x8x32xf32>
    %85 = tpu.matmul %84, %62, %cst_49 {dimension_numbers = #tpu.dot_dimension_numbers<[2], [1], [1], [2], [0, 0, 0, 1, 1, 2], [0], [0]>} : vector<1x8x32xbf16>, vector<1x32x32xbf16>, vector<1x8x32xf32> -> vector<1x8x32xf32>
    "tpu.trace_stop"() : () -> ()
    %86 = vector.shape_cast %85 : vector<1x8x32xf32> to vector<8x32xf32>
    %87 = arith.truncf %19 : vector<8x32xf32> to vector<8x32xbf16>
    %c0_50 = arith.constant 0 : index
    %c0_51 = arith.constant 0 : index
    %88 = vector.load %arg15[%c0_50, %c0_51] : memref<32x32xbf16, #tpu.memory_space<vmem>>, vector<32x32xbf16>
    %cst_52 = arith.constant dense<0.000000e+00> : vector<8x32xf32>
    %89 = tpu.matmul %87, %88, %cst_52 {dimension_numbers = #tpu.dot_dimension_numbers<[1], [0], [0], [1], [0, 0, 1, 1], [], []>} : vector<8x32xbf16>, vector<32x32xbf16>, vector<8x32xf32> -> vector<8x32xf32>
    %90 = arith.truncf %83 : vector<8x32xf32> to vector<8x32xbf16>
    %c0_53 = arith.constant 0 : index
    %c0_54 = arith.constant 0 : index
    %91 = vector.load %arg16[%c0_53, %c0_54] : memref<32x32xbf16, #tpu.memory_space<vmem>>, vector<32x32xbf16>
    %cst_55 = arith.constant dense<0.000000e+00> : vector<8x32xf32>
    %92 = tpu.matmul %90, %91, %cst_55 {dimension_numbers = #tpu.dot_dimension_numbers<[1], [0], [0], [1], [0, 0, 1, 1], [], []>} : vector<8x32xbf16>, vector<32x32xbf16>, vector<8x32xf32> -> vector<8x32xf32>
    %93 = arith.addf %89, %92 : vector<8x32xf32>
    %c0_56 = arith.constant 0 : index
    %c0_57 = arith.constant 0 : index
    %94 = vector.load %arg17[%c0_56, %c0_57] : memref<1x32xf32, #tpu.memory_space<vmem>>, vector<1x32xf32>
    %95 = vector.broadcast %94 : vector<1x32xf32> to vector<8x32xf32>
    %96 = arith.addf %93, %95 : vector<8x32xf32>
    %97 = arith.truncf %33 : vector<8x32xf32> to vector<8x32xbf16>
    %c0_58 = arith.constant 0 : index
    %c0_59 = arith.constant 0 : index
    %98 = vector.load %arg18[%c0_58, %c0_59] : memref<32x32xbf16, #tpu.memory_space<vmem>>, vector<32x32xbf16>
    %cst_60 = arith.constant dense<0.000000e+00> : vector<8x32xf32>
    %99 = tpu.matmul %97, %98, %cst_60 {dimension_numbers = #tpu.dot_dimension_numbers<[1], [0], [0], [1], [0, 0, 1, 1], [], []>} : vector<8x32xbf16>, vector<32x32xbf16>, vector<8x32xf32> -> vector<8x32xf32>
    %100 = arith.truncf %86 : vector<8x32xf32> to vector<8x32xbf16>
    %c0_61 = arith.constant 0 : index
    %c0_62 = arith.constant 0 : index
    %101 = vector.load %arg19[%c0_61, %c0_62] : memref<32x32xbf16, #tpu.memory_space<vmem>>, vector<32x32xbf16>
    %cst_63 = arith.constant dense<0.000000e+00> : vector<8x32xf32>
    %102 = tpu.matmul %100, %101, %cst_63 {dimension_numbers = #tpu.dot_dimension_numbers<[1], [0], [0], [1], [0, 0, 1, 1], [], []>} : vector<8x32xbf16>, vector<32x32xbf16>, vector<8x32xf32> -> vector<8x32xf32>
    %103 = arith.addf %99, %102 : vector<8x32xf32>
    %c0_64 = arith.constant 0 : index
    %c0_65 = arith.constant 0 : index
    %104 = vector.load %arg20[%c0_64, %c0_65] : memref<1x32xf32, #tpu.memory_space<vmem>>, vector<1x32xf32>
    %105 = vector.broadcast %104 : vector<1x32xf32> to vector<8x32xf32>
    %106 = arith.addf %103, %105 : vector<8x32xf32>
    %c0_66 = arith.constant 0 : index
    %c0_67 = arith.constant 0 : index
    %c0_68 = arith.constant 0 : index
    %107 = vector.load %arg1[%c0_66, %c0_67, %c0_68] : memref<1x8x32xf32, #tpu.memory_space<vmem>>, vector<1x8x32xf32>
    %108 = vector.shape_cast %107 : vector<1x8x32xf32> to vector<8x32xf32>
    %109 = arith.addf %108, %96 : vector<8x32xf32>
    %c0_69 = arith.constant 0 : index
    %c0_70 = arith.constant 0 : index
    %c0_71 = arith.constant 0 : index
    %110 = vector.load %arg2[%c0_69, %c0_70, %c0_71] : memref<1x8x32xf32, #tpu.memory_space<vmem>>, vector<1x8x32xf32>
    %111 = vector.shape_cast %110 : vector<1x8x32xf32> to vector<8x32xf32>
    %112 = arith.addf %111, %106 : vector<8x32xf32>
    %c0_72 = arith.constant 0 : index
    %c0_73 = arith.constant 0 : index
    %113 = vector.load %arg22[%c0_72, %c0_73] : memref<1x32xf32, #tpu.memory_space<vmem>>, vector<1x32xf32>
    %c0_74 = arith.constant 0 : index
    %c0_75 = arith.constant 0 : index
    %114 = vector.load %arg23[%c0_74, %c0_75] : memref<1x32xf32, #tpu.memory_space<vmem>>, vector<1x32xf32>
    %cst_76 = arith.constant dense<0.000000e+00> : vector<8xf32>
    %115 = vector.multi_reduction <add>, %109, %cst_76 [1] : vector<8x32xf32> to vector<8xf32>
    %116 = vector.shape_cast %115 : vector<8xf32> to vector<8x1xf32>
    %cst_77 = arith.constant 3.200000e+01 : f32
    %117 = vector.broadcast %cst_77 : f32 to vector<8x1xf32>
    %118 = arith.divf %116, %117 : vector<8x1xf32>
    %119 = arith.mulf %109, %109 : vector<8x32xf32>
    %cst_78 = arith.constant dense<0.000000e+00> : vector<8xf32>
    %120 = vector.multi_reduction <add>, %119, %cst_78 [1] : vector<8x32xf32> to vector<8xf32>
    %121 = vector.shape_cast %120 : vector<8xf32> to vector<8x1xf32>
    %cst_79 = arith.constant 3.200000e+01 : f32
    %122 = vector.broadcast %cst_79 : f32 to vector<8x1xf32>
    %123 = arith.divf %121, %122 : vector<8x1xf32>
    %124 = arith.mulf %118, %118 : vector<8x1xf32>
    %125 = arith.subf %123, %124 : vector<8x1xf32>
    %cst_80 = arith.constant 0.000000e+00 : f32
    %126 = vector.broadcast %cst_80 : f32 to vector<8x1xf32>
    %127 = arith.maximumf %125, %126 : vector<8x1xf32>
    %128 = vector.broadcast %118 : vector<8x1xf32> to vector<8x32xf32>
    %129 = arith.subf %109, %128 : vector<8x32xf32>
    %cst_81 = arith.constant 9.99999974E-6 : f32
    %130 = vector.broadcast %cst_81 : f32 to vector<8x1xf32>
    %131 = arith.addf %127, %130 : vector<8x1xf32>
    %132 = math.rsqrt %131 : vector<8x1xf32>
    %133 = vector.broadcast %132 : vector<8x1xf32> to vector<8x32xf32>
    %134 = arith.mulf %129, %133 : vector<8x32xf32>
    %135 = vector.broadcast %113 : vector<1x32xf32> to vector<8x32xf32>
    %136 = arith.mulf %134, %135 : vector<8x32xf32>
    %137 = vector.broadcast %114 : vector<1x32xf32> to vector<8x32xf32>
    %138 = arith.addf %136, %137 : vector<8x32xf32>
    %139 = vector.shape_cast %138 : vector<8x32xf32> to vector<1x8x32xf32>
    %c0_82 = arith.constant 0 : index
    %c0_83 = arith.constant 0 : index
    %c0_84 = arith.constant 0 : index
    %140 = vector.load %arg26[%c0_82, %c0_83, %c0_84] : memref<1x8x32xf32, #tpu.memory_space<vmem>>, vector<1x8x32xf32>
    tpu.vector_store %arg26[%c0_82, %c0_83, %c0_84], %139 {strides = array<i32>} : memref<1x8x32xf32, #tpu.memory_space<vmem>>, vector<1x8x32xf32>,
    %c0_85 = arith.constant 0 : index
    %c0_86 = arith.constant 0 : index
    %141 = vector.load %arg24[%c0_85, %c0_86] : memref<1x32xf32, #tpu.memory_space<vmem>>, vector<1x32xf32>
    %c0_87 = arith.constant 0 : index
    %c0_88 = arith.constant 0 : index
    %142 = vector.load %arg25[%c0_87, %c0_88] : memref<1x32xf32, #tpu.memory_space<vmem>>, vector<1x32xf32>
    %cst_89 = arith.constant dense<0.000000e+00> : vector<8xf32>
    %143 = vector.multi_reduction <add>, %112, %cst_89 [1] : vector<8x32xf32> to vector<8xf32>
    %144 = vector.shape_cast %143 : vector<8xf32> to vector<8x1xf32>
    %cst_90 = arith.constant 3.200000e+01 : f32
    %145 = vector.broadcast %cst_90 : f32 to vector<8x1xf32>
    %146 = arith.divf %144, %145 : vector<8x1xf32>
    %147 = arith.mulf %112, %112 : vector<8x32xf32>
    %cst_91 = arith.constant dense<0.000000e+00> : vector<8xf32>
    %148 = vector.multi_reduction <add>, %147, %cst_91 [1] : vector<8x32xf32> to vector<8xf32>
    %149 = vector.shape_cast %148 : vector<8xf32> to vector<8x1xf32>
    %cst_92 = arith.constant 3.200000e+01 : f32
    %150 = vector.broadcast %cst_92 : f32 to vector<8x1xf32>
    %151 = arith.divf %149, %150 : vector<8x1xf32>
    %152 = arith.mulf %146, %146 : vector<8x1xf32>
    %153 = arith.subf %151, %152 : vector<8x1xf32>
    %cst_93 = arith.constant 0.000000e+00 : f32
    %154 = vector.broadcast %cst_93 : f32 to vector<8x1xf32>
    %155 = arith.maximumf %153, %154 : vector<8x1xf32>
    %156 = vector.broadcast %146 : vector<8x1xf32> to vector<8x32xf32>
    %157 = arith.subf %112, %156 : vector<8x32xf32>
    %cst_94 = arith.constant 9.99999974E-6 : f32
    %158 = vector.broadcast %cst_94 : f32 to vector<8x1xf32>
    %159 = arith.addf %155, %158 : vector<8x1xf32>
    %160 = math.rsqrt %159 : vector<8x1xf32>
    %161 = vector.broadcast %160 : vector<8x1xf32> to vector<8x32xf32>
    %162 = arith.mulf %157, %161 : vector<8x32xf32>
    %163 = vector.broadcast %141 : vector<1x32xf32> to vector<8x32xf32>
    %164 = arith.mulf %162, %163 : vector<8x32xf32>
    %165 = vector.broadcast %142 : vector<1x32xf32> to vector<8x32xf32>
    %166 = arith.addf %164, %165 : vector<8x32xf32>
    %167 = vector.shape_cast %166 : vector<8x32xf32> to vector<1x8x32xf32>
    %c0_95 = arith.constant 0 : index
    %c0_96 = arith.constant 0 : index
    %c0_97 = arith.constant 0 : index
    %168 = vector.load %arg27[%c0_95, %c0_96, %c0_97] : memref<1x8x32xf32, #tpu.memory_space<vmem>>, vector<1x8x32xf32>
    tpu.vector_store %arg27[%c0_95, %c0_96, %c0_97], %167 {strides = array<i32>} : memref<1x8x32xf32, #tpu.memory_space<vmem>>, vector<1x8x32xf32>,
    return
  }
  func.func @transform_0(%arg0: i32) -> (i32, i32, i32) {
    %c0_i32 = arith.constant 0 : i32
    %c0_i32_0 = arith.constant 0 : i32
    %c0_i32_1 = arith.constant 0 : i32
    return %arg0, %c0_i32, %c0_i32_0 : i32, i32, i32
  }
  func.func @transform_1(%arg0: i32) -> (i32, i32, i32) {
    %c0_i32 = arith.constant 0 : i32
    %c0_i32_0 = arith.constant 0 : i32
    %c0_i32_1 = arith.constant 0 : i32
    return %arg0, %c0_i32, %c0_i32_0 : i32, i32, i32
  }
  func.func @transform_2(%arg0: i32) -> (i32, i32) {
    %c0_i32 = arith.constant 0 : i32
    %c0_i32_0 = arith.constant 0 : i32
    %c0_i32_1 = arith.constant 0 : i32
    return %c0_i32, %c0_i32_0 : i32, i32
  }
  func.func @transform_3(%arg0: i32) -> (i32, i32) {
    %c0_i32 = arith.constant 0 : i32
    %c0_i32_0 = arith.constant 0 : i32
    %c0_i32_1 = arith.constant 0 : i32
    return %c0_i32, %c0_i32_0 : i32, i32
  }
  func.func @transform_4(%arg0: i32) -> (i32, i32) {
    %c0_i32 = arith.constant 0 : i32
    %c0_i32_0 = arith.constant 0 : i32
    %c0_i32_1 = arith.constant 0 : i32
    return %c0_i32, %c0_i32_0 : i32, i32
  }
  func.func @transform_5(%arg0: i32) -> (i32, i32) {
    %c0_i32 = arith.constant 0 : i32
    %c0_i32_0 = arith.constant 0 : i32
    %c0_i32_1 = arith.constant 0 : i32
    return %c0_i32, %c0_i32_0 : i32, i32
  }
  func.func @transform_6(%arg0: i32) -> (i32, i32) {
    %c0_i32 = arith.constant 0 : i32
    %c0_i32_0 = arith.constant 0 : i32
    %c0_i32_1 = arith.constant 0 : i32
    return %c0_i32, %c0_i32_0 : i32, i32
  }
  func.func @transform_7(%arg0: i32) -> (i32, i32) {
    %c0_i32 = arith.constant 0 : i32
    %c0_i32_0 = arith.constant 0 : i32
    %c0_i32_1 = arith.constant 0 : i32
    return %c0_i32, %c0_i32_0 : i32, i32
  }
  func.func @transform_8(%arg0: i32) -> (i32, i32) {
    %c0_i32 = arith.constant 0 : i32
    %c0_i32_0 = arith.constant 0 : i32
    %c0_i32_1 = arith.constant 0 : i32
    return %c0_i32, %c0_i32_0 : i32, i32
  }
  func.func @transform_9(%arg0: i32) -> (i32, i32) {
    %c0_i32 = arith.constant 0 : i32
    %c0_i32_0 = arith.constant 0 : i32
    %c0_i32_1 = arith.constant 0 : i32
    return %c0_i32, %c0_i32_0 : i32, i32
  }
  func.func @transform_10(%arg0: i32) -> (i32, i32) {
    %c0_i32 = arith.constant 0 : i32
    %c0_i32_0 = arith.constant 0 : i32
    %c0_i32_1 = arith.constant 0 : i32
    return %c0_i32, %c0_i32_0 : i32, i32
  }
  func.func @transform_11(%arg0: i32) -> (i32, i32) {
    %c0_i32 = arith.constant 0 : i32
    %c0_i32_0 = arith.constant 0 : i32
    %c0_i32_1 = arith.constant 0 : i32
    return %c0_i32, %c0_i32_0 : i32, i32
  }
  func.func @transform_12(%arg0: i32) -> (i32, i32) {
    %c0_i32 = arith.constant 0 : i32
    %c0_i32_0 = arith.constant 0 : i32
    %c0_i32_1 = arith.constant 0 : i32
    return %c0_i32, %c0_i32_0 : i32, i32
  }
  func.func @transform_13(%arg0: i32) -> (i32, i32) {
    %c0_i32 = arith.constant 0 : i32
    %c0_i32_0 = arith.constant 0 : i32
    %c0_i32_1 = arith.constant 0 : i32
    return %c0_i32, %c0_i32_0 : i32, i32
  }
  func.func @transform_14(%arg0: i32) -> (i32, i32) {
    %c0_i32 = arith.constant 0 : i32
    %c0_i32_0 = arith.constant 0 : i32
    %c0_i32_1 = arith.constant 0 : i32
    return %c0_i32, %c0_i32_0 : i32, i32
  }
  func.func @transform_15(%arg0: i32) -> (i32, i32) {
    %c0_i32 = arith.constant 0 : i32
    %c0_i32_0 = arith.constant 0 : i32
    %c0_i32_1 = arith.constant 0 : i32
    return %c0_i32, %c0_i32_0 : i32, i32
  }
  func.func @transform_16(%arg0: i32) -> (i32, i32) {
    %c0_i32 = arith.constant 0 : i32
    %c0_i32_0 = arith.constant 0 : i32
    %c0_i32_1 = arith.constant 0 : i32
    return %c0_i32, %c0_i32_0 : i32, i32
  }
  func.func @transform_17(%arg0: i32) -> (i32, i32) {
    %c0_i32 = arith.constant 0 : i32
    %c0_i32_0 = arith.constant 0 : i32
    %c0_i32_1 = arith.constant 0 : i32
    return %c0_i32, %c0_i32_0 : i32, i32
  }
  func.func @transform_18(%arg0: i32) -> (i32, i32) {
    %c0_i32 = arith.constant 0 : i32
    %c0_i32_0 = arith.constant 0 : i32
    %c0_i32_1 = arith.constant 0 : i32
    return %c0_i32, %c0_i32_0 : i32, i32
  }
  func.func @transform_19(%arg0: i32) -> (i32, i32) {
    %c0_i32 = arith.constant 0 : i32
    %c0_i32_0 = arith.constant 0 : i32
    %c0_i32_1 = arith.constant 0 : i32
    return %c0_i32, %c0_i32_0 : i32, i32
  }
  func.func @transform_20(%arg0: i32) -> (i32, i32) {
    %c0_i32 = arith.constant 0 : i32
    %c0_i32_0 = arith.constant 0 : i32
    %c0_i32_1 = arith.constant 0 : i32
    return %c0_i32, %c0_i32_0 : i32, i32
  }
  func.func @transform_21(%arg0: i32) -> (i32, i32) {
    %c0_i32 = arith.constant 0 : i32
    %c0_i32_0 = arith.constant 0 : i32
    %c0_i32_1 = arith.constant 0 : i32
    return %c0_i32, %c0_i32_0 : i32, i32
  }
  func.func @transform_22(%arg0: i32) -> (i32, i32) {
    %c0_i32 = arith.constant 0 : i32
    %c0_i32_0 = arith.constant 0 : i32
    %c0_i32_1 = arith.constant 0 : i32
    return %c0_i32, %c0_i32_0 : i32, i32
  }
  func.func @transform_23(%arg0: i32) -> (i32, i32) {
    %c0_i32 = arith.constant 0 : i32
    %c0_i32_0 = arith.constant 0 : i32
    %c0_i32_1 = arith.constant 0 : i32
    return %c0_i32, %c0_i32_0 : i32, i32
  }
  func.func @transform_24(%arg0: i32) -> (i32, i32) {
    %c0_i32 = arith.constant 0 : i32
    %c0_i32_0 = arith.constant 0 : i32
    %c0_i32_1 = arith.constant 0 : i32
    return %c0_i32, %c0_i32_0 : i32, i32
  }
  func.func @transform_25(%arg0: i32) -> (i32, i32, i32) {
    %c0_i32 = arith.constant 0 : i32
    %c0_i32_0 = arith.constant 0 : i32
    %c0_i32_1 = arith.constant 0 : i32
    return %arg0, %c0_i32, %c0_i32_0 : i32, i32, i32
  }
  func.func @transform_26(%arg0: i32) -> (i32, i32, i32) {
    %c0_i32 = arith.constant 0 : i32
    %c0_i32_0 = arith.constant 0 : i32
    %c0_i32_1 = arith.constant 0 : i32
    return %arg0, %c0_i32, %c0_i32_0 : i32, i32, i32
  }
}

</mosaic_0001>

<llo_original>
// kernel: tpu_custom_call.1
$region0: #{tpu_custom_call.1}
  #allocation0 [shape = 'u32[]', space=smem, size = 0x4, offset = 0x4, fixed_abs, tag = 'smem constant byte address 0x4 - core index']
  #allocation1 [shape = 'u32[72,128]{1,0:T(1,128)}', space=vmem, size = 0x9000, scoped, tag = 'internal scratch']
  %s0 = inlined_call_operand.hbm [shape: f32[2,8,32], index: 0, kind: input, shape index: {}]
  %s1 = inlined_call_operand.hbm [shape: f32[2,8,32], index: 1, kind: input, shape index: {}]
  %s2 = inlined_call_operand.hbm [shape: bf16[32,32], index: 2, kind: input, shape index: {}]
  %s3 = inlined_call_operand.hbm [shape: bf16[32,32], index: 3, kind: input, shape index: {}]
  %s4 = inlined_call_operand.hbm [shape: f32[1,32], index: 4, kind: input, shape index: {}]
  %s5 = inlined_call_operand.hbm [shape: f32[1,32], index: 5, kind: input, shape index: {}]
  %s6 = inlined_call_operand.hbm [shape: bf16[32,32], index: 6, kind: input, shape index: {}]
  %s7 = inlined_call_operand.hbm [shape: bf16[32,32], index: 7, kind: input, shape index: {}]
  %s8 = inlined_call_operand.hbm [shape: f32[1,32], index: 8, kind: input, shape index: {}]
  %s9 = inlined_call_operand.hbm [shape: f32[1,32], index: 9, kind: input, shape index: {}]
  %s10 = inlined_call_operand.hbm [shape: bf16[32,32], index: 10, kind: input, shape index: {}]
  %s11 = inlined_call_operand.hbm [shape: bf16[32,32], index: 11, kind: input, shape index: {}]
  %s12 = inlined_call_operand.hbm [shape: bf16[32,32], index: 12, kind: input, shape index: {}]
  %s13 = inlined_call_operand.hbm [shape: bf16[32,32], index: 13, kind: input, shape index: {}]
  %s14 = inlined_call_operand.hbm [shape: bf16[32,32], index: 14, kind: input, shape index: {}]
  %s15 = inlined_call_operand.hbm [shape: bf16[32,32], index: 15, kind: input, shape index: {}]
  %s16 = inlined_call_operand.hbm [shape: f32[1,32], index: 16, kind: input, shape index: {}]
  %s17 = inlined_call_operand.vmem [shape: bf16[32,32], index: 17, kind: input, shape index: {}]
  %s18 = inlined_call_operand.hbm [shape: bf16[32,32], index: 18, kind: input, shape index: {}]
  %s19 = inlined_call_operand.vmem [shape: f32[1,32], index: 19, kind: input, shape index: {}]
  %s20 = inlined_call_operand.hbm [shape: f32[32,32], index: 20, kind: input, shape index: {}]
  %s21 = inlined_call_operand.vmem [shape: f32[1,32], index: 21, kind: input, shape index: {}]
  %s22 = inlined_call_operand.vmem [shape: f32[1,32], index: 22, kind: input, shape index: {}]
  %s23 = inlined_call_operand.vmem [shape: f32[1,32], index: 23, kind: input, shape index: {}]
  %s24 = inlined_call_operand.vmem [shape: f32[1,32], index: 24, kind: input, shape index: {}]
  %s25 = inlined_call_operand.hbm [shape: f32[2,8,32], index: 25, kind: output, shape index: {0}]
  %s26 = inlined_call_operand.hbm [shape: f32[2,8,32], index: 26, kind: output, shape index: {1}]
  %27 = xla_tuple %s25, %s26
  %s28 = sld [smem:[#allocation0]]
  $region217: #{tpu_custom_call.1} parent=0
    _
  %s30 = ssub.s32 1, %s28
  %s31 = scalar_select 0, %s30, %s28
  $region1: #{tpu_custom_call.1} parent=0
    #allocation2 [shape = 'u8[8192]{0}', space=vmem, size = 0x2000, scoped, tag = 'input window, operand 0']
    #allocation3 [shape = 's32[2]{0}', space=sflag, size = 0x8, scoped, tag = 'scoped memory for tpu_custom_call.1']
    #allocation4 [shape = 's32[2]{0}', space=sflag, size = 0x8, scoped, tag = 'scoped memory for tpu_custom_call.1']
    #allocation5 [shape = 'u8[8192]{0}', space=vmem, size = 0x2000, scoped, tag = 'input window, operand 1']
    #allocation6 [shape = 's32[2]{0}', space=sflag, size = 0x8, scoped, tag = 'scoped memory for tpu_custom_call.1']
    #allocation7 [shape = 'u8[8192]{0}', space=vmem, size = 0x2000, scoped, tag = 'input window, operand 2, single buffered']
    #allocation8 [shape = 'u8[8192]{0}', space=vmem, size = 0x2000, scoped, tag = 'input window, operand 3, single buffered']
    #allocation9 [shape = 's32[1]{0}', space=sflag, size = 0x4, scoped, tag = 'scoped memory for tpu_custom_call.1']
    #allocation10 [shape = 'u8[512]{0}', space=vmem, size = 0x400, scoped, tag = 'input window, operand 4, single buffered']
    #allocation11 [shape = 'u8[512]{0}', space=vmem, size = 0x400, scoped, tag = 'input window, operand 5, single buffered']
    #allocation12 [shape = 's32[1]{0}', space=sflag, size = 0x4, scoped, tag = 'scoped memory for tpu_custom_call.1']
    #allocation13 [shape = 'u8[8192]{0}', space=vmem, size = 0x2000, scoped, tag = 'input window, operand 6, single buffered']
    #allocation14 [shape = 'u8[8192]{0}', space=vmem, size = 0x2000, scoped, tag = 'input window, operand 7, single buffered']
    #allocation15 [shape = 's32[1]{0}', space=sflag, size = 0x4, scoped, tag = 'scoped memory for tpu_custom_call.1']
    #allocation16 [shape = 'u8[512]{0}', space=vmem, size = 0x400, scoped, tag = 'input window, operand 8, single buffered']
    #allocation17 [shape = 'u8[512]{0}', space=vmem, size = 0x400, scoped, tag = 'input window, operand 9, single buffered']
    #allocation18 [shape = 's32[1]{0}', space=sflag, size = 0x4, scoped, tag = 'scoped memory for tpu_custom_call.1']
    #allocation19 [shape = 'u8[8192]{0}', space=vmem, size = 0x2000, scoped, tag = 'input window, operand 10, single buffered']
    #allocation20 [shape = 'u8[8192]{0}', space=vmem, size = 0x2000, scoped, tag = 'input window, operand 11, single buffered']
    #allocation21 [shape = 's32[1]{0}', space=sflag, size = 0x4, scoped, tag = 'scoped memory for tpu_custom_call.1']
    #allocation22 [shape = 'u8[8192]{0}', space=vmem, size = 0x2000, scoped, tag = 'input window, operand 12, single buffered']
    #allocation23 [shape = 'u8[8192]{0}', space=vmem, size = 0x2000, scoped, tag = 'input window, operand 13, single buffered']
    #allocation24 [shape = 's32[1]{0}', space=sflag, size = 0x4, scoped, tag = 'scoped memory for tpu_custom_call.1']
    #allocation25 [shape = 'u8[8192]{0}', space=vmem, size = 0x2000, scoped, tag = 'input window, operand 14, single buffered']
    #allocation26 [shape = 'u8[8192]{0}', space=vmem, size = 0x2000, scoped, tag = 'input window, operand 15, single buffered']
    #allocation27 [shape = 's32[1]{0}', space=sflag, size = 0x4, scoped, tag = 'scoped memory for tpu_custom_call.1']
    #allocation28 [shape = 'u8[512]{0}', space=vmem, size = 0x400, scoped, tag = 'input window, operand 16, single buffered']
    #allocation29 [shape = 'u8[8192]{0}', space=vmem, size = 0x2000, scoped, tag = 'input window, operand 18, single buffered']
    #allocation30 [shape = 's32[1]{0}', space=sflag, size = 0x4, scoped, tag = 'scoped memory for tpu_custom_call.1']
    #allocation31 [shape = 'u8[16384]{0}', space=vmem, size = 0x4000, scoped, tag = 'input window, operand 20, single buffered']
    #allocation32 [shape = 'u8[8192]{0}', space=vmem, size = 0x2000, scoped, tag = 'output window, operand 0']
    #allocation33 [shape = 'u8[8192]{0}', space=vmem, size = 0x2000, scoped, tag = 'output window, operand 1']
    #allocation34 [shape = 's32[2]{0}', space=sflag, size = 0x8, scoped, tag = 'scoped memory for tpu_custom_call.1']
    %32 = vsyncpa [#allocation3], 0
    %s33 = scalar_lea.sflag [#allocation3], 1
    %34 = vsyncpa %s33, 0
    %35 = vsyncpa [#allocation6], 0
    %s36 = scalar_lea.sflag [#allocation6], 1
    %37 = vsyncpa %s36, 0
    %38 = vsyncpa [#allocation9], 0
    %39 = vsyncpa [#allocation12], 0
    %40 = vsyncpa [#allocation15], 0
    %41 = vsyncpa [#allocation18], 0
    %42 = vsyncpa [#allocation21], 0
    %43 = vsyncpa [#allocation24], 0
    %44 = vsyncpa [#allocation27], 0
    %45 = vsyncpa [#allocation30], 0
    %46 = vsyncpa [#allocation4], 0
    %s47 = scalar_lea.sflag [#allocation4], 1
    %48 = vsyncpa %s47, 0
    %49 = vsyncpa [#allocation34], 0
    %s50 = scalar_lea.sflag [#allocation34], 1
    %51 = vsyncpa %s50, 0
    loop: start=0, step=1, limit=4
    $region2: #{tpu_custom_call.1} parent=1 // loop_pre_header
      _
    $region3: #{tpu_custom_call.1} parent=1 // loop_header
      %s53 = sphi 0, %s57
      %p54 = scmp.ge.s32.totalorder %s53, 4
      %s63 = sphi 0, %s65
      %s66 = sphi 0, %s63
      %s67 = sphi 0, %s66
      %s83 = sphi 0, %s67
      %s89 = sphi 0, %s91
      %s92 = sphi 0, %s89
      %s93 = sphi 0, %s92
      %s109 = sphi 0, %s93
      %s113 = sphi 0, %s113
      %s115 = sphi 0, %s113
      %s116 = sphi 0, %s115
      %s130 = sphi 0, %s116
      %s134 = sphi 0, %s134
      %s136 = sphi 0, %s134
      %s137 = sphi 0, %s136
      %s151 = sphi 0, %s137
      %s155 = sphi 0, %s155
      %s157 = sphi 0, %s155
      %s158 = sphi 0, %s157
      %s172 = sphi 0, %s158
      %s176 = sphi 0, %s176
      %s178 = sphi 0, %s176
      %s179 = sphi 0, %s178
      %s193 = sphi 0, %s179
      %s197 = sphi 0, %s197
      %s199 = sphi 0, %s197
      %s200 = sphi 0, %s199
      %s214 = sphi 0, %s200
      %s218 = sphi 0, %s218
      %s220 = sphi 0, %s218
      %s221 = sphi 0, %s220
      %s235 = sphi 0, %s221
      %s239 = sphi 0, %s239
      %s241 = sphi 0, %s239
      %s242 = sphi 0, %s241
      %s256 = sphi 0, %s242
      %s260 = sphi 0, %s260
      %s262 = sphi 0, %s260
      %s263 = sphi 0, %s262
      %s277 = sphi 0, %s263
      %s281 = sphi 0, %s281
      %s283 = sphi 0, %s281
      %s284 = sphi 0, %s283
      %s298 = sphi 0, %s284
      %s302 = sphi 0, %s302
      %s304 = sphi 0, %s302
      %s305 = sphi 0, %s304
      %s319 = sphi 0, %s305
      %s323 = sphi 0, %s323
      %s325 = sphi 0, %s323
      %s326 = sphi 0, %s325
      %s340 = sphi 0, %s326
      %s344 = sphi 0, %s344
      %s346 = sphi 0, %s344
      %s347 = sphi 0, %s346
      %s361 = sphi 0, %s347
      %s365 = sphi 0, %s365
      %s367 = sphi 0, %s365
      %s368 = sphi 0, %s367
      %s382 = sphi 0, %s368
      %s386 = sphi 0, %s386
      %s388 = sphi 0, %s386
      %s389 = sphi 0, %s388
      %s403 = sphi 0, %s389
      %s407 = sphi 0, %s407
      %s409 = sphi 0, %s407
      %s410 = sphi 0, %s409
      %s424 = sphi 0, %s410
      %s428 = sphi 0, %s428
      %s430 = sphi 0, %s428
      %s431 = sphi 0, %s430
      %s445 = sphi 0, %s431
      %s449 = sphi 0, %s449
      %s451 = sphi 0, %s449
      %s452 = sphi 0, %s451
      %s466 = sphi 0, %s452
      %s470 = sphi 0, %s470
      %s472 = sphi 0, %s470
      %s473 = sphi 0, %s472
      %s487 = sphi 0, %s473
      %s491 = sphi 0, %s491
      %s493 = sphi 0, %s491
      %s494 = sphi 0, %s493
      %s508 = sphi 0, %s494
      %s512 = sphi 0, %s512
      %s514 = sphi 0, %s512
      %s515 = sphi 0, %s514
      %s529 = sphi 0, %s515
      %s533 = sphi 0, %s533
      %s535 = sphi 0, %s533
      %s536 = sphi 0, %s535
      %s550 = sphi 0, %s536
      %s554 = sphi 0, %s554
      %s556 = sphi 0, %s554
      %s557 = sphi 0, %s556
      %s571 = sphi 0, %s557
      %s575 = sphi 0, %s575
      %s577 = sphi 0, %s575
      %s578 = sphi 0, %s577
      %s592 = sphi 0, %s578
      %s598 = sphi 0, %s600
      %s601 = sphi 0, %s598
      %s602 = sphi 0, %s601
      %s618 = sphi 0, %s602
      %s624 = sphi 0, %s626
      %s627 = sphi 0, %s624
      %s628 = sphi 0, %s627
      %s644 = sphi 0, %s628
    $region4: #{tpu_custom_call.1} parent=1 // loop_header_branch
      %56 = sbr.rel (%p54) target = $region8
    $region5: #{tpu_custom_call.1} parent=1 // loop_body
      %s58 = ssub.s32 %s53, 1
      %s59 = ssub.s32 %s53, 2
      %s60 = sadd.s32 %s53, 1
      %s61 = ssub.s32 %s53, %s60
      %p62 = scmp.eq.s32.totalorder %s61, 0
      %s64 = sadd.s32 %s63, 1
      %s65 = scalar_select %p62, %s63, %s64
      %p68 = pneg %p62
      %p69 = scmp.eq.s32.totalorder %s53, 1
      %p70 = por %p68, %p69
      %p71 = scmp.ne.s32.totalorder %s63, %s66
      %p72 = scmp.eq.s32.totalorder %s53, 0
      %p73 = por %p71, %p72
      %p74 = scmp.ne.s32.totalorder %s63, %s66
      %p75 = scmp.eq.s32.totalorder %s58, 1
      %p76 = por %p74, %p75
      %p77 = scmp.ne.s32.totalorder %s66, %s67
      %p78 = scmp.eq.s32.totalorder %s58, 0
      %p79 = por %p77, %p78
      %p80 = scmp.ne.s32.totalorder %s66, %s67
      %p81 = scmp.eq.s32.totalorder %s59, 1
      %p82 = por %p80, %p81
      %p84 = scmp.ne.s32.totalorder %s67, %s83
      %p85 = scmp.eq.s32.totalorder %s59, 0
      %p86 = por %p84, %p85
      %s87 = ssub.s32 %s53, %s60
      %p88 = scmp.eq.s32.totalorder %s87, 0
      %s90 = sadd.s32 %s89, 1
      %s91 = scalar_select %p88, %s89, %s90
      %p94 = pneg %p88
      %p95 = scmp.eq.s32.totalorder %s53, 1
      %p96 = por %p94, %p95
      %p97 = scmp.ne.s32.totalorder %s89, %s92
      %p98 = scmp.eq.s32.totalorder %s53, 0
      %p99 = por %p97, %p98
      %p100 = scmp.ne.s32.totalorder %s89, %s92
      %p101 = scmp.eq.s32.totalorder %s58, 1
      %p102 = por %p100, %p101
      %p103 = scmp.ne.s32.totalorder %s92, %s93
      %p104 = scmp.eq.s32.totalorder %s58, 0
      %p105 = por %p103, %p104
      %p106 = scmp.ne.s32.totalorder %s92, %s93
      %p107 = scmp.eq.s32.totalorder %s59, 1
      %p108 = por %p106, %p107
      %p110 = scmp.ne.s32.totalorder %s93, %s109
      %p111 = scmp.eq.s32.totalorder %s59, 0
      %p112 = por %p110, %p111
      %s114 = sadd.s32 %s113, 1
      %p117 = scmp.eq.s32.totalorder %s53, 1
      %p118 = scmp.ne.s32.totalorder %s113, %s115
      %p119 = scmp.eq.s32.totalorder %s53, 0
      %p120 = por %p118, %p119
      %p121 = scmp.ne.s32.totalorder %s113, %s115
      %p122 = scmp.eq.s32.totalorder %s58, 1
      %p123 = por %p121, %p122
      %p124 = scmp.ne.s32.totalorder %s115, %s116
      %p125 = scmp.eq.s32.totalorder %s58, 0
      %p126 = por %p124, %p125
      %p127 = scmp.ne.s32.totalorder %s115, %s116
      %p128 = scmp.eq.s32.totalorder %s59, 1
      %p129 = por %p127, %p128
      %p131 = scmp.ne.s32.totalorder %s116, %s130
      %p132 = scmp.eq.s32.totalorder %s59, 0
      %p133 = por %p131, %p132
      %s135 = sadd.s32 %s134, 1
      %p138 = scmp.eq.s32.totalorder %s53, 1
      %p139 = scmp.ne.s32.totalorder %s134, %s136
      %p140 = scmp.eq.s32.totalorder %s53, 0
      %p141 = por %p139, %p140
      %p142 = scmp.ne.s32.totalorder %s134, %s136
      %p143 = scmp.eq.s32.totalorder %s58, 1
      %p144 = por %p142, %p143
      %p145 = scmp.ne.s32.totalorder %s136, %s137
      %p146 = scmp.eq.s32.totalorder %s58, 0
      %p147 = por %p145, %p146
      %p148 = scmp.ne.s32.totalorder %s136, %s137
      %p149 = scmp.eq.s32.totalorder %s59, 1
      %p150 = por %p148, %p149
      %p152 = scmp.ne.s32.totalorder %s137, %s151
      %p153 = scmp.eq.s32.totalorder %s59, 0
      %p154 = por %p152, %p153
      %s156 = sadd.s32 %s155, 1
      %p159 = scmp.eq.s32.totalorder %s53, 1
      %p160 = scmp.ne.s32.totalorder %s155, %s157
      %p161 = scmp.eq.s32.totalorder %s53, 0
      %p162 = por %p160, %p161
      %p163 = scmp.ne.s32.totalorder %s155, %s157
      %p164 = scmp.eq.s32.totalorder %s58, 1
      %p165 = por %p163, %p164
      %p166 = scmp.ne.s32.totalorder %s157, %s158
      %p167 = scmp.eq.s32.totalorder %s58, 0
      %p168 = por %p166, %p167
      %p169 = scmp.ne.s32.totalorder %s157, %s158
      %p170 = scmp.eq.s32.totalorder %s59, 1
      %p171 = por %p169, %p170
      %p173 = scmp.ne.s32.totalorder %s158, %s172
      %p174 = scmp.eq.s32.totalorder %s59, 0
      %p175 = por %p173, %p174
      %s177 = sadd.s32 %s176, 1
      %p180 = scmp.eq.s32.totalorder %s53, 1
      %p181 = scmp.ne.s32.totalorder %s176, %s178
      %p182 = scmp.eq.s32.totalorder %s53, 0
      %p183 = por %p181, %p182
      %p184 = scmp.ne.s32.totalorder %s176, %s178
      %p185 = scmp.eq.s32.totalorder %s58, 1
      %p186 = por %p184, %p185
      %p187 = scmp.ne.s32.totalorder %s178, %s179
      %p188 = scmp.eq.s32.totalorder %s58, 0
      %p189 = por %p187, %p188
      %p190 = scmp.ne.s32.totalorder %s178, %s179
      %p191 = scmp.eq.s32.totalorder %s59, 1
      %p192 = por %p190, %p191
      %p194 = scmp.ne.s32.totalorder %s179, %s193
      %p195 = scmp.eq.s32.totalorder %s59, 0
      %p196 = por %p194, %p195
      %s198 = sadd.s32 %s197, 1
      %p201 = scmp.eq.s32.totalorder %s53, 1
      %p202 = scmp.ne.s32.totalorder %s197, %s199
      %p203 = scmp.eq.s32.totalorder %s53, 0
      %p204 = por %p202, %p203
      %p205 = scmp.ne.s32.totalorder %s197, %s199
      %p206 = scmp.eq.s32.totalorder %s58, 1
      %p207 = por %p205, %p206
      %p208 = scmp.ne.s32.totalorder %s199, %s200
      %p209 = scmp.eq.s32.totalorder %s58, 0
      %p210 = por %p208, %p209
      %p211 = scmp.ne.s32.totalorder %s199, %s200
      %p212 = scmp.eq.s32.totalorder %s59, 1
      %p213 = por %p211, %p212
      %p215 = scmp.ne.s32.totalorder %s200, %s214
      %p216 = scmp.eq.s32.totalorder %s59, 0
      %p217 = por %p215, %p216
      %s219 = sadd.s32 %s218, 1
      %p222 = scmp.eq.s32.totalorder %s53, 1
      %p223 = scmp.ne.s32.totalorder %s218, %s220
      %p224 = scmp.eq.s32.totalorder %s53, 0
      %p225 = por %p223, %p224
      %p226 = scmp.ne.s32.totalorder %s218, %s220
      %p227 = scmp.eq.s32.totalorder %s58, 1
      %p228 = por %p226, %p227
      %p229 = scmp.ne.s32.totalorder %s220, %s221
      %p230 = scmp.eq.s32.totalorder %s58, 0
      %p231 = por %p229, %p230
      %p232 = scmp.ne.s32.totalorder %s220, %s221
      %p233 = scmp.eq.s32.totalorder %s59, 1
      %p234 = por %p232, %p233
      %p236 = scmp.ne.s32.totalorder %s221, %s235
      %p237 = scmp.eq.s32.totalorder %s59, 0
      %p238 = por %p236, %p237
      %s240 = sadd.s32 %s239, 1
      %p243 = scmp.eq.s32.totalorder %s53, 1
      %p244 = scmp.ne.s32.totalorder %s239, %s241
      %p245 = scmp.eq.s32.totalorder %s53, 0
      %p246 = por %p244, %p245
      %p247 = scmp.ne.s32.totalorder %s239, %s241
      %p248 = scmp.eq.s32.totalorder %s58, 1
      %p249 = por %p247, %p248
      %p250 = scmp.ne.s32.totalorder %s241, %s242
      %p251 = scmp.eq.s32.totalorder %s58, 0
      %p252 = por %p250, %p251
      %p253 = scmp.ne.s32.totalorder %s241, %s242
      %p254 = scmp.eq.s32.totalorder %s59, 1
      %p255 = por %p253, %p254
      %p257 = scmp.ne.s32.totalorder %s242, %s256
      %p258 = scmp.eq.s32.totalorder %s59, 0
      %p259 = por %p257, %p258
      %s261 = sadd.s32 %s260, 1
      %p264 = scmp.eq.s32.totalorder %s53, 1
      %p265 = scmp.ne.s32.totalorder %s260, %s262
      %p266 = scmp.eq.s32.totalorder %s53, 0
      %p267 = por %p265, %p266
      %p268 = scmp.ne.s32.totalorder %s260, %s262
      %p269 = scmp.eq.s32.totalorder %s58, 1
      %p270 = por %p268, %p269
      %p271 = scmp.ne.s32.totalorder %s262, %s263
      %p272 = scmp.eq.s32.totalorder %s58, 0
      %p273 = por %p271, %p272
      %p274 = scmp.ne.s32.totalorder %s262, %s263
      %p275 = scmp.eq.s32.totalorder %s59, 1
      %p276 = por %p274, %p275
      %p278 = scmp.ne.s32.totalorder %s263, %s277
      %p279 = scmp.eq.s32.totalorder %s59, 0
      %p280 = por %p278, %p279
      %s282 = sadd.s32 %s281, 1
      %p285 = scmp.eq.s32.totalorder %s53, 1
      %p286 = scmp.ne.s32.totalorder %s281, %s283
      %p287 = scmp.eq.s32.totalorder %s53, 0
      %p288 = por %p286, %p287
      %p289 = scmp.ne.s32.totalorder %s281, %s283
      %p290 = scmp.eq.s32.totalorder %s58, 1
      %p291 = por %p289, %p290
      %p292 = scmp.ne.s32.totalorder %s283, %s284
      %p293 = scmp.eq.s32.totalorder %s58, 0
      %p294 = por %p292, %p293
      %p295 = scmp.ne.s32.totalorder %s283, %s284
      %p296 = scmp.eq.s32.totalorder %s59, 1
      %p297 = por %p295, %p296
      %p299 = scmp.ne.s32.totalorder %s284, %s298
      %p300 = scmp.eq.s32.totalorder %s59, 0
      %p301 = por %p299, %p300
      %s303 = sadd.s32 %s302, 1
      %p306 = scmp.eq.s32.totalorder %s53, 1
      %p307 = scmp.ne.s32.totalorder %s302, %s304
      %p308 = scmp.eq.s32.totalorder %s53, 0
      %p309 = por %p307, %p308
      %p310 = scmp.ne.s32.totalorder %s302, %s304
      %p311 = scmp.eq.s32.totalorder %s58, 1
      %p312 = por %p310, %p311
      %p313 = scmp.ne.s32.totalorder %s304, %s305
      %p314 = scmp.eq.s32.totalorder %s58, 0
      %p315 = por %p313, %p314
      %p316 = scmp.ne.s32.totalorder %s304, %s305
      %p317 = scmp.eq.s32.totalorder %s59, 1
      %p318 = por %p316, %p317
      %p320 = scmp.ne.s32.totalorder %s305, %s319
      %p321 = scmp.eq.s32.totalorder %s59, 0
      %p322 = por %p320, %p321
      %s324 = sadd.s32 %s323, 1
      %p327 = scmp.eq.s32.totalorder %s53, 1
      %p328 = scmp.ne.s32.totalorder %s323, %s325
      %p329 = scmp.eq.s32.totalorder %s53, 0
      %p330 = por %p328, %p329
      %p331 = scmp.ne.s32.totalorder %s323, %s325
      %p332 = scmp.eq.s32.totalorder %s58, 1
      %p333 = por %p331, %p332
      %p334 = scmp.ne.s32.totalorder %s325, %s326
      %p335 = scmp.eq.s32.totalorder %s58, 0
      %p336 = por %p334, %p335
      %p337 = scmp.ne.s32.totalorder %s325, %s326
      %p338 = scmp.eq.s32.totalorder %s59, 1
      %p339 = por %p337, %p338
      %p341 = scmp.ne.s32.totalorder %s326, %s340
      %p342 = scmp.eq.s32.totalorder %s59, 0
      %p343 = por %p341, %p342
      %s345 = sadd.s32 %s344, 1
      %p348 = scmp.eq.s32.totalorder %s53, 1
      %p349 = scmp.ne.s32.totalorder %s344, %s346
      %p350 = scmp.eq.s32.totalorder %s53, 0
      %p351 = por %p349, %p350
      %p352 = scmp.ne.s32.totalorder %s344, %s346
      %p353 = scmp.eq.s32.totalorder %s58, 1
      %p354 = por %p352, %p353
      %p355 = scmp.ne.s32.totalorder %s346, %s347
      %p356 = scmp.eq.s32.totalorder %s58, 0
      %p357 = por %p355, %p356
      %p358 = scmp.ne.s32.totalorder %s346, %s347
      %p359 = scmp.eq.s32.totalorder %s59, 1
      %p360 = por %p358, %p359
      %p362 = scmp.ne.s32.totalorder %s347, %s361
      %p363 = scmp.eq.s32.totalorder %s59, 0
      %p364 = por %p362, %p363
      %s366 = sadd.s32 %s365, 1
      %p369 = scmp.eq.s32.totalorder %s53, 1
      %p370 = scmp.ne.s32.totalorder %s365, %s367
      %p371 = scmp.eq.s32.totalorder %s53, 0
      %p372 = por %p370, %p371
      %p373 = scmp.ne.s32.totalorder %s365, %s367
      %p374 = scmp.eq.s32.totalorder %s58, 1
      %p375 = por %p373, %p374
      %p376 = scmp.ne.s32.totalorder %s367, %s368
      %p377 = scmp.eq.s32.totalorder %s58, 0
      %p378 = por %p376, %p377
      %p379 = scmp.ne.s32.totalorder %s367, %s368
      %p380 = scmp.eq.s32.totalorder %s59, 1
      %p381 = por %p379, %p380
      %p383 = scmp.ne.s32.totalorder %s368, %s382
      %p384 = scmp.eq.s32.totalorder %s59, 0
      %p385 = por %p383, %p384
      %s387 = sadd.s32 %s386, 1
      %p390 = scmp.eq.s32.totalorder %s53, 1
      %p391 = scmp.ne.s32.totalorder %s386, %s388
      %p392 = scmp.eq.s32.totalorder %s53, 0
      %p393 = por %p391, %p392
      %p394 = scmp.ne.s32.totalorder %s386, %s388
      %p395 = scmp.eq.s32.totalorder %s58, 1
      %p396 = por %p394, %p395
      %p397 = scmp.ne.s32.totalorder %s388, %s389
      %p398 = scmp.eq.s32.totalorder %s58, 0
      %p399 = por %p397, %p398
      %p400 = scmp.ne.s32.totalorder %s388, %s389
      %p401 = scmp.eq.s32.totalorder %s59, 1
      %p402 = por %p400, %p401
      %p404 = scmp.ne.s32.totalorder %s389, %s403
      %p405 = scmp.eq.s32.totalorder %s59, 0
      %p406 = por %p404, %p405
      %s408 = sadd.s32 %s407, 1
      %p411 = scmp.eq.s32.totalorder %s53, 1
      %p412 = scmp.ne.s32.totalorder %s407, %s409
      %p413 = scmp.eq.s32.totalorder %s53, 0
      %p414 = por %p412, %p413
      %p415 = scmp.ne.s32.totalorder %s407, %s409
      %p416 = scmp.eq.s32.totalorder %s58, 1
      %p417 = por %p415, %p416
      %p418 = scmp.ne.s32.totalorder %s409, %s410
      %p419 = scmp.eq.s32.totalorder %s58, 0
      %p420 = por %p418, %p419
      %p421 = scmp.ne.s32.totalorder %s409, %s410
      %p422 = scmp.eq.s32.totalorder %s59, 1
      %p423 = por %p421, %p422
      %p425 = scmp.ne.s32.totalorder %s410, %s424
      %p426 = scmp.eq.s32.totalorder %s59, 0
      %p427 = por %p425, %p426
      %s429 = sadd.s32 %s428, 1
      %p432 = scmp.eq.s32.totalorder %s53, 1
      %p433 = scmp.ne.s32.totalorder %s428, %s430
      %p434 = scmp.eq.s32.totalorder %s53, 0
      %p435 = por %p433, %p434
      %p436 = scmp.ne.s32.totalorder %s428, %s430
      %p437 = scmp.eq.s32.totalorder %s58, 1
      %p438 = por %p436, %p437
      %p439 = scmp.ne.s32.totalorder %s430, %s431
      %p440 = scmp.eq.s32.totalorder %s58, 0
      %p441 = por %p439, %p440
      %p442 = scmp.ne.s32.totalorder %s430, %s431
      %p443 = scmp.eq.s32.totalorder %s59, 1
      %p444 = por %p442, %p443
      %p446 = scmp.ne.s32.totalorder %s431, %s445
      %p447 = scmp.eq.s32.totalorder %s59, 0
      %p448 = por %p446, %p447
      %s450 = sadd.s32 %s449, 1
      %p453 = scmp.eq.s32.totalorder %s53, 1
      %p454 = scmp.ne.s32.totalorder %s449, %s451
      %p455 = scmp.eq.s32.totalorder %s53, 0
      %p456 = por %p454, %p455
      %p457 = scmp.ne.s32.totalorder %s449, %s451
      %p458 = scmp.eq.s32.totalorder %s58, 1
      %p459 = por %p457, %p458
      %p460 = scmp.ne.s32.totalorder %s451, %s452
      %p461 = scmp.eq.s32.totalorder %s58, 0
      %p462 = por %p460, %p461
      %p463 = scmp.ne.s32.totalorder %s451, %s452
      %p464 = scmp.eq.s32.totalorder %s59, 1
      %p465 = por %p463, %p464
      %p467 = scmp.ne.s32.totalorder %s452, %s466
      %p468 = scmp.eq.s32.totalorder %s59, 0
      %p469 = por %p467, %p468
      %s471 = sadd.s32 %s470, 1
      %p474 = scmp.eq.s32.totalorder %s53, 1
      %p475 = scmp.ne.s32.totalorder %s470, %s472
      %p476 = scmp.eq.s32.totalorder %s53, 0
      %p477 = por %p475, %p476
      %p478 = scmp.ne.s32.totalorder %s470, %s472
      %p479 = scmp.eq.s32.totalorder %s58, 1
      %p480 = por %p478, %p479
      %p481 = scmp.ne.s32.totalorder %s472, %s473
      %p482 = scmp.eq.s32.totalorder %s58, 0
      %p483 = por %p481, %p482
      %p484 = scmp.ne.s32.totalorder %s472, %s473
      %p485 = scmp.eq.s32.totalorder %s59, 1
      %p486 = por %p484, %p485
      %p488 = scmp.ne.s32.totalorder %s473, %s487
      %p489 = scmp.eq.s32.totalorder %s59, 0
      %p490 = por %p488, %p489
      %s492 = sadd.s32 %s491, 1
      %p495 = scmp.eq.s32.totalorder %s53, 1
      %p496 = scmp.ne.s32.totalorder %s491, %s493
      %p497 = scmp.eq.s32.totalorder %s53, 0
      %p498 = por %p496, %p497
      %p499 = scmp.ne.s32.totalorder %s491, %s493
      %p500 = scmp.eq.s32.totalorder %s58, 1
      %p501 = por %p499, %p500
      %p502 = scmp.ne.s32.totalorder %s493, %s494
      %p503 = scmp.eq.s32.totalorder %s58, 0
      %p504 = por %p502, %p503
      %p505 = scmp.ne.s32.totalorder %s493, %s494
      %p506 = scmp.eq.s32.totalorder %s59, 1
      %p507 = por %p505, %p506
      %p509 = scmp.ne.s32.totalorder %s494, %s508
      %p510 = scmp.eq.s32.totalorder %s59, 0
      %p511 = por %p509, %p510
      %s513 = sadd.s32 %s512, 1
      %p516 = scmp.eq.s32.totalorder %s53, 1
      %p517 = scmp.ne.s32.totalorder %s512, %s514
      %p518 = scmp.eq.s32.totalorder %s53, 0
      %p519 = por %p517, %p518
      %p520 = scmp.ne.s32.totalorder %s512, %s514
      %p521 = scmp.eq.s32.totalorder %s58, 1
      %p522 = por %p520, %p521
      %p523 = scmp.ne.s32.totalorder %s514, %s515
      %p524 = scmp.eq.s32.totalorder %s58, 0
      %p525 = por %p523, %p524
      %p526 = scmp.ne.s32.totalorder %s514, %s515
      %p527 = scmp.eq.s32.totalorder %s59, 1
      %p528 = por %p526, %p527
      %p530 = scmp.ne.s32.totalorder %s515, %s529
      %p531 = scmp.eq.s32.totalorder %s59, 0
      %p532 = por %p530, %p531
      %s534 = sadd.s32 %s533, 1
      %p537 = scmp.eq.s32.totalorder %s53, 1
      %p538 = scmp.ne.s32.totalorder %s533, %s535
      %p539 = scmp.eq.s32.totalorder %s53, 0
      %p540 = por %p538, %p539
      %p541 = scmp.ne.s32.totalorder %s533, %s535
      %p542 = scmp.eq.s32.totalorder %s58, 1
      %p543 = por %p541, %p542
      %p544 = scmp.ne.s32.totalorder %s535, %s536
      %p545 = scmp.eq.s32.totalorder %s58, 0
      %p546 = por %p544, %p545
      %p547 = scmp.ne.s32.totalorder %s535, %s536
      %p548 = scmp.eq.s32.totalorder %s59, 1
      %p549 = por %p547, %p548
      %p551 = scmp.ne.s32.totalorder %s536, %s550
      %p552 = scmp.eq.s32.totalorder %s59, 0
      %p553 = por %p551, %p552
      %s555 = sadd.s32 %s554, 1
      %p558 = scmp.eq.s32.totalorder %s53, 1
      %p559 = scmp.ne.s32.totalorder %s554, %s556
      %p560 = scmp.eq.s32.totalorder %s53, 0
      %p561 = por %p559, %p560
      %p562 = scmp.ne.s32.totalorder %s554, %s556
      %p563 = scmp.eq.s32.totalorder %s58, 1
      %p564 = por %p562, %p563
      %p565 = scmp.ne.s32.totalorder %s556, %s557
      %p566 = scmp.eq.s32.totalorder %s58, 0
      %p567 = por %p565, %p566
      %p568 = scmp.ne.s32.totalorder %s556, %s557
      %p569 = scmp.eq.s32.totalorder %s59, 1
      %p570 = por %p568, %p569
      %p572 = scmp.ne.s32.totalorder %s557, %s571
      %p573 = scmp.eq.s32.totalorder %s59, 0
      %p574 = por %p572, %p573
      %s576 = sadd.s32 %s575, 1
      %p579 = scmp.eq.s32.totalorder %s53, 1
      %p580 = scmp.ne.s32.totalorder %s575, %s577
      %p581 = scmp.eq.s32.totalorder %s53, 0
      %p582 = por %p580, %p581
      %p583 = scmp.ne.s32.totalorder %s575, %s577
      %p584 = scmp.eq.s32.totalorder %s58, 1
      %p585 = por %p583, %p584
      %p586 = scmp.ne.s32.totalorder %s577, %s578
      %p587 = scmp.eq.s32.totalorder %s58, 0
      %p588 = por %p586, %p587
      %p589 = scmp.ne.s32.totalorder %s577, %s578
      %p590 = scmp.eq.s32.totalorder %s59, 1
      %p591 = por %p589, %p590
      %p593 = scmp.ne.s32.totalorder %s578, %s592
      %p594 = scmp.eq.s32.totalorder %s59, 0
      %p595 = por %p593, %p594
      %s596 = ssub.s32 %s53, %s60
      %p597 = scmp.eq.s32.totalorder %s596, 0
      %s599 = sadd.s32 %s598, 1
      %s600 = scalar_select %p597, %s598, %s599
      %p603 = pneg %p597
      %p604 = scmp.eq.s32.totalorder %s53, 1
      %p605 = por %p603, %p604
      %p606 = scmp.ne.s32.totalorder %s598, %s601
      %p607 = scmp.eq.s32.totalorder %s53, 0
      %p608 = por %p606, %p607
      %p609 = scmp.ne.s32.totalorder %s598, %s601
      %p610 = scmp.eq.s32.totalorder %s58, 1
      %p611 = por %p609, %p610
      %p612 = scmp.ne.s32.totalorder %s601, %s602
      %p613 = scmp.eq.s32.totalorder %s58, 0
      %p614 = por %p612, %p613
      %p615 = scmp.ne.s32.totalorder %s601, %s602
      %p616 = scmp.eq.s32.totalorder %s59, 1
      %p617 = por %p615, %p616
      %p619 = scmp.ne.s32.totalorder %s602, %s618
      %p620 = scmp.eq.s32.totalorder %s59, 0
      %p621 = por %p619, %p620
      %s622 = ssub.s32 %s53, %s60
      %p623 = scmp.eq.s32.totalorder %s622, 0
      %s625 = sadd.s32 %s624, 1
      %s626 = scalar_select %p623, %s624, %s625
      %p629 = pneg %p623
      %p630 = scmp.eq.s32.totalorder %s53, 1
      %p631 = por %p629, %p630
      %p632 = scmp.ne.s32.totalorder %s624, %s627
      %p633 = scmp.eq.s32.totalorder %s53, 0
      %p634 = por %p632, %p633
      %p635 = scmp.ne.s32.totalorder %s624, %s627
      %p636 = scmp.eq.s32.totalorder %s58, 1
      %p637 = por %p635, %p636
      %p638 = scmp.ne.s32.totalorder %s627, %s628
      %p639 = scmp.eq.s32.totalorder %s58, 0
      %p640 = por %p638, %p639
      %p641 = scmp.ne.s32.totalorder %s627, %s628
      %p642 = scmp.eq.s32.totalorder %s59, 1
      %p643 = por %p641, %p642
      %p645 = scmp.ne.s32.totalorder %s628, %s644
      %p646 = scmp.eq.s32.totalorder %s59, 0
      %p647 = por %p645, %p646
      %p648 = scmp.le.s32.totalorder 1, %s53
      %p649 = scmp.lt.s32.totalorder %s53, 3
      %p650 = pnand %p648, %p649
      %p651 = pneg %p650
      // Predicated region
      $region9: #{tpu_custom_call.1} parent=5 // pred_check
        _
      $region10: #{tpu_custom_call.1} parent=5 // pred_check_branch
        %653 = sbr.rel (%p650) target = $region12
      $region11: #{tpu_custom_call.1} parent=5 // pred_region
        %s654 = ssub.s32 %s53, 1
        // Predicated region
        $region13: #{tpu_custom_call.1} parent=11 // pred_check
          %p655 = pneg %p126
        $region14: #{tpu_custom_call.1} parent=11 // pred_check_branch
          %657 = sbr.rel (%p655) target = $region16
        $region15: #{tpu_custom_call.1} parent=11 // pred_region
          %659 = vsyncadd [#allocation6], 0
          %s660 = sshll.u32 %s2, 4
          %s661 = int_to_ptr.hbm [resolvable:$true] %s660
          %s662 = sshll.u32 [#allocation7], 4
          %s663 = int_to_ptr.vmem [resolvable:$true] %s662
          %668 = dma.hbm_to_vmem [thread:$0]  %s661, 256, %s663, [#allocation6], 64, 64, 4
        $region16: #{tpu_custom_call.1} parent=11 // pred_fallthru
          _
        // Predicated region
        $region17: #{tpu_custom_call.1} parent=11 // pred_check
          %p669 = pneg %p147
        $region18: #{tpu_custom_call.1} parent=11 // pred_check_branch
          %671 = sbr.rel (%p669) target = $region20
        $region19: #{tpu_custom_call.1} parent=11 // pred_region
          %673 = vsyncadd [#allocation9], 0
          %s674 = sshll.u32 %s3, 4
          %s675 = int_to_ptr.hbm [resolvable:$true] %s674
          %s676 = sshll.u32 [#allocation8], 4
          %s677 = int_to_ptr.vmem [resolvable:$true] %s676
          %682 = dma.hbm_to_vmem [thread:$0]  %s675, 256, %s677, [#allocation9], 64, 64, 4
        $region20: #{tpu_custom_call.1} parent=11 // pred_fallthru
          _
        // Predicated region
        $region21: #{tpu_custom_call.1} parent=11 // pred_check
          %p683 = pneg %p168
        $region22: #{tpu_custom_call.1} parent=11 // pred_check_branch
          %685 = sbr.rel (%p683) target = $region24
        $region23: #{tpu_custom_call.1} parent=11 // pred_region
          %687 = vsyncadd [#allocation9], 0
          %s689 = sshll.u32 %s4, 4
          %s690 = int_to_ptr.hbm [resolvable:$true] %s689
          %s691 = sshll.u32 [#allocation10], 4
          %s692 = int_to_ptr.vmem [resolvable:$true] %s691
          %694 = dma.hbm_to_vmem [thread:$0]  %s690, 16, %s692, [#allocation9]
        $region24: #{tpu_custom_call.1} parent=11 // pred_fallthru
          _
        // Predicated region
        $region25: #{tpu_custom_call.1} parent=11 // pred_check
          %p695 = pneg %p189
        $region26: #{tpu_custom_call.1} parent=11 // pred_check_branch
          %697 = sbr.rel (%p695) target = $region28
        $region27: #{tpu_custom_call.1} parent=11 // pred_region
          %699 = vsyncadd [#allocation12], 0
          %s701 = sshll.u32 %s5, 4
          %s702 = int_to_ptr.hbm [resolvable:$true] %s701
          %s703 = sshll.u32 [#allocation11], 4
          %s704 = int_to_ptr.vmem [resolvable:$true] %s703
          %706 = dma.hbm_to_vmem [thread:$0]  %s702, 16, %s704, [#allocation12]
        $region28: #{tpu_custom_call.1} parent=11 // pred_fallthru
          _
        // Predicated region
        $region29: #{tpu_custom_call.1} parent=11 // pred_check
          %p707 = pneg %p210
        $region30: #{tpu_custom_call.1} parent=11 // pred_check_branch
          %709 = sbr.rel (%p707) target = $region32
        $region31: #{tpu_custom_call.1} parent=11 // pred_region
          %711 = vsyncadd [#allocation12], 0
          %s712 = sshll.u32 %s6, 4
          %s713 = int_to_ptr.hbm [resolvable:$true] %s712
          %s714 = sshll.u32 [#allocation13], 4
          %s715 = int_to_ptr.vmem [resolvable:$true] %s714
          %720 = dma.hbm_to_vmem [thread:$0]  %s713, 256, %s715, [#allocation12], 64, 64, 4
        $region32: #{tpu_custom_call.1} parent=11 // pred_fallthru
          _
        // Predicated region
        $region33: #{tpu_custom_call.1} parent=11 // pred_check
          %p721 = pneg %p231
        $region34: #{tpu_custom_call.1} parent=11 // pred_check_branch
          %723 = sbr.rel (%p721) target = $region36
        $region35: #{tpu_custom_call.1} parent=11 // pred_region
          %725 = vsyncadd [#allocation15], 0
          %s726 = sshll.u32 %s7, 4
          %s727 = int_to_ptr.hbm [resolvable:$true] %s726
          %s728 = sshll.u32 [#allocation14], 4
          %s729 = int_to_ptr.vmem [resolvable:$true] %s728
          %734 = dma.hbm_to_vmem [thread:$0]  %s727, 256, %s729, [#allocation15], 64, 64, 4
        $region36: #{tpu_custom_call.1} parent=11 // pred_fallthru
          _
        // Predicated region
        $region37: #{tpu_custom_call.1} parent=11 // pred_check
          %p735 = pneg %p252
        $region38: #{tpu_custom_call.1} parent=11 // pred_check_branch
          %737 = sbr.rel (%p735) target = $region40
        $region39: #{tpu_custom_call.1} parent=11 // pred_region
          %739 = vsyncadd [#allocation15], 0
          %s741 = sshll.u32 %s8, 4
          %s742 = int_to_ptr.hbm [resolvable:$true] %s741
          %s743 = sshll.u32 [#allocation16], 4
          %s744 = int_to_ptr.vmem [resolvable:$true] %s743
          %746 = dma.hbm_to_vmem [thread:$0]  %s742, 16, %s744, [#allocation15]
        $region40: #{tpu_custom_call.1} parent=11 // pred_fallthru
          _
        // Predicated region
        $region41: #{tpu_custom_call.1} parent=11 // pred_check
          %p747 = pneg %p273
        $region42: #{tpu_custom_call.1} parent=11 // pred_check_branch
          %749 = sbr.rel (%p747) target = $region44
        $region43: #{tpu_custom_call.1} parent=11 // pred_region
          %751 = vsyncadd [#allocation18], 0
          %s753 = sshll.u32 %s9, 4
          %s754 = int_to_ptr.hbm [resolvable:$true] %s753
          %s755 = sshll.u32 [#allocation17], 4
          %s756 = int_to_ptr.vmem [resolvable:$true] %s755
          %758 = dma.hbm_to_vmem [thread:$0]  %s754, 16, %s756, [#allocation18]
        $region44: #{tpu_custom_call.1} parent=11 // pred_fallthru
          _
        // Predicated region
        $region45: #{tpu_custom_call.1} parent=11 // pred_check
          %p759 = pneg %p294
        $region46: #{tpu_custom_call.1} parent=11 // pred_check_branch
          %761 = sbr.rel (%p759) target = $region48
        $region47: #{tpu_custom_call.1} parent=11 // pred_region
          %763 = vsyncadd [#allocation18], 0
          %s764 = sshll.u32 %s10, 4
          %s765 = int_to_ptr.hbm [resolvable:$true] %s764
          %s766 = sshll.u32 [#allocation19], 4
          %s767 = int_to_ptr.vmem [resolvable:$true] %s766
          %772 = dma.hbm_to_vmem [thread:$0]  %s765, 256, %s767, [#allocation18], 64, 64, 4
        $region48: #{tpu_custom_call.1} parent=11 // pred_fallthru
          _
        // Predicated region
        $region49: #{tpu_custom_call.1} parent=11 // pred_check
          %p773 = pneg %p315
        $region50: #{tpu_custom_call.1} parent=11 // pred_check_branch
          %775 = sbr.rel (%p773) target = $region52
        $region51: #{tpu_custom_call.1} parent=11 // pred_region
          %777 = vsyncadd [#allocation21], 0
          %s778 = sshll.u32 %s11, 4
          %s779 = int_to_ptr.hbm [resolvable:$true] %s778
          %s780 = sshll.u32 [#allocation20], 4
          %s781 = int_to_ptr.vmem [resolvable:$true] %s780
          %786 = dma.hbm_to_vmem [thread:$0]  %s779, 256, %s781, [#allocation21], 64, 64, 4
        $region52: #{tpu_custom_call.1} parent=11 // pred_fallthru
          _
        // Predicated region
        $region53: #{tpu_custom_call.1} parent=11 // pred_check
          %p787 = pneg %p336
        $region54: #{tpu_custom_call.1} parent=11 // pred_check_branch
          %789 = sbr.rel (%p787) target = $region56
        $region55: #{tpu_custom_call.1} parent=11 // pred_region
          %791 = vsyncadd [#allocation21], 0
          %s792 = sshll.u32 %s12, 4
          %s793 = int_to_ptr.hbm [resolvable:$true] %s792
          %s794 = sshll.u32 [#allocation22], 4
          %s795 = int_to_ptr.vmem [resolvable:$true] %s794
          %800 = dma.hbm_to_vmem [thread:$0]  %s793, 256, %s795, [#allocation21], 64, 64, 4
        $region56: #{tpu_custom_call.1} parent=11 // pred_fallthru
          _
        // Predicated region
        $region57: #{tpu_custom_call.1} parent=11 // pred_check
          %p801 = pneg %p357
        $region58: #{tpu_custom_call.1} parent=11 // pred_check_branch
          %803 = sbr.rel (%p801) target = $region60
        $region59: #{tpu_custom_call.1} parent=11 // pred_region
          %805 = vsyncadd [#allocation24], 0
          %s806 = sshll.u32 %s13, 4
          %s807 = int_to_ptr.hbm [resolvable:$true] %s806
          %s808 = sshll.u32 [#allocation23], 4
          %s809 = int_to_ptr.vmem [resolvable:$true] %s808
          %814 = dma.hbm_to_vmem [thread:$0]  %s807, 256, %s809, [#allocation24], 64, 64, 4
        $region60: #{tpu_custom_call.1} parent=11 // pred_fallthru
          _
        // Predicated region
        $region61: #{tpu_custom_call.1} parent=11 // pred_check
          %p815 = pneg %p378
        $region62: #{tpu_custom_call.1} parent=11 // pred_check_branch
          %817 = sbr.rel (%p815) target = $region64
        $region63: #{tpu_custom_call.1} parent=11 // pred_region
          %819 = vsyncadd [#allocation24], 0
          %s820 = sshll.u32 %s14, 4
          %s821 = int_to_ptr.hbm [resolvable:$true] %s820
          %s822 = sshll.u32 [#allocation25], 4
          %s823 = int_to_ptr.vmem [resolvable:$true] %s822
          %828 = dma.hbm_to_vmem [thread:$0]  %s821, 256, %s823, [#allocation24], 64, 64, 4
        $region64: #{tpu_custom_call.1} parent=11 // pred_fallthru
          _
        // Predicated region
        $region65: #{tpu_custom_call.1} parent=11 // pred_check
          %p829 = pneg %p399
        $region66: #{tpu_custom_call.1} parent=11 // pred_check_branch
          %831 = sbr.rel (%p829) target = $region68
        $region67: #{tpu_custom_call.1} parent=11 // pred_region
          %833 = vsyncadd [#allocation27], 0
          %s834 = sshll.u32 %s15, 4
          %s835 = int_to_ptr.hbm [resolvable:$true] %s834
          %s836 = sshll.u32 [#allocation26], 4
          %s837 = int_to_ptr.vmem [resolvable:$true] %s836
          %842 = dma.hbm_to_vmem [thread:$0]  %s835, 256, %s837, [#allocation27], 64, 64, 4
        $region68: #{tpu_custom_call.1} parent=11 // pred_fallthru
          _
        // Predicated region
        $region69: #{tpu_custom_call.1} parent=11 // pred_check
          %p843 = pneg %p420
        $region70: #{tpu_custom_call.1} parent=11 // pred_check_branch
          %845 = sbr.rel (%p843) target = $region72
        $region71: #{tpu_custom_call.1} parent=11 // pred_region
          %847 = vsyncadd [#allocation27], 0
          %s849 = sshll.u32 %s16, 4
          %s850 = int_to_ptr.hbm [resolvable:$true] %s849
          %s851 = sshll.u32 [#allocation28], 4
          %s852 = int_to_ptr.vmem [resolvable:$true] %s851
          %854 = dma.hbm_to_vmem [thread:$0]  %s850, 16, %s852, [#allocation27]
        $region72: #{tpu_custom_call.1} parent=11 // pred_fallthru
          _
        // Predicated region
        $region73: #{tpu_custom_call.1} parent=11 // pred_check
          %p855 = pneg %p441
        $region74: #{tpu_custom_call.1} parent=11 // pred_check_branch
          %857 = sbr.rel (%p855) target = $region76
        $region75: #{tpu_custom_call.1} parent=11 // pred_region
          _
        $region76: #{tpu_custom_call.1} parent=11 // pred_fallthru
          _
        // Predicated region
        $region77: #{tpu_custom_call.1} parent=11 // pred_check
          %p858 = pneg %p462
        $region78: #{tpu_custom_call.1} parent=11 // pred_check_branch
          %860 = sbr.rel (%p858) target = $region80
        $region79: #{tpu_custom_call.1} parent=11 // pred_region
          %862 = vsyncadd [#allocation30], 0
          %s863 = sshll.u32 %s18, 4
          %s864 = int_to_ptr.hbm [resolvable:$true] %s863
          %s865 = sshll.u32 [#allocation29], 4
          %s866 = int_to_ptr.vmem [resolvable:$true] %s865
          %871 = dma.hbm_to_vmem [thread:$0]  %s864, 256, %s866, [#allocation30], 64, 64, 4
        $region80: #{tpu_custom_call.1} parent=11 // pred_fallthru
          _
        // Predicated region
        $region81: #{tpu_custom_call.1} parent=11 // pred_check
          %p872 = pneg %p483
        $region82: #{tpu_custom_call.1} parent=11 // pred_check_branch
          %874 = sbr.rel (%p872) target = $region84
        $region83: #{tpu_custom_call.1} parent=11 // pred_region
          _
        $region84: #{tpu_custom_call.1} parent=11 // pred_fallthru
          _
        // Predicated region
        $region85: #{tpu_custom_call.1} parent=11 // pred_check
          %p875 = pneg %p504
        $region86: #{tpu_custom_call.1} parent=11 // pred_check_branch
          %877 = sbr.rel (%p875) target = $region88
        $region87: #{tpu_custom_call.1} parent=11 // pred_region
          %879 = vsyncadd [#allocation30], 0
          %s880 = sshll.u32 %s20, 4
          %s881 = int_to_ptr.hbm [resolvable:$true] %s880
          %s882 = sshll.u32 [#allocation31], 4
          %s883 = int_to_ptr.vmem [resolvable:$true] %s882
          %888 = dma.hbm_to_vmem [thread:$0]  %s881, 512, %s883, [#allocation30], 128, 128, 8
        $region88: #{tpu_custom_call.1} parent=11 // pred_fallthru
          _
        // Predicated region
        $region89: #{tpu_custom_call.1} parent=11 // pred_check
          %p889 = pneg %p525
        $region90: #{tpu_custom_call.1} parent=11 // pred_check_branch
          %891 = sbr.rel (%p889) target = $region92
        $region91: #{tpu_custom_call.1} parent=11 // pred_region
          _
        $region92: #{tpu_custom_call.1} parent=11 // pred_fallthru
          _
        // Predicated region
        $region93: #{tpu_custom_call.1} parent=11 // pred_check
          %p892 = pneg %p546
        $region94: #{tpu_custom_call.1} parent=11 // pred_check_branch
          %894 = sbr.rel (%p892) target = $region96
        $region95: #{tpu_custom_call.1} parent=11 // pred_region
          _
        $region96: #{tpu_custom_call.1} parent=11 // pred_fallthru
          _
        // Predicated region
        $region97: #{tpu_custom_call.1} parent=11 // pred_check
          %p895 = pneg %p567
        $region98: #{tpu_custom_call.1} parent=11 // pred_check_branch
          %897 = sbr.rel (%p895) target = $region100
        $region99: #{tpu_custom_call.1} parent=11 // pred_region
          _
        $region100: #{tpu_custom_call.1} parent=11 // pred_fallthru
          _
        // Predicated region
        $region101: #{tpu_custom_call.1} parent=11 // pred_check
          %p898 = pneg %p588
        $region102: #{tpu_custom_call.1} parent=11 // pred_check_branch
          %900 = sbr.rel (%p898) target = $region104
        $region103: #{tpu_custom_call.1} parent=11 // pred_region
          _
        $region104: #{tpu_custom_call.1} parent=11 // pred_fallthru
          _
      $region12: #{tpu_custom_call.1} parent=5 // pred_fallthru
        _
      %p901 = scmp.lt.s32.totalorder %s53, 2
      // Predicated region
      $region105: #{tpu_custom_call.1} parent=5 // pred_check
        %p902 = pneg %p901
      $region106: #{tpu_custom_call.1} parent=5 // pred_check_branch
        %904 = sbr.rel (%p902) target = $region108
      $region107: #{tpu_custom_call.1} parent=5 // pred_region
        // Predicated region
        $region109: #{tpu_custom_call.1} parent=107 // pred_check
          %p905 = pneg %p73
        $region110: #{tpu_custom_call.1} parent=107 // pred_check_branch
          %907 = sbr.rel (%p905) target = $region112
        $region111: #{tpu_custom_call.1} parent=107 // pred_region
          %s908 = sand.u32 %s63, 1
          %s909 = scalar_lea.sflag [#allocation3], %s908
          %s910 = sand.u32 %s63, 1
          %s911 = smul.addr %s910, 8
          %s912 = scalar_lea.vmem [#allocation2], %s911
          %914 = vsyncadd %s909, 0
          %s915 = smul.addr %s53, 8
          %s916 = scalar_lea.hbm %s0, %s915
          %s918 = sshll.u32 %s916, 4
          %s919 = int_to_ptr.hbm [resolvable:$true] %s918
          %s920 = sshll.u32 %s912, 4
          %s921 = int_to_ptr.vmem [resolvable:$true] %s920
          %923 = dma.hbm_to_vmem [thread:$0]  %s919, 128, %s921, %s909
        $region112: #{tpu_custom_call.1} parent=107 // pred_fallthru
          _
        // Predicated region
        $region113: #{tpu_custom_call.1} parent=107 // pred_check
          %p924 = pneg %p99
        $region114: #{tpu_custom_call.1} parent=107 // pred_check_branch
          %926 = sbr.rel (%p924) target = $region116
        $region115: #{tpu_custom_call.1} parent=107 // pred_region
          %s927 = sand.u32 %s53, 1
          %s928 = scalar_lea.sflag [#allocation6], %s927
          %s929 = sand.u32 %s89, 1
          %s930 = smul.addr %s929, 8
          %s931 = scalar_lea.vmem [#allocation5], %s930
          %933 = vsyncadd %s928, 0
          %s934 = smul.addr %s53, 8
          %s935 = scalar_lea.hbm %s1, %s934
          %s937 = sshll.u32 %s935, 4
          %s938 = int_to_ptr.hbm [resolvable:$true] %s937
          %s939 = sshll.u32 %s931, 4
          %s940 = int_to_ptr.vmem [resolvable:$true] %s939
          %942 = dma.hbm_to_vmem [thread:$0]  %s938, 128, %s940, %s928
        $region116: #{tpu_custom_call.1} parent=107 // pred_fallthru
          _
      $region108: #{tpu_custom_call.1} parent=5 // pred_fallthru
        _
      %p943 = scmp.le.s32.totalorder 1, %s53
      %p944 = scmp.lt.s32.totalorder %s53, 3
      %p945 = pnand %p943, %p944
      %p946 = pneg %p945
      // Predicated region
      $region117: #{tpu_custom_call.1} parent=5 // pred_check
        _
      $region118: #{tpu_custom_call.1} parent=5 // pred_check_branch
        %948 = sbr.rel (%p945) target = $region120
      $region119: #{tpu_custom_call.1} parent=5 // pred_region
        %s949 = ssub.s32 %s53, 1
        %s950 = sand.u32 %s66, 1
        %s951 = scalar_lea.sflag [#allocation3], %s950
        %s952 = sand.u32 %s66, 1
        %s953 = smul.addr %s952, 8
        %s954 = scalar_lea.vmem [#allocation2], %s953
        // Predicated region
        $region121: #{tpu_custom_call.1} parent=119 // pred_check
          %p955 = pneg %p79
        $region122: #{tpu_custom_call.1} parent=119 // pred_check_branch
          %957 = sbr.rel (%p955) target = $region124
        $region123: #{tpu_custom_call.1} parent=119 // pred_region
          %959 = dma.done %s951, 128
        $region124: #{tpu_custom_call.1} parent=119 // pred_fallthru
          _
        %s960 = sand.u32 %s58, 1
        %s961 = scalar_lea.sflag [#allocation6], %s960
        %s962 = sand.u32 %s92, 1
        %s963 = smul.addr %s962, 8
        %s964 = scalar_lea.vmem [#allocation5], %s963
        // Predicated region
        $region125: #{tpu_custom_call.1} parent=119 // pred_check
          %p965 = pneg %p105
        $region126: #{tpu_custom_call.1} parent=119 // pred_check_branch
          %967 = sbr.rel (%p965) target = $region128
        $region127: #{tpu_custom_call.1} parent=119 // pred_region
          %969 = dma.done %s961, 128
        $region128: #{tpu_custom_call.1} parent=119 // pred_fallthru
          _
        // Predicated region
        $region129: #{tpu_custom_call.1} parent=119 // pred_check
          %p970 = pneg %p126
        $region130: #{tpu_custom_call.1} parent=119 // pred_check_branch
          %972 = sbr.rel (%p970) target = $region132
        $region131: #{tpu_custom_call.1} parent=119 // pred_region
          %974 = dma.done [#allocation6], 256
        $region132: #{tpu_custom_call.1} parent=119 // pred_fallthru
          _
        // Predicated region
        $region133: #{tpu_custom_call.1} parent=119 // pred_check
          %p975 = pneg %p147
        $region134: #{tpu_custom_call.1} parent=119 // pred_check_branch
          %977 = sbr.rel (%p975) target = $region136
        $region135: #{tpu_custom_call.1} parent=119 // pred_region
          %979 = dma.done [#allocation9], 256
        $region136: #{tpu_custom_call.1} parent=119 // pred_fallthru
          _
        // Predicated region
        $region137: #{tpu_custom_call.1} parent=119 // pred_check
          %p980 = pneg %p168
        $region138: #{tpu_custom_call.1} parent=119 // pred_check_branch
          %982 = sbr.rel (%p980) target = $region140
        $region139: #{tpu_custom_call.1} parent=119 // pred_region
          %984 = dma.done [#allocation9], 16
        $region140: #{tpu_custom_call.1} parent=119 // pred_fallthru
          _
        // Predicated region
        $region141: #{tpu_custom_call.1} parent=119 // pred_check
          %p985 = pneg %p189
        $region142: #{tpu_custom_call.1} parent=119 // pred_check_branch
          %987 = sbr.rel (%p985) target = $region144
        $region143: #{tpu_custom_call.1} parent=119 // pred_region
          %989 = dma.done [#allocation12], 16
        $region144: #{tpu_custom_call.1} parent=119 // pred_fallthru
          _
        // Predicated region
        $region145: #{tpu_custom_call.1} parent=119 // pred_check
          %p990 = pneg %p210
        $region146: #{tpu_custom_call.1} parent=119 // pred_check_branch
          %992 = sbr.rel (%p990) target = $region148
        $region147: #{tpu_custom_call.1} parent=119 // pred_region
          %994 = dma.done [#allocation12], 256
        $region148: #{tpu_custom_call.1} parent=119 // pred_fallthru
          _
        // Predicated region
        $region149: #{tpu_custom_call.1} parent=119 // pred_check
          %p995 = pneg %p231
        $region150: #{tpu_custom_call.1} parent=119 // pred_check_branch
          %997 = sbr.rel (%p995) target = $region152
        $region151: #{tpu_custom_call.1} parent=119 // pred_region
          %999 = dma.done [#allocation15], 256
        $region152: #{tpu_custom_call.1} parent=119 // pred_fallthru
          _
        // Predicated region
        $region153: #{tpu_custom_call.1} parent=119 // pred_check
          %p1000 = pneg %p252
        $region154: #{tpu_custom_call.1} parent=119 // pred_check_branch
          %1002 = sbr.rel (%p1000) target = $region156
        $region155: #{tpu_custom_call.1} parent=119 // pred_region
          %1004 = dma.done [#allocation15], 16
        $region156: #{tpu_custom_call.1} parent=119 // pred_fallthru
          _
        // Predicated region
        $region157: #{tpu_custom_call.1} parent=119 // pred_check
          %p1005 = pneg %p273
        $region158: #{tpu_custom_call.1} parent=119 // pred_check_branch
          %1007 = sbr.rel (%p1005) target = $region160
        $region159: #{tpu_custom_call.1} parent=119 // pred_region
          %1009 = dma.done [#allocation18], 16
        $region160: #{tpu_custom_call.1} parent=119 // pred_fallthru
          _
        // Predicated region
        $region161: #{tpu_custom_call.1} parent=119 // pred_check
          %p1010 = pneg %p294
        $region162: #{tpu_custom_call.1} parent=119 // pred_check_branch
          %1012 = sbr.rel (%p1010) target = $region164
        $region163: #{tpu_custom_call.1} parent=119 // pred_region
          %1014 = dma.done [#allocation18], 256
        $region164: #{tpu_custom_call.1} parent=119 // pred_fallthru
          _
        // Predicated region
        $region165: #{tpu_custom_call.1} parent=119 // pred_check
          %p1015 = pneg %p315
        $region166: #{tpu_custom_call.1} parent=119 // pred_check_branch
          %1017 = sbr.rel (%p1015) target = $region168
        $region167: #{tpu_custom_call.1} parent=119 // pred_region
          %1019 = dma.done [#allocation21], 256
        $region168: #{tpu_custom_call.1} parent=119 // pred_fallthru
          _
        // Predicated region
        $region169: #{tpu_custom_call.1} parent=119 // pred_check
          %p1020 = pneg %p336
        $region170: #{tpu_custom_call.1} parent=119 // pred_check_branch
          %1022 = sbr.rel (%p1020) target = $region172
        $region171: #{tpu_custom_call.1} parent=119 // pred_region
          %1024 = dma.done [#allocation21], 256
        $region172: #{tpu_custom_call.1} parent=119 // pred_fallthru
          _
        // Predicated region
        $region173: #{tpu_custom_call.1} parent=119 // pred_check
          %p1025 = pneg %p357
        $region174: #{tpu_custom_call.1} parent=119 // pred_check_branch
          %1027 = sbr.rel (%p1025) target = $region176
        $region175: #{tpu_custom_call.1} parent=119 // pred_region
          %1029 = dma.done [#allocation24], 256
        $region176: #{tpu_custom_call.1} parent=119 // pred_fallthru
          _
        // Predicated region
        $region177: #{tpu_custom_call.1} parent=119 // pred_check
          %p1030 = pneg %p378
        $region178: #{tpu_custom_call.1} parent=119 // pred_check_branch
          %1032 = sbr.rel (%p1030) target = $region180
        $region179: #{tpu_custom_call.1} parent=119 // pred_region
          %1034 = dma.done [#allocation24], 256
        $region180: #{tpu_custom_call.1} parent=119 // pred_fallthru
          _
        // Predicated region
        $region181: #{tpu_custom_call.1} parent=119 // pred_check
          %p1035 = pneg %p399
        $region182: #{tpu_custom_call.1} parent=119 // pred_check_branch
          %1037 = sbr.rel (%p1035) target = $region184
        $region183: #{tpu_custom_call.1} parent=119 // pred_region
          %1039 = dma.done [#allocation27], 256
        $region184: #{tpu_custom_call.1} parent=119 // pred_fallthru
          _
        // Predicated region
        $region185: #{tpu_custom_call.1} parent=119 // pred_check
          %p1040 = pneg %p420
        $region186: #{tpu_custom_call.1} parent=119 // pred_check_branch
          %1042 = sbr.rel (%p1040) target = $region188
        $region187: #{tpu_custom_call.1} parent=119 // pred_region
          %1044 = dma.done [#allocation27], 16
        $region188: #{tpu_custom_call.1} parent=119 // pred_fallthru
          _
        // Predicated region
        $region189: #{tpu_custom_call.1} parent=119 // pred_check
          %p1045 = pneg %p462
        $region190: #{tpu_custom_call.1} parent=119 // pred_check_branch
          %1047 = sbr.rel (%p1045) target = $region192
        $region191: #{tpu_custom_call.1} parent=119 // pred_region
          %1049 = dma.done [#allocation30], 256
        $region192: #{tpu_custom_call.1} parent=119 // pred_fallthru
          _
        // Predicated region
        $region193: #{tpu_custom_call.1} parent=119 // pred_check
          %p1050 = pneg %p504
        $region194: #{tpu_custom_call.1} parent=119 // pred_check_branch
          %1052 = sbr.rel (%p1050) target = $region196
        $region195: #{tpu_custom_call.1} parent=119 // pred_region
          %1054 = dma.done [#allocation30], 512
        $region196: #{tpu_custom_call.1} parent=119 // pred_fallthru
          _
        %s1055 = sand.u32 %s66, 1
        %s1056 = scalar_lea.sflag [#allocation3], %s1055
        %s1057 = sand.u32 %s66, 1
        %s1058 = smul.addr %s1057, 8
        %s1059 = scalar_lea.vmem [#allocation2], %s1058
        %p1060 = pneg %p79
        %p1061 = pneg %p76
        %s1062 = sand.u32 %s58, 1
        %s1063 = scalar_lea.sflag [#allocation6], %s1062
        %s1064 = sand.u32 %s92, 1
        %s1065 = smul.addr %s1064, 8
        %s1066 = scalar_lea.vmem [#allocation5], %s1065
        %p1067 = pneg %p105
        %p1068 = pneg %p102
        %p1069 = pneg %p126
        %p1070 = pneg %p123
        %p1071 = pneg %p147
        %p1072 = pneg %p144
        %p1073 = pneg %p168
        %p1074 = pneg %p165
        %p1075 = pneg %p189
        %p1076 = pneg %p186
        %p1077 = pneg %p210
        %p1078 = pneg %p207
        %p1079 = pneg %p231
        %p1080 = pneg %p228
        %p1081 = pneg %p252
        %p1082 = pneg %p249
        %p1083 = pneg %p273
        %p1084 = pneg %p270
        %p1085 = pneg %p294
        %p1086 = pneg %p291
        %p1087 = pneg %p315
        %p1088 = pneg %p312
        %p1089 = pneg %p336
        %p1090 = pneg %p333
        %p1091 = pneg %p357
        %p1092 = pneg %p354
        %p1093 = pneg %p378
        %p1094 = pneg %p375
        %p1095 = pneg %p399
        %p1096 = pneg %p396
        %p1097 = pneg %p420
        %p1098 = pneg %p417
        %p1099 = pneg %p441
        %p1100 = pneg %p438
        %p1101 = pneg %p462
        %p1102 = pneg %p459
        %p1103 = pneg %p483
        %p1104 = pneg %p480
        %p1105 = pneg %p504
        %p1106 = pneg %p501
        %p1107 = pneg %p525
        %p1108 = pneg %p522
        %p1109 = pneg %p546
        %p1110 = pneg %p543
        %p1111 = pneg %p567
        %p1112 = pneg %p564
        %p1113 = pneg %p588
        %p1114 = pneg %p585
        %p1115 = pneg %p614
        %p1116 = pneg %p611
        %s1117 = sand.u32 %s601, 1
        %s1118 = scalar_lea.sflag [#allocation4], %s1117
        %s1119 = sand.u32 %s601, 1
        %s1120 = smul.addr %s1119, 8
        %s1121 = scalar_lea.vmem [#allocation32], %s1120
        %p1122 = pneg %p640
        %p1123 = pneg %p637
        %s1124 = sand.u32 %s627, 1
        %s1125 = scalar_lea.sflag [#allocation34], %s1124
        %s1126 = sand.u32 %s627, 1
        %s1127 = smul.addr %s1126, 8
        %s1128 = scalar_lea.vmem [#allocation33], %s1127
        %v1130 = vld [vmem:[%s954] sm:$0xff]
        %v1131 = vpack.c.bf16 %v1130, %v1130
        %v1132 = vld [vmem:[%s964] sm:$0xff]
        %v1133 = vpack.c.bf16 %v1132, %v1132
        %v1134 = vld [vmem:[#allocation8] sm:$0xf]
        %v1135 = vld [vmem:[#allocation8 + $0x4] sm:$0xf]
        %v1136 = vld [vmem:[#allocation8 + $0x8] sm:$0xf]
        %v1137 = vld [vmem:[#allocation8 + $0xc] sm:$0xf]
        %v1138 = vld [vmem:[#allocation11] sm:$0x1]
        %v1140 = vperm.slane %v1138, 0
        %v1146 = vunpack.c.l.b16 %v1134
        %v1147 = vunpack.c.l.b16 %v1135
        %v1148 = vunpack.c.l.b16 %v1136
        %v1149 = vunpack.c.l.b16 %v1137
        %v1150 = vpack.c.b16 %v1147, %v1146
        %v1151 = vpack.c.b16 %v1149, %v1148
        %vm1154 = vcmask 261120
        %v1156 = vsel %vm1154, %v1131, 0
        %1158 = vmatpush.bf16.msra.mxu0 0
        %1159 = vmatpush.bf16.msra.mxu0 0
        %1160 = vmatpush.bf16.msra.mxu0 0
        %1161 = vmatpush.bf16.msra.mxu0 0
        %1162 = vmatpush.bf16.msra.mxu0 0
        %1163 = vmatpush.bf16.msra.mxu0 0
        %1164 = vmatpush.bf16.msra.mxu0 %v1151
        %1165 = vmatpush.bf16.msra.mxu0 %v1150
        %1166 = vmatmul.bf16.gmra.mxu0 %v1156
        %v1167 = vpop.f32.mrf.mxu0
        %v1168 = vadd.f32 %v1140, %v1167
        %v1169 = vpop.f32.mrf.mxu0
        %1170 = vdwg.mxu0
        %v1171 = vmax.f32 %v1168, 0.0
        %v1172 = vld [vmem:[#allocation7] sm:$0xf]
        %v1173 = vld [vmem:[#allocation7 + $0x4] sm:$0xf]
        %v1174 = vld [vmem:[#allocation7 + $0x8] sm:$0xf]
        %v1175 = vld [vmem:[#allocation7 + $0xc] sm:$0xf]
        %v1176 = vld [vmem:[#allocation10] sm:$0x1]
        %v1178 = vperm.slane %v1176, 0
        %v1184 = vunpack.c.l.b16 %v1172
        %v1185 = vunpack.c.l.b16 %v1173
        %v1186 = vunpack.c.l.b16 %v1174
        %v1187 = vunpack.c.l.b16 %v1175
        %v1188 = vpack.c.b16 %v1185, %v1184
        %v1189 = vpack.c.b16 %v1187, %v1186
        %1192 = vmatpush.bf16.msra.mxu0 0
        %1193 = vmatpush.bf16.msra.mxu0 0
        %1194 = vmatpush.bf16.msra.mxu0 0
        %1195 = vmatpush.bf16.msra.mxu0 0
        %1196 = vmatpush.bf16.msra.mxu0 0
        %1197 = vmatpush.bf16.msra.mxu0 0
        %1198 = vmatpush.bf16.msra.mxu0 %v1189
        %1199 = vmatpush.bf16.msra.mxu0 %v1188
        %1200 = vmatmul.bf16.gmra.mxu0 %v1156
        %v1201 = vpop.f32.mrf.mxu0
        %v1202 = vadd.f32 %v1178, %v1201
        %v1203 = vpop.f32.mrf.mxu0
        %1204 = vdwg.mxu0
        %v1205 = vmax.f32 %v1202, 0.0
        %v1206 = vld [vmem:[#allocation14] sm:$0xf]
        %v1207 = vld [vmem:[#allocation14 + $0x4] sm:$0xf]
        %v1208 = vld [vmem:[#allocation14 + $0x8] sm:$0xf]
        %v1209 = vld [vmem:[#allocation14 + $0xc] sm:$0xf]
        %v1210 = vld [vmem:[#allocation17] sm:$0x1]
        %v1212 = vperm.slane %v1210, 0
        %v1218 = vunpack.c.l.b16 %v1206
        %v1219 = vunpack.c.l.b16 %v1207
        %v1220 = vunpack.c.l.b16 %v1208
        %v1221 = vunpack.c.l.b16 %v1209
        %v1222 = vpack.c.b16 %v1219, %v1218
        %v1223 = vpack.c.b16 %v1221, %v1220
        %v1227 = vsel %vm1154, %v1133, 0
        %1229 = vmatpush.bf16.msra.mxu0 0
        %1230 = vmatpush.bf16.msra.mxu0 0
        %1231 = vmatpush.bf16.msra.mxu0 0
        %1232 = vmatpush.bf16.msra.mxu0 0
        %1233 = vmatpush.bf16.msra.mxu0 0
        %1234 = vmatpush.bf16.msra.mxu0 0
        %1235 = vmatpush.bf16.msra.mxu0 %v1223
        %1236 = vmatpush.bf16.msra.mxu0 %v1222
        %1237 = vmatmul.bf16.gmra.mxu0 %v1227
        %v1238 = vpop.f32.mrf.mxu0
        %v1239 = vadd.f32 %v1212, %v1238
        %v1240 = vpop.f32.mrf.mxu0
        %1241 = vdwg.mxu0
        %v1242 = vmax.f32 %v1239, 0.0
        %v1243 = vld [vmem:[#allocation13] sm:$0xf]
        %v1244 = vld [vmem:[#allocation13 + $0x4] sm:$0xf]
        %v1245 = vld [vmem:[#allocation13 + $0x8] sm:$0xf]
        %v1246 = vld [vmem:[#allocation13 + $0xc] sm:$0xf]
        %v1247 = vld [vmem:[#allocation16] sm:$0x1]
        %v1249 = vperm.slane %v1247, 0
        %v1255 = vunpack.c.l.b16 %v1243
        %v1256 = vunpack.c.l.b16 %v1244
        %v1257 = vunpack.c.l.b16 %v1245
        %v1258 = vunpack.c.l.b16 %v1246
        %v1259 = vpack.c.b16 %v1256, %v1255
        %v1260 = vpack.c.b16 %v1258, %v1257
        %1263 = vmatpush.bf16.msra.mxu0 0
        %1264 = vmatpush.bf16.msra.mxu0 0
        %1265 = vmatpush.bf16.msra.mxu0 0
        %1266 = vmatpush.bf16.msra.mxu0 0
        %1267 = vmatpush.bf16.msra.mxu0 0
        %1268 = vmatpush.bf16.msra.mxu0 0
        %1269 = vmatpush.bf16.msra.mxu0 %v1260
        %1270 = vmatpush.bf16.msra.mxu0 %v1259
        %1271 = vmatmul.bf16.gmra.mxu0 %v1227
        %v1272 = vpop.f32.mrf.mxu0
        %v1273 = vadd.f32 %v1249, %v1272
        %v1274 = vpop.f32.mrf.mxu0
        %1275 = vdwg.mxu0
        %v1276 = vmax.f32 %v1273, 0.0
        %v1277 = vpack.c.bf16 %v1171, %v1171
        %v1278 = vpack.c.bf16 %v1242, %v1242
        %v1279 = vld [vmem:[#allocation19] sm:$0xf]
        %v1280 = vld [vmem:[#allocation19 + $0x4] sm:$0xf]
        %v1281 = vld [vmem:[#allocation19 + $0x8] sm:$0xf]
        %v1282 = vld [vmem:[#allocation19 + $0xc] sm:$0xf]
        %v1287 = vunpack.c.l.b16 %v1279
        %v1288 = vunpack.c.l.b16 %v1280
        %v1289 = vunpack.c.l.b16 %v1281
        %v1290 = vunpack.c.l.b16 %v1282
        %v1291 = vpack.c.b16 %v1288, %v1287
        %v1292 = vpack.c.b16 %v1290, %v1289
        %v1296 = vsel %vm1154, %v1277, 0
        %1298 = vmatpush.bf16.msra.mxu0 0
        %1299 = vmatpush.bf16.msra.mxu0 0
        %1300 = vmatpush.bf16.msra.mxu0 0
        %1301 = vmatpush.bf16.msra.mxu0 0
        %1302 = vmatpush.bf16.msra.mxu0 0
        %1303 = vmatpush.bf16.msra.mxu0 0
        %1304 = vmatpush.bf16.msra.mxu0 %v1292
        %1305 = vmatpush.bf16.msra.mxu0 %v1291
        %1306 = vmatmul.bf16.gmra.mxu0 %v1296
        %v1307 = vpop.f32.mrf.mxu0
        %v1308 = vadd.f32 0.0, %v1307
        %v1309 = vpop.f32.mrf.mxu0
        %1310 = vdwg.mxu0
        %v1311 = vld [vmem:[#allocation20] sm:$0xf]
        %v1312 = vld [vmem:[#allocation20 + $0x4] sm:$0xf]
        %v1313 = vld [vmem:[#allocation20 + $0x8] sm:$0xf]
        %v1314 = vld [vmem:[#allocation20 + $0xc] sm:$0xf]
        %v1319 = vunpack.c.l.b16 %v1311
        %v1320 = vunpack.c.l.b16 %v1312
        %v1321 = vunpack.c.l.b16 %v1313
        %v1322 = vunpack.c.l.b16 %v1314
        %v1323 = vpack.c.b16 %v1320, %v1319
        %v1324 = vpack.c.b16 %v1322, %v1321
        %1327 = vmatpush.bf16.msra.mxu0 0
        %1328 = vmatpush.bf16.msra.mxu0 0
        %1329 = vmatpush.bf16.msra.mxu0 0
        %1330 = vmatpush.bf16.msra.mxu0 0
        %1331 = vmatpush.bf16.msra.mxu0 0
        %1332 = vmatpush.bf16.msra.mxu0 0
        %1333 = vmatpush.bf16.msra.mxu0 %v1324
        %1334 = vmatpush.bf16.msra.mxu0 %v1323
        %1335 = vmatmul.bf16.gmra.mxu0 %v1296
        %v1336 = vpop.f32.mrf.mxu0
        %v1337 = vadd.f32 0.0, %v1336
        %v1338 = vpop.f32.mrf.mxu0
        %1339 = vdwg.mxu0
        %v1340 = vld [vmem:[#allocation22] sm:$0xf]
        %v1341 = vld [vmem:[#allocation22 + $0x4] sm:$0xf]
        %v1342 = vld [vmem:[#allocation22 + $0x8] sm:$0xf]
        %v1343 = vld [vmem:[#allocation22 + $0xc] sm:$0xf]
        %v1348 = vunpack.c.l.b16 %v1340
        %v1349 = vunpack.c.l.b16 %v1341
        %v1350 = vunpack.c.l.b16 %v1342
        %v1351 = vunpack.c.l.b16 %v1343
        %v1352 = vpack.c.b16 %v1349, %v1348
        %v1353 = vpack.c.b16 %v1351, %v1350
        %v1357 = vsel %vm1154, %v1278, 0
        %1359 = vmatpush.bf16.msra.mxu0 0
        %1360 = vmatpush.bf16.msra.mxu0 0
        %1361 = vmatpush.bf16.msra.mxu0 0
        %1362 = vmatpush.bf16.msra.mxu0 0
        %1363 = vmatpush.bf16.msra.mxu0 0
        %1364 = vmatpush.bf16.msra.mxu0 0
        %1365 = vmatpush.bf16.msra.mxu0 %v1353
        %1366 = vmatpush.bf16.msra.mxu0 %v1352
        %1367 = vmatmul.bf16.gmra.mxu0 %v1357
        %v1368 = vpop.f32.mrf.mxu0
        %v1369 = vadd.f32 0.0, %v1368
        %v1370 = vpop.f32.mrf.mxu0
        %1371 = vdwg.mxu0
        %v1372 = vld [vmem:[#allocation23] sm:$0xf]
        %v1373 = vld [vmem:[#allocation23 + $0x4] sm:$0xf]
        %v1374 = vld [vmem:[#allocation23 + $0x8] sm:$0xf]
        %v1375 = vld [vmem:[#allocation23 + $0xc] sm:$0xf]
        %v1380 = vunpack.c.l.b16 %v1372
        %v1381 = vunpack.c.l.b16 %v1373
        %v1382 = vunpack.c.l.b16 %v1374
        %v1383 = vunpack.c.l.b16 %v1375
        %v1384 = vpack.c.b16 %v1381, %v1380
        %v1385 = vpack.c.b16 %v1383, %v1382
        %1388 = vmatpush.bf16.msra.mxu0 0
        %1389 = vmatpush.bf16.msra.mxu0 0
        %1390 = vmatpush.bf16.msra.mxu0 0
        %1391 = vmatpush.bf16.msra.mxu0 0
        %1392 = vmatpush.bf16.msra.mxu0 0
        %1393 = vmatpush.bf16.msra.mxu0 0
        %1394 = vmatpush.bf16.msra.mxu0 %v1385
        %1395 = vmatpush.bf16.msra.mxu0 %v1384
        %1396 = vmatmul.bf16.gmra.mxu0 %v1357
        %v1397 = vpop.f32.mrf.mxu0
        %v1398 = vadd.f32 0.0, %v1397
        %v1399 = vpop.f32.mrf.mxu0
        %1400 = vdwg.mxu0
        %v1401 = vld [vmem:[#allocation31] sm:$0xff]
        %v1402 = vld [vmem:[#allocation31 + $0x8] sm:$0xff]
        %v1403 = vld [vmem:[#allocation31 + $0x10] sm:$0xff]
        %v1404 = vld [vmem:[#allocation31 + $0x18] sm:$0xff]
        %v1405 = vpack.c.bf16 %v1308, %v1308
        %v1406 = vpack.c.bf16 %v1337, %v1337
        %1407 = vxpose.xlu0.c.b16.start [1/8] %v1405, 128
        %1408 = vxpose.xlu0.c.b16.cont [2/8] 0, 128
        %1409 = vxpose.xlu0.c.b16.cont [3/8] 0, 128
        %1410 = vxpose.xlu0.c.b16.cont [4/8] 0, 128
        %1411 = vxpose.xlu0.c.b16.cont [5/8] 0, 128
        %1412 = vxpose.xlu0.c.b16.cont [6/8] 0, 128
        %1413 = vxpose.xlu0.c.b16.cont [7/8] 0, 128
        %1414 = vxpose.xlu0.c.b16.end [8/8] 0, 128
        %v1415 = vpop.trf.xlu0
        %v1416 = vpop.trf.xlu0
        %v1417 = vpop.trf.xlu0
        %v1418 = vpop.trf.xlu0
        %v1419 = vpop.trf.xlu0
        %v1420 = vpop.trf.xlu0
        %v1421 = vpop.trf.xlu0
        %v1422 = vpop.trf.xlu0
        %vm1423 = vcmask 64512
        %v1425 = vsel %vm1423, %v1415, 0
        %v1428 = vsel %vm1423, %v1416, 0
        %vm1430 = vcmask 1043456
        %v1432 = vsel %vm1430, %v1406, 0
        %1434 = vmatpush.bf16.msra.mxu0 0
        %1435 = vmatpush.bf16.msra.mxu0 0
        %1436 = vmatpush.bf16.msra.mxu0 0
        %1437 = vmatpush.bf16.msra.mxu0 0
        %1438 = vmatpush.bf16.msra.mxu0 0
        %1439 = vmatpush.bf16.msra.mxu0 0
        %1440 = vmatpush.bf16.msra.mxu0 0
        %1441 = vmatpush.bf16.msra.mxu0 %v1432
        %1442 = vmatmul.bf16.gmra.mxu0 %v1425
        %v1443 = vpop.f32.mrf.mxu0
        %v1444 = vadd.f32 %v1401, %v1443
        %v1445 = vpop.f32.mrf.mxu0
        %v1446 = vadd.f32 %v1402, %v1445
        %1447 = vmatmul.bf16.gmra.mxu0 %v1428
        %v1448 = vpop.f32.mrf.mxu0
        %v1449 = vadd.f32 %v1403, %v1448
        %v1450 = vpop.f32.mrf.mxu0
        %v1451 = vadd.f32 %v1404, %v1450
        %1452 = vdwg.mxu0
        %v1453 = vsel %vm1154, %v1444, -inf
        %v1454 = vsel %vm1154, %v1446, -inf
        %v1455 = vsel %vm1154, %v1449, -inf
        %v1456 = vsel %vm1154, %v1451, -inf
        %v1457 = vmax.f32 %v1453, %v1454
        %v1458 = vmax.f32 %v1455, %v1456
        %v1459 = vmax.f32 %v1457, %v1458
        %v1460 = vrot.slane %v1459, 4
        %v1461 = vmax.f32 %v1459, %v1460
        %v1462 = vrot.slane %v1461, 2
        %v1463 = vmax.f32 %v1461, %v1462
        %v1464 = vrot.slane %v1463, 1
        %v1465 = vmax.f32 %v1463, %v1464
        %v1466 = vsub.f32 %v1444, %v1465
        %v1467 = vsub.f32 %v1446, %v1465
        %v1468 = vsub.f32 %v1449, %v1465
        %v1469 = vsub.f32 %v1451, %v1465
        %v1470 = vmul.f32 %v1466, 1.442695
        %v1471 = vpow.pop %v1470
        %v1472 = vmul.f32 %v1467, 1.442695
        %v1473 = vpow.pop %v1472
        %v1474 = vmul.f32 %v1468, 1.442695
        %v1475 = vpow.pop %v1474
        %v1476 = vmul.f32 %v1469, 1.442695
        %v1477 = vpow.pop %v1476
        %v1478 = vsel %vm1154, %v1471, 0.0
        %v1479 = vsel %vm1154, %v1473, 0.0
        %v1480 = vadd.f32 %v1478, %v1479
        %v1481 = vsel %vm1154, %v1475, 0.0
        %v1482 = vadd.f32 %v1480, %v1481
        %v1483 = vsel %vm1154, %v1477, 0.0
        %v1484 = vadd.f32 %v1482, %v1483
        %v1485 = vrot.slane %v1484, 4
        %v1486 = vadd.f32 %v1484, %v1485
        %v1487 = vrot.slane %v1486, 2
        %v1488 = vadd.f32 %v1486, %v1487
        %v1489 = vrot.slane %v1488, 1
        %v1490 = vadd.f32 %v1488, %v1489
        %v1491 = vrcp.pop %v1490
        %v1492 = vmul.f32 %v1471, %v1491
        %v1493 = vmul.f32 %v1473, %v1491
        %v1494 = vmul.f32 %v1475, %v1491
        %v1495 = vmul.f32 %v1477, %v1491
        %v1496 = vpack.c.bf16 %v1492, %v1492
        %v1497 = vpack.c.bf16 %v1493, %v1493
        %v1498 = vpack.c.bf16 %v1494, %v1494
        %v1499 = vpack.c.bf16 %v1495, %v1495
        %v1500 = vpack.c.bf16 %v1369, %v1369
        %v1501 = vpack.c.bf16 %v1398, %v1398
        %1502 = vxpose.xlu0.c.b16.start [1/8] %v1500, 128
        %1503 = vxpose.xlu0.c.b16.cont [2/8] 0, 128
        %1504 = vxpose.xlu0.c.b16.cont [3/8] 0, 128
        %1505 = vxpose.xlu0.c.b16.cont [4/8] 0, 128
        %1506 = vxpose.xlu0.c.b16.cont [5/8] 0, 128
        %1507 = vxpose.xlu0.c.b16.cont [6/8] 0, 128
        %1508 = vxpose.xlu0.c.b16.cont [7/8] 0, 128
        %1509 = vxpose.xlu0.c.b16.end [8/8] 0, 128
        %v1510 = vpop.trf.xlu0
        %v1511 = vpop.trf.xlu0
        %v1512 = vpop.trf.xlu0
        %v1513 = vpop.trf.xlu0
        %v1514 = vpop.trf.xlu0
        %v1515 = vpop.trf.xlu0
        %v1516 = vpop.trf.xlu0
        %v1517 = vpop.trf.xlu0
        %v1519 = vsel %vm1423, %v1510, 0
        %v1522 = vsel %vm1423, %v1511, 0
        %v1525 = vsel %vm1430, %v1501, 0
        %1527 = vmatpush.bf16.msra.mxu0 0
        %1528 = vmatpush.bf16.msra.mxu0 0
        %1529 = vmatpush.bf16.msra.mxu0 0
        %1530 = vmatpush.bf16.msra.mxu0 0
        %1531 = vmatpush.bf16.msra.mxu0 0
        %1532 = vmatpush.bf16.msra.mxu0 0
        %1533 = vmatpush.bf16.msra.mxu0 0
        %1534 = vmatpush.bf16.msra.mxu0 %v1525
        %1535 = vmatmul.bf16.gmra.mxu0 %v1519
        %v1536 = vpop.f32.mrf.mxu0
        %v1537 = vadd.f32 %v1401, %v1536
        %v1538 = vpop.f32.mrf.mxu0
        %v1539 = vadd.f32 %v1402, %v1538
        %1540 = vmatmul.bf16.gmra.mxu0 %v1522
        %v1541 = vpop.f32.mrf.mxu0
        %v1542 = vadd.f32 %v1403, %v1541
        %v1543 = vpop.f32.mrf.mxu0
        %v1544 = vadd.f32 %v1404, %v1543
        %1545 = vdwg.mxu0
        %v1546 = vsel %vm1154, %v1537, -inf
        %v1547 = vsel %vm1154, %v1539, -inf
        %v1548 = vsel %vm1154, %v1542, -inf
        %v1549 = vsel %vm1154, %v1544, -inf
        %v1550 = vmax.f32 %v1546, %v1547
        %v1551 = vmax.f32 %v1548, %v1549
        %v1552 = vmax.f32 %v1550, %v1551
        %v1553 = vrot.slane %v1552, 4
        %v1554 = vmax.f32 %v1552, %v1553
        %v1555 = vrot.slane %v1554, 2
        %v1556 = vmax.f32 %v1554, %v1555
        %v1557 = vrot.slane %v1556, 1
        %v1558 = vmax.f32 %v1556, %v1557
        %v1559 = vsub.f32 %v1537, %v1558
        %v1560 = vsub.f32 %v1539, %v1558
        %v1561 = vsub.f32 %v1542, %v1558
        %v1562 = vsub.f32 %v1544, %v1558
        %v1563 = vmul.f32 %v1559, 1.442695
        %v1564 = vpow.pop %v1563
        %v1565 = vmul.f32 %v1560, 1.442695
        %v1566 = vpow.pop %v1565
        %v1567 = vmul.f32 %v1561, 1.442695
        %v1568 = vpow.pop %v1567
        %v1569 = vmul.f32 %v1562, 1.442695
        %v1570 = vpow.pop %v1569
        %v1571 = vsel %vm1154, %v1564, 0.0
        %v1572 = vsel %vm1154, %v1566, 0.0
        %v1573 = vadd.f32 %v1571, %v1572
        %v1574 = vsel %vm1154, %v1568, 0.0
        %v1575 = vadd.f32 %v1573, %v1574
        %v1576 = vsel %vm1154, %v1570, 0.0
        %v1577 = vadd.f32 %v1575, %v1576
        %v1578 = vrot.slane %v1577, 4
        %v1579 = vadd.f32 %v1577, %v1578
        %v1580 = vrot.slane %v1579, 2
        %v1581 = vadd.f32 %v1579, %v1580
        %v1582 = vrot.slane %v1581, 1
        %v1583 = vadd.f32 %v1581, %v1582
        %v1584 = vrcp.pop %v1583
        %v1585 = vmul.f32 %v1564, %v1584
        %v1586 = vmul.f32 %v1566, %v1584
        %v1587 = vmul.f32 %v1568, %v1584
        %v1588 = vmul.f32 %v1570, %v1584
        %v1589 = vpack.c.bf16 %v1585, %v1585
        %v1590 = vpack.c.bf16 %v1586, %v1586
        %v1591 = vpack.c.bf16 %v1587, %v1587
        %v1592 = vpack.c.bf16 %v1588, %v1588
        %v1597 = vunpack.c.l.b16 %v1589
        %v1598 = vunpack.c.l.b16 %v1590
        %v1599 = vunpack.c.l.b16 %v1591
        %v1600 = vunpack.c.l.b16 %v1592
        %v1601 = vpack.c.b16 %v1598, %v1597
        %v1602 = vpack.c.b16 %v1600, %v1599
        %1605 = vmatpush.bf16.msra.mxu0 0
        %1606 = vmatpush.bf16.msra.mxu0 0
        %1607 = vmatpush.bf16.msra.mxu0 0
        %1608 = vmatpush.bf16.msra.mxu0 0
        %1609 = vmatpush.bf16.msra.mxu0 0
        %1610 = vmatpush.bf16.msra.mxu0 0
        %1611 = vmatpush.bf16.msra.mxu0 %v1602
        %1612 = vmatpush.bf16.msra.mxu0 %v1601
        %1613 = vmatmul.bf16.gmra.mxu0 %v1296
        %v1614 = vpop.f32.mrf.mxu0
        %v1615 = vadd.f32 0.0, %v1614
        %v1616 = vpop.f32.mrf.mxu0
        %1617 = vdwg.mxu0
        %v1622 = vunpack.c.l.b16 %v1496
        %v1623 = vunpack.c.l.b16 %v1497
        %v1624 = vunpack.c.l.b16 %v1498
        %v1625 = vunpack.c.l.b16 %v1499
        %v1626 = vpack.c.b16 %v1623, %v1622
        %v1627 = vpack.c.b16 %v1625, %v1624
        %1630 = vmatpush.bf16.msra.mxu0 0
        %1631 = vmatpush.bf16.msra.mxu0 0
        %1632 = vmatpush.bf16.msra.mxu0 0
        %1633 = vmatpush.bf16.msra.mxu0 0
        %1634 = vmatpush.bf16.msra.mxu0 0
        %1635 = vmatpush.bf16.msra.mxu0 0
        %1636 = vmatpush.bf16.msra.mxu0 %v1627
        %1637 = vmatpush.bf16.msra.mxu0 %v1626
        %1638 = vmatmul.bf16.gmra.mxu0 %v1357
        %v1639 = vpop.f32.mrf.mxu0
        %v1640 = vadd.f32 0.0, %v1639
        %v1641 = vpop.f32.mrf.mxu0
        %1642 = vdwg.mxu0
        %v1643 = vpack.c.bf16 %v1205, %v1205
        %v1644 = vld [vmem:[#allocation25] sm:$0xf]
        %v1645 = vld [vmem:[#allocation25 + $0x4] sm:$0xf]
        %v1646 = vld [vmem:[#allocation25 + $0x8] sm:$0xf]
        %v1647 = vld [vmem:[#allocation25 + $0xc] sm:$0xf]
        %v1648 = vpack.c.bf16 %v1615, %v1615
        %v1649 = vld [vmem:[#allocation26] sm:$0xf]
        %v1650 = vld [vmem:[#allocation26 + $0x4] sm:$0xf]
        %v1651 = vld [vmem:[#allocation26 + $0x8] sm:$0xf]
        %v1652 = vld [vmem:[#allocation26 + $0xc] sm:$0xf]
        %v1657 = vunpack.c.l.b16 %v1649
        %v1658 = vunpack.c.l.b16 %v1650
        %v1659 = vunpack.c.l.b16 %v1651
        %v1660 = vunpack.c.l.b16 %v1652
        %v1661 = vpack.c.b16 %v1658, %v1657
        %v1662 = vpack.c.b16 %v1660, %v1659
        %v1666 = vsel %vm1154, %v1648, 0
        %1668 = vmatpush.bf16.msra.mxu0 0
        %1669 = vmatpush.bf16.msra.mxu0 0
        %1670 = vmatpush.bf16.msra.mxu0 0
        %1671 = vmatpush.bf16.msra.mxu0 0
        %1672 = vmatpush.bf16.msra.mxu0 0
        %1673 = vmatpush.bf16.msra.mxu0 0
        %1674 = vmatpush.bf16.msra.mxu0 %v1662
        %1675 = vmatpush.bf16.msra.mxu0 %v1661
        %1676 = vmatmul.bf16.gmra.mxu0 %v1666
        %v1677 = vpop.f32.mrf.mxu0
        %v1678 = vadd.f32 0.0, %v1677
        %v1679 = vpop.f32.mrf.mxu0
        %1680 = vdwg.mxu0
        %v1685 = vunpack.c.l.b16 %v1644
        %v1686 = vunpack.c.l.b16 %v1645
        %v1687 = vunpack.c.l.b16 %v1646
        %v1688 = vunpack.c.l.b16 %v1647
        %v1689 = vpack.c.b16 %v1686, %v1685
        %v1690 = vpack.c.b16 %v1688, %v1687
        %v1694 = vsel %vm1154, %v1643, 0
        %1696 = vmatpush.bf16.msra.mxu0 0
        %1697 = vmatpush.bf16.msra.mxu0 0
        %1698 = vmatpush.bf16.msra.mxu0 0
        %1699 = vmatpush.bf16.msra.mxu0 0
        %1700 = vmatpush.bf16.msra.mxu0 0
        %1701 = vmatpush.bf16.msra.mxu0 0
        %1702 = vmatpush.bf16.msra.mxu0 %v1690
        %1703 = vmatpush.bf16.msra.mxu0 %v1689
        %1704 = vmatmul.bf16.gmra.mxu0 %v1694
        %v1705 = vpop.f32.mrf.mxu0
        %v1706 = vadd.f32 %v1678, %v1705
        %v1707 = vpop.f32.mrf.mxu0
        %1708 = vdwg.mxu0
        %v1709 = vld [vmem:[#allocation28] sm:$0x1]
        %v1711 = vperm.slane %v1709, 0
        %v1713 = vadd.f32 %v1706, %v1711
        %v1714 = vpack.c.bf16 %v1276, %v1276
        %v1715 = vld [vmem:[%s17] sm:$0xf]
        %v1716 = vld [vmem:[%s17 + $0x4] sm:$0xf]
        %v1717 = vld [vmem:[%s17 + $0x8] sm:$0xf]
        %v1718 = vld [vmem:[%s17 + $0xc] sm:$0xf]
        %v1719 = vpack.c.bf16 %v1640, %v1640
        %v1720 = vld [vmem:[#allocation29] sm:$0xf]
        %v1721 = vld [vmem:[#allocation29 + $0x4] sm:$0xf]
        %v1722 = vld [vmem:[#allocation29 + $0x8] sm:$0xf]
        %v1723 = vld [vmem:[#allocation29 + $0xc] sm:$0xf]
        %v1728 = vunpack.c.l.b16 %v1720
        %v1729 = vunpack.c.l.b16 %v1721
        %v1730 = vunpack.c.l.b16 %v1722
        %v1731 = vunpack.c.l.b16 %v1723
        %v1732 = vpack.c.b16 %v1729, %v1728
        %v1733 = vpack.c.b16 %v1731, %v1730
        %v1737 = vsel %vm1154, %v1719, 0
        %1739 = vmatpush.bf16.msra.mxu0 0
        %1740 = vmatpush.bf16.msra.mxu0 0
        %1741 = vmatpush.bf16.msra.mxu0 0
        %1742 = vmatpush.bf16.msra.mxu0 0
        %1743 = vmatpush.bf16.msra.mxu0 0
        %1744 = vmatpush.bf16.msra.mxu0 0
        %1745 = vmatpush.bf16.msra.mxu0 %v1733
        %1746 = vmatpush.bf16.msra.mxu0 %v1732
        %1747 = vmatmul.bf16.gmra.mxu0 %v1737
        %v1748 = vpop.f32.mrf.mxu0
        %v1749 = vadd.f32 0.0, %v1748
        %v1750 = vpop.f32.mrf.mxu0
        %1751 = vdwg.mxu0
        %v1756 = vunpack.c.l.b16 %v1715
        %v1757 = vunpack.c.l.b16 %v1716
        %v1758 = vunpack.c.l.b16 %v1717
        %v1759 = vunpack.c.l.b16 %v1718
        %v1760 = vpack.c.b16 %v1757, %v1756
        %v1761 = vpack.c.b16 %v1759, %v1758
        %v1765 = vsel %vm1154, %v1714, 0
        %1767 = vmatpush.bf16.msra.mxu0 0
        %1768 = vmatpush.bf16.msra.mxu0 0
        %1769 = vmatpush.bf16.msra.mxu0 0
        %1770 = vmatpush.bf16.msra.mxu0 0
        %1771 = vmatpush.bf16.msra.mxu0 0
        %1772 = vmatpush.bf16.msra.mxu0 0
        %1773 = vmatpush.bf16.msra.mxu0 %v1761
        %1774 = vmatpush.bf16.msra.mxu0 %v1760
        %1775 = vmatmul.bf16.gmra.mxu0 %v1765
        %v1776 = vpop.f32.mrf.mxu0
        %v1777 = vadd.f32 %v1749, %v1776
        %v1778 = vpop.f32.mrf.mxu0
        %1779 = vdwg.mxu0
        %v1780 = vld [vmem:[%s19] sm:$0x1]
        %v1782 = vperm.slane %v1780, 0
        %v1784 = vadd.f32 %v1777, %v1782
        %v1785 = vld [vmem:[%s954] sm:$0xff]
        %v1786 = vadd.f32 %v1785, %v1713
        %v1787 = vld [vmem:[%s964] sm:$0xff]
        %v1788 = vadd.f32 %v1787, %v1784
        %v1789 = vld [vmem:[%s21] sm:$0x1]
        %v1790 = vld [vmem:[%s22] sm:$0x1]
        %v1791 = vsel %vm1154, %v1786, 0.0
        %1792 = vadd.xlane.f32.xlu0 %v1791
        %v1793 = vpop.xlane.xlu0 %1792
        %v1794 = vrcp.pop 32.0
        %v1795 = vmul.f32 32.0, %v1794
        %v1796 = vsub.f32 1.0, %v1795
        %v1797 = vmul.f32 %v1794, %v1796
        %v1798 = vadd.f32 %v1794, %v1797
        %vm1799 = vweird.f32 %v1794
        %v1800 = vsel %vm1799, %v1794, %v1798
        %v1801 = vmul.f32 %v1793, %v1800
        %v1802 = vmul.f32 %v1786, %v1786
        %v1803 = vsel %vm1154, %v1802, 0.0
        %1804 = vadd.xlane.f32.xlu0 %v1803
        %v1805 = vpop.xlane.xlu0 %1804
        %v1806 = vmul.f32 %v1805, %v1800
        %v1807 = vmul.f32 %v1801, %v1801
        %v1808 = vsub.f32 %v1806, %v1807
        %v1809 = vmax.f32 %v1808, 0.0
        %v1810 = vsub.f32 %v1786, %v1801
        %v1811 = vadd.f32 %v1809, 1e-05
        %v1812 = vrsqrt.pop %v1811
        %v1813 = vmul.f32 %v1812, %v1811
        %v1814 = vmul.f32 %v1813, %v1812
        %v1815 = vmul.f32 0.5, %v1814
        %v1816 = vsub.f32 1.5, %v1815
        %v1817 = vmul.f32 %v1812, %v1816
        %vm1818 = vweird.f32 %v1811
        %vm1819 = vweird.f32 %v1812
        %vm1820 = vmor %vm1818, %vm1819
        %v1821 = vsel %vm1820, %v1812, %v1817
        %v1822 = vmul.f32 %v1810, %v1821
        %v1824 = vperm.slane %v1789, 0
        %v1826 = vmul.f32 %v1822, %v1824
        %v1828 = vperm.slane %v1790, 0
        %v1830 = vadd.f32 %v1826, %v1828
        %1831 = vst.msk [vmem:[%s1121] sm:$0xff] %vm1154, %v1830
        %v1832 = vld [vmem:[%s23] sm:$0x1]
        %v1833 = vld [vmem:[%s24] sm:$0x1]
        %v1834 = vsel %vm1154, %v1788, 0.0
        %1835 = vadd.xlane.f32.xlu0 %v1834
        %v1836 = vpop.xlane.xlu0 %1835
        %v1837 = vmul.f32 %v1836, %v1800
        %v1838 = vmul.f32 %v1788, %v1788
        %v1839 = vsel %vm1154, %v1838, 0.0
        %1840 = vadd.xlane.f32.xlu0 %v1839
        %v1841 = vpop.xlane.xlu0 %1840
        %v1842 = vmul.f32 %v1841, %v1800
        %v1843 = vmul.f32 %v1837, %v1837
        %v1844 = vsub.f32 %v1842, %v1843
        %v1845 = vmax.f32 %v1844, 0.0
        %v1846 = vsub.f32 %v1788, %v1837
        %v1847 = vadd.f32 %v1845, 1e-05
        %v1848 = vrsqrt.pop %v1847
        %v1849 = vmul.f32 %v1848, %v1847
        %v1850 = vmul.f32 %v1849, %v1848
        %v1851 = vmul.f32 0.5, %v1850
        %v1852 = vsub.f32 1.5, %v1851
        %v1853 = vmul.f32 %v1848, %v1852
        %vm1854 = vweird.f32 %v1847
        %vm1855 = vweird.f32 %v1848
        %vm1856 = vmor %vm1854, %vm1855
        %v1857 = vsel %vm1856, %v1848, %v1853
        %v1858 = vmul.f32 %v1846, %v1857
        %v1860 = vperm.slane %v1832, 0
        %v1862 = vmul.f32 %v1858, %v1860
        %v1864 = vperm.slane %v1833, 0
        %v1866 = vadd.f32 %v1862, %v1864
        %1867 = vst.msk [vmem:[%s1128] sm:$0xff] %vm1154, %v1866
        %s1868 = sand.u32 %s601, 1
        %s1869 = scalar_lea.sflag [#allocation4], %s1868
        %s1870 = sand.u32 %s601, 1
        %s1871 = smul.addr %s1870, 8
        %s1872 = scalar_lea.vmem [#allocation32], %s1871
        %s1873 = sand.u32 %s627, 1
        %s1874 = scalar_lea.sflag [#allocation34], %s1873
        %s1875 = sand.u32 %s627, 1
        %s1876 = smul.addr %s1875, 8
        %s1877 = scalar_lea.vmem [#allocation33], %s1876
        // Predicated region
        $region197: #{tpu_custom_call.1} parent=119 // pred_check
          %p1878 = pneg %p611
        $region198: #{tpu_custom_call.1} parent=119 // pred_check_branch
          %1880 = sbr.rel (%p1878) target = $region200
        $region199: #{tpu_custom_call.1} parent=119 // pred_region
          %1882 = vsyncadd %s1869, 0
          %s1883 = smul.addr %s58, 8
          %s1884 = scalar_lea.hbm %s25, %s1883
          %s1886 = sshll.u32 %s1872, 4
          %s1887 = int_to_ptr.vmem [resolvable:$true] %s1886
          %s1888 = sshll.u32 %s1884, 4
          %s1889 = int_to_ptr.hbm [resolvable:$true] %s1888
          %1891 = dma.vmem_to_hbm [thread:$0]  %s1887, 128, %s1889, %s1869
        $region200: #{tpu_custom_call.1} parent=119 // pred_fallthru
          _
        // Predicated region
        $region201: #{tpu_custom_call.1} parent=119 // pred_check
          %p1892 = pneg %p637
        $region202: #{tpu_custom_call.1} parent=119 // pred_check_branch
          %1894 = sbr.rel (%p1892) target = $region204
        $region203: #{tpu_custom_call.1} parent=119 // pred_region
          %1896 = vsyncadd %s1874, 0
          %s1897 = smul.addr %s58, 8
          %s1898 = scalar_lea.hbm %s26, %s1897
          %s1900 = sshll.u32 %s1877, 4
          %s1901 = int_to_ptr.vmem [resolvable:$true] %s1900
          %s1902 = sshll.u32 %s1898, 4
          %s1903 = int_to_ptr.hbm [resolvable:$true] %s1902
          %1905 = dma.vmem_to_hbm [thread:$0]  %s1901, 128, %s1903, %s1874
        $region204: #{tpu_custom_call.1} parent=119 // pred_fallthru
          _
      $region120: #{tpu_custom_call.1} parent=5 // pred_fallthru
        _
      %p1906 = scmp.le.s32.totalorder 2, %s53
      // Predicated region
      $region205: #{tpu_custom_call.1} parent=5 // pred_check
        %p1907 = pneg %p1906
      $region206: #{tpu_custom_call.1} parent=5 // pred_check_branch
        %1909 = sbr.rel (%p1907) target = $region208
      $region207: #{tpu_custom_call.1} parent=5 // pred_region
        %s1910 = ssub.s32 %s53, 2
        // Predicated region
        $region209: #{tpu_custom_call.1} parent=207 // pred_check
          %p1911 = pneg %p617
        $region210: #{tpu_custom_call.1} parent=207 // pred_check_branch
          %1913 = sbr.rel (%p1911) target = $region212
        $region211: #{tpu_custom_call.1} parent=207 // pred_region
          %s1914 = sand.u32 %s602, 1
          %s1915 = scalar_lea.sflag [#allocation4], %s1914
          %s1916 = sand.u32 %s602, 1
          %s1917 = smul.addr %s1916, 8
          %s1918 = scalar_lea.vmem [#allocation32], %s1917
          %1920 = dma.done %s1915, 128
        $region212: #{tpu_custom_call.1} parent=207 // pred_fallthru
          _
        // Predicated region
        $region213: #{tpu_custom_call.1} parent=207 // pred_check
          %p1921 = pneg %p643
        $region214: #{tpu_custom_call.1} parent=207 // pred_check_branch
          %1923 = sbr.rel (%p1921) target = $region216
        $region215: #{tpu_custom_call.1} parent=207 // pred_region
          %s1924 = sand.u32 %s628, 1
          %s1925 = scalar_lea.sflag [#allocation34], %s1924
          %s1926 = sand.u32 %s628, 1
          %s1927 = smul.addr %s1926, 8
          %s1928 = scalar_lea.vmem [#allocation33], %s1927
          %1930 = dma.done %s1925, 128
        $region216: #{tpu_custom_call.1} parent=207 // pred_fallthru
          _
      $region208: #{tpu_custom_call.1} parent=5 // pred_fallthru
        _
    $region6: #{tpu_custom_call.1} parent=1 // loop_footer
      %s57 = sadd.s32 1, %s53
    $region7: #{tpu_custom_call.1} parent=1 // loop_footer_branch
      %52 = sbr.rel target = $region3
    $region8: #{tpu_custom_call.1} parent=1 // loop_exit
      _
    %1931 = vsyncpa [#allocation3], 1
    %s1932 = scalar_lea.sflag [#allocation3], 1
    %1933 = vsyncpa %s1932, 1
    %1934 = vsyncpa [#allocation6], 1
    %s1935 = scalar_lea.sflag [#allocation6], 1
    %1936 = vsyncpa %s1935, 1
    %1937 = vsyncpa [#allocation9], 1
    %1938 = vsyncpa [#allocation12], 1
    %1939 = vsyncpa [#allocation15], 1
    %1940 = vsyncpa [#allocation18], 1
    %1941 = vsyncpa [#allocation21], 1
    %1942 = vsyncpa [#allocation24], 1
    %1943 = vsyncpa [#allocation27], 1
    %1944 = vsyncpa [#allocation30], 1
    %1945 = vsyncpa [#allocation4], 1
    %s1946 = scalar_lea.sflag [#allocation4], 1
    %1947 = vsyncpa %s1946, 1
    %1948 = vsyncpa [#allocation34], 1
    %s1949 = scalar_lea.sflag [#allocation34], 1
    %1950 = vsyncpa %s1949, 1

// kernel: tpu_custom_call.1
$region0: #{tpu_custom_call.1}
  #allocation0 [shape = 'u32[]', space=smem, size = 0x4, offset = 0x4, fixed_abs, tag = 'smem constant byte address 0x4 - core index']
  #allocation1 [shape = 'u32[72,128]{1,0:T(1,128)}', space=vmem, size = 0x9000, scoped, tag = 'internal scratch']
  %s0 = inlined_call_operand.hbm [shape: f32[2,8,32], index: 0, kind: input, shape index: {}]
  %s1 = inlined_call_operand.hbm [shape: f32[2,8,32], index: 1, kind: input, shape index: {}]
  %s2 = inlined_call_operand.hbm [shape: bf16[32,32], index: 2, kind: input, shape index: {}]
  %s3 = inlined_call_operand.hbm [shape: bf16[32,32], index: 3, kind: input, shape index: {}]
  %s4 = inlined_call_operand.hbm [shape: f32[1,32], index: 4, kind: input, shape index: {}]
  %s5 = inlined_call_operand.hbm [shape: f32[1,32], index: 5, kind: input, shape index: {}]
  %s6 = inlined_call_operand.hbm [shape: bf16[32,32], index: 6, kind: input, shape index: {}]
  %s7 = inlined_call_operand.hbm [shape: bf16[32,32], index: 7, kind: input, shape index: {}]
  %s8 = inlined_call_operand.hbm [shape: f32[1,32], index: 8, kind: input, shape index: {}]
  %s9 = inlined_call_operand.hbm [shape: f32[1,32], index: 9, kind: input, shape index: {}]
  %s10 = inlined_call_operand.hbm [shape: bf16[32,32], index: 10, kind: input, shape index: {}]
  %s11 = inlined_call_operand.hbm [shape: bf16[32,32], index: 11, kind: input, shape index: {}]
  %s12 = inlined_call_operand.hbm [shape: bf16[32,32], index: 12, kind: input, shape index: {}]
  %s13 = inlined_call_operand.hbm [shape: bf16[32,32], index: 13, kind: input, shape index: {}]
  %s14 = inlined_call_operand.hbm [shape: bf16[32,32], index: 14, kind: input, shape index: {}]
  %s15 = inlined_call_operand.hbm [shape: bf16[32,32], index: 15, kind: input, shape index: {}]
  %s16 = inlined_call_operand.hbm [shape: f32[1,32], index: 16, kind: input, shape index: {}]
  %s17 = inlined_call_operand.vmem [shape: bf16[32,32], index: 17, kind: input, shape index: {}]
  %s18 = inlined_call_operand.hbm [shape: bf16[32,32], index: 18, kind: input, shape index: {}]
  %s19 = inlined_call_operand.vmem [shape: f32[1,32], index: 19, kind: input, shape index: {}]
  %s20 = inlined_call_operand.hbm [shape: f32[32,32], index: 20, kind: input, shape index: {}]
  %s21 = inlined_call_operand.vmem [shape: f32[1,32], index: 21, kind: input, shape index: {}]
  %s22 = inlined_call_operand.vmem [shape: f32[1,32], index: 22, kind: input, shape index: {}]
  %s23 = inlined_call_operand.vmem [shape: f32[1,32], index: 23, kind: input, shape index: {}]
  %s24 = inlined_call_operand.vmem [shape: f32[1,32], index: 24, kind: input, shape index: {}]
  %s25 = inlined_call_operand.hbm [shape: f32[2,8,32], index: 25, kind: output, shape index: {0}]
  %s26 = inlined_call_operand.hbm [shape: f32[2,8,32], index: 26, kind: output, shape index: {1}]
  %27 = xla_tuple %s25, %s26
  %s28 = sld [smem:[#allocation0]]
  $region217: #{tpu_custom_call.1} parent=0
    _
  %s30 = ssub.s32 1, %s28
  %s31 = scalar_select 0, %s30, %s28
  $region1: #{tpu_custom_call.1} parent=0
    #allocation2 [shape = 'u8[8192]{0}', space=vmem, size = 0x2000, scoped, tag = 'input window, operand 0']
    #allocation3 [shape = 's32[2]{0}', space=sflag, size = 0x8, scoped, tag = 'scoped memory for tpu_custom_call.1']
    #allocation4 [shape = 's32[2]{0}', space=sflag, size = 0x8, scoped, tag = 'scoped memory for tpu_custom_call.1']
    #allocation5 [shape = 'u8[8192]{0}', space=vmem, size = 0x2000, scoped, tag = 'input window, operand 1']
    #allocation6 [shape = 's32[2]{0}', space=sflag, size = 0x8, scoped, tag = 'scoped memory for tpu_custom_call.1']
    #allocation7 [shape = 'u8[8192]{0}', space=vmem, size = 0x2000, scoped, tag = 'input window, operand 2, single buffered']
    #allocation8 [shape = 'u8[8192]{0}', space=vmem, size = 0x2000, scoped, tag = 'input window, operand 3, single buffered']
    #allocation9 [shape = 's32[1]{0}', space=sflag, size = 0x4, scoped, tag = 'scoped memory for tpu_custom_call.1']
    #allocation10 [shape = 'u8[512]{0}', space=vmem, size = 0x400, scoped, tag = 'input window, operand 4, single buffered']
    #allocation11 [shape = 'u8[512]{0}', space=vmem, size = 0x400, scoped, tag = 'input window, operand 5, single buffered']
    #allocation12 [shape = 's32[1]{0}', space=sflag, size = 0x4, scoped, tag = 'scoped memory for tpu_custom_call.1']
    #allocation13 [shape = 'u8[8192]{0}', space=vmem, size = 0x2000, scoped, tag = 'input window, operand 6, single buffered']
    #allocation14 [shape = 'u8[8192]{0}', space=vmem, size = 0x2000, scoped, tag = 'input window, operand 7, single buffered']
    #allocation15 [shape = 's32[1]{0}', space=sflag, size = 0x4, scoped, tag = 'scoped memory for tpu_custom_call.1']
    #allocation16 [shape = 'u8[512]{0}', space=vmem, size = 0x400, scoped, tag = 'input window, operand 8, single buffered']
    #allocation17 [shape = 'u8[512]{0}', space=vmem, size = 0x400, scoped, tag = 'input window, operand 9, single buffered']
    #allocation18 [shape = 's32[1]{0}', space=sflag, size = 0x4, scoped, tag = 'scoped memory for tpu_custom_call.1']
    #allocation19 [shape = 'u8[8192]{0}', space=vmem, size = 0x2000, scoped, tag = 'input window, operand 10, single buffered']
    #allocation20 [shape = 'u8[8192]{0}', space=vmem, size = 0x2000, scoped, tag = 'input window, operand 11, single buffered']
    #allocation21 [shape = 's32[1]{0}', space=sflag, size = 0x4, scoped, tag = 'scoped memory for tpu_custom_call.1']
    #allocation22 [shape = 'u8[8192]{0}', space=vmem, size = 0x2000, scoped, tag = 'input window, operand 12, single buffered']
    #allocation23 [shape = 'u8[8192]{0}', space=vmem, size = 0x2000, scoped, tag = 'input window, operand 13, single buffered']
    #allocation24 [shape = 's32[1]{0}', space=sflag, size = 0x4, scoped, tag = 'scoped memory for tpu_custom_call.1']
    #allocation25 [shape = 'u8[8192]{0}', space=vmem, size = 0x2000, scoped, tag = 'input window, operand 14, single buffered']
    #allocation26 [shape = 'u8[8192]{0}', space=vmem, size = 0x2000, scoped, tag = 'input window, operand 15, single buffered']
    #allocation27 [shape = 's32[1]{0}', space=sflag, size = 0x4, scoped, tag = 'scoped memory for tpu_custom_call.1']
    #allocation28 [shape = 'u8[512]{0}', space=vmem, size = 0x400, scoped, tag = 'input window, operand 16, single buffered']
    #allocation29 [shape = 'u8[8192]{0}', space=vmem, size = 0x2000, scoped, tag = 'input window, operand 18, single buffered']
    #allocation30 [shape = 's32[1]{0}', space=sflag, size = 0x4, scoped, tag = 'scoped memory for tpu_custom_call.1']
    #allocation31 [shape = 'u8[16384]{0}', space=vmem, size = 0x4000, scoped, tag = 'input window, operand 20, single buffered']
    #allocation32 [shape = 'u8[8192]{0}', space=vmem, size = 0x2000, scoped, tag = 'output window, operand 0']
    #allocation33 [shape = 'u8[8192]{0}', space=vmem, size = 0x2000, scoped, tag = 'output window, operand 1']
    #allocation34 [shape = 's32[2]{0}', space=sflag, size = 0x8, scoped, tag = 'scoped memory for tpu_custom_call.1']
    %32 = vsyncpa [#allocation3], 0
    %s33 = scalar_lea.sflag [#allocation3], 1
    %34 = vsyncpa %s33, 0
    %35 = vsyncpa [#allocation6], 0
    %s36 = scalar_lea.sflag [#allocation6], 1
    %37 = vsyncpa %s36, 0
    %38 = vsyncpa [#allocation9], 0
    %39 = vsyncpa [#allocation12], 0
    %40 = vsyncpa [#allocation15], 0
    %41 = vsyncpa [#allocation18], 0
    %42 = vsyncpa [#allocation21], 0
    %43 = vsyncpa [#allocation24], 0
    %44 = vsyncpa [#allocation27], 0
    %45 = vsyncpa [#allocation30], 0
    %46 = vsyncpa [#allocation4], 0
    %s47 = scalar_lea.sflag [#allocation4], 1
    %48 = vsyncpa %s47, 0
    %49 = vsyncpa [#allocation34], 0
    %s50 = scalar_lea.sflag [#allocation34], 1
    %51 = vsyncpa %s50, 0
    loop: start=0, step=1, limit=4
    $region2: #{tpu_custom_call.1} parent=1 // loop_pre_header
      _
    $region3: #{tpu_custom_call.1} parent=1 // loop_header
      %s53 = sphi 0, %s57
      %p54 = scmp.ge.s32.totalorder %s53, 4
      %s63 = sphi 0, %s65
      %s66 = sphi 0, %s63
      %s67 = sphi 0, %s66
      %s83 = sphi 0, %s67
      %s89 = sphi 0, %s91
      %s92 = sphi 0, %s89
      %s93 = sphi 0, %s92
      %s109 = sphi 0, %s93
      %s113 = sphi 0, %s113
      %s115 = sphi 0, %s113
      %s116 = sphi 0, %s115
      %s130 = sphi 0, %s116
      %s134 = sphi 0, %s134
      %s136 = sphi 0, %s134
      %s137 = sphi 0, %s136
      %s151 = sphi 0, %s137
      %s155 = sphi 0, %s155
      %s157 = sphi 0, %s155
      %s158 = sphi 0, %s157
      %s172 = sphi 0, %s158
      %s176 = sphi 0, %s176
      %s178 = sphi 0, %s176
      %s179 = sphi 0, %s178
      %s193 = sphi 0, %s179
      %s197 = sphi 0, %s197
      %s199 = sphi 0, %s197
      %s200 = sphi 0, %s199
      %s214 = sphi 0, %s200
      %s218 = sphi 0, %s218
      %s220 = sphi 0, %s218
      %s221 = sphi 0, %s220
      %s235 = sphi 0, %s221
      %s239 = sphi 0, %s239
      %s241 = sphi 0, %s239
      %s242 = sphi 0, %s241
      %s256 = sphi 0, %s242
      %s260 = sphi 0, %s260
      %s262 = sphi 0, %s260
      %s263 = sphi 0, %s262
      %s277 = sphi 0, %s263
      %s281 = sphi 0, %s281
      %s283 = sphi 0, %s281
      %s284 = sphi 0, %s283
      %s298 = sphi 0, %s284
      %s302 = sphi 0, %s302
      %s304 = sphi 0, %s302
      %s305 = sphi 0, %s304
      %s319 = sphi 0, %s305
      %s323 = sphi 0, %s323
      %s325 = sphi 0, %s323
      %s326 = sphi 0, %s325
      %s340 = sphi 0, %s326
      %s344 = sphi 0, %s344
      %s346 = sphi 0, %s344
      %s347 = sphi 0, %s346
      %s361 = sphi 0, %s347
      %s365 = sphi 0, %s365
      %s367 = sphi 0, %s365
      %s368 = sphi 0, %s367
      %s382 = sphi 0, %s368
      %s386 = sphi 0, %s386
      %s388 = sphi 0, %s386
      %s389 = sphi 0, %s388
      %s403 = sphi 0, %s389
      %s407 = sphi 0, %s407
      %s409 = sphi 0, %s407
      %s410 = sphi 0, %s409
      %s424 = sphi 0, %s410
      %s428 = sphi 0, %s428
      %s430 = sphi 0, %s428
      %s431 = sphi 0, %s430
      %s445 = sphi 0, %s431
      %s449 = sphi 0, %s449
      %s451 = sphi 0, %s449
      %s452 = sphi 0, %s451
      %s466 = sphi 0, %s452
      %s470 = sphi 0, %s470
      %s472 = sphi 0, %s470
      %s473 = sphi 0, %s472
      %s487 = sphi 0, %s473
      %s491 = sphi 0, %s491
      %s493 = sphi 0, %s491
      %s494 = sphi 0, %s493
      %s508 = sphi 0, %s494
      %s512 = sphi 0, %s512
      %s514 = sphi 0, %s512
      %s515 = sphi 0, %s514
      %s529 = sphi 0, %s515
      %s533 = sphi 0, %s533
      %s535 = sphi 0, %s533
      %s536 = sphi 0, %s535
      %s550 = sphi 0, %s536
      %s554 = sphi 0, %s554
      %s556 = sphi 0, %s554
      %s557 = sphi 0, %s556
      %s571 = sphi 0, %s557
      %s575 = sphi 0, %s575
      %s577 = sphi 0, %s575
      %s578 = sphi 0, %s577
      %s592 = sphi 0, %s578
      %s598 = sphi 0, %s600
      %s601 = sphi 0, %s598
      %s602 = sphi 0, %s601
      %s618 = sphi 0, %s602
      %s624 = sphi 0, %s626
      %s627 = sphi 0, %s624
      %s628 = sphi 0, %s627
      %s644 = sphi 0, %s628
    $region4: #{tpu_custom_call.1} parent=1 // loop_header_branch
      %56 = sbr.rel (%p54) target = $region8
    $region5: #{tpu_custom_call.1} parent=1 // loop_body
      %s58 = ssub.s32 %s53, 1
      %s59 = ssub.s32 %s53, 2
      %s60 = sadd.s32 %s53, 1
      %s61 = ssub.s32 %s53, %s60
      %p62 = scmp.eq.s32.totalorder %s61, 0
      %s64 = sadd.s32 %s63, 1
      %s65 = scalar_select %p62, %s63, %s64
      %p68 = pneg %p62
      %p69 = scmp.eq.s32.totalorder %s53, 1
      %p70 = por %p68, %p69
      %p71 = scmp.ne.s32.totalorder %s63, %s66
      %p72 = scmp.eq.s32.totalorder %s53, 0
      %p73 = por %p71, %p72
      %p74 = scmp.ne.s32.totalorder %s63, %s66
      %p75 = scmp.eq.s32.totalorder %s58, 1
      %p76 = por %p74, %p75
      %p77 = scmp.ne.s32.totalorder %s66, %s67
      %p78 = scmp.eq.s32.totalorder %s58, 0
      %p79 = por %p77, %p78
      %p80 = scmp.ne.s32.totalorder %s66, %s67
      %p81 = scmp.eq.s32.totalorder %s59, 1
      %p82 = por %p80, %p81
      %p84 = scmp.ne.s32.totalorder %s67, %s83
      %p85 = scmp.eq.s32.totalorder %s59, 0
      %p86 = por %p84, %p85
      %s87 = ssub.s32 %s53, %s60
      %p88 = scmp.eq.s32.totalorder %s87, 0
      %s90 = sadd.s32 %s89, 1
      %s91 = scalar_select %p88, %s89, %s90
      %p94 = pneg %p88
      %p95 = scmp.eq.s32.totalorder %s53, 1
      %p96 = por %p94, %p95
      %p97 = scmp.ne.s32.totalorder %s89, %s92
      %p98 = scmp.eq.s32.totalorder %s53, 0
      %p99 = por %p97, %p98
      %p100 = scmp.ne.s32.totalorder %s89, %s92
      %p101 = scmp.eq.s32.totalorder %s58, 1
      %p102 = por %p100, %p101
      %p103 = scmp.ne.s32.totalorder %s92, %s93
      %p104 = scmp.eq.s32.totalorder %s58, 0
      %p105 = por %p103, %p104
      %p106 = scmp.ne.s32.totalorder %s92, %s93
      %p107 = scmp.eq.s32.totalorder %s59, 1
      %p108 = por %p106, %p107
      %p110 = scmp.ne.s32.totalorder %s93, %s109
      %p111 = scmp.eq.s32.totalorder %s59, 0
      %p112 = por %p110, %p111
      %s114 = sadd.s32 %s113, 1
      %p117 = scmp.eq.s32.totalorder %s53, 1
      %p118 = scmp.ne.s32.totalorder %s113, %s115
      %p119 = scmp.eq.s32.totalorder %s53, 0
      %p120 = por %p118, %p119
      %p121 = scmp.ne.s32.totalorder %s113, %s115
      %p122 = scmp.eq.s32.totalorder %s58, 1
      %p123 = por %p121, %p122
      %p124 = scmp.ne.s32.totalorder %s115, %s116
      %p125 = scmp.eq.s32.totalorder %s58, 0
      %p126 = por %p124, %p125
      %p127 = scmp.ne.s32.totalorder %s115, %s116
      %p128 = scmp.eq.s32.totalorder %s59, 1
      %p129 = por %p127, %p128
      %p131 = scmp.ne.s32.totalorder %s116, %s130
      %p132 = scmp.eq.s32.totalorder %s59, 0
      %p133 = por %p131, %p132
      %s135 = sadd.s32 %s134, 1
      %p138 = scmp.eq.s32.totalorder %s53, 1
      %p139 = scmp.ne.s32.totalorder %s134, %s136
      %p140 = scmp.eq.s32.totalorder %s53, 0
      %p141 = por %p139, %p140
      %p142 = scmp.ne.s32.totalorder %s134, %s136
      %p143 = scmp.eq.s32.totalorder %s58, 1
      %p144 = por %p142, %p143
      %p145 = scmp.ne.s32.totalorder %s136, %s137
      %p146 = scmp.eq.s32.totalorder %s58, 0
      %p147 = por %p145, %p146
      %p148 = scmp.ne.s32.totalorder %s136, %s137
      %p149 = scmp.eq.s32.totalorder %s59, 1
      %p150 = por %p148, %p149
      %p152 = scmp.ne.s32.totalorder %s137, %s151
      %p153 = scmp.eq.s32.totalorder %s59, 0
      %p154 = por %p152, %p153
      %s156 = sadd.s32 %s155, 1
      %p159 = scmp.eq.s32.totalorder %s53, 1
      %p160 = scmp.ne.s32.totalorder %s155, %s157
      %p161 = scmp.eq.s32.totalorder %s53, 0
      %p162 = por %p160, %p161
      %p163 = scmp.ne.s32.totalorder %s155, %s157
      %p164 = scmp.eq.s32.totalorder %s58, 1
      %p165 = por %p163, %p164
      %p166 = scmp.ne.s32.totalorder %s157, %s158
      %p167 = scmp.eq.s32.totalorder %s58, 0
      %p168 = por %p166, %p167
      %p169 = scmp.ne.s32.totalorder %s157, %s158
      %p170 = scmp.eq.s32.totalorder %s59, 1
      %p171 = por %p169, %p170
      %p173 = scmp.ne.s32.totalorder %s158, %s172
      %p174 = scmp.eq.s32.totalorder %s59, 0
      %p175 = por %p173, %p174
      %s177 = sadd.s32 %s176, 1
      %p180 = scmp.eq.s32.totalorder %s53, 1
      %p181 = scmp.ne.s32.totalorder %s176, %s178
      %p182 = scmp.eq.s32.totalorder %s53, 0
      %p183 = por %p181, %p182
      %p184 = scmp.ne.s32.totalorder %s176, %s178
      %p185 = scmp.eq.s32.totalorder %s58, 1
      %p186 = por %p184, %p185
      %p187 = scmp.ne.s32.totalorder %s178, %s179
      %p188 = scmp.eq.s32.totalorder %s58, 0
      %p189 = por %p187, %p188
      %p190 = scmp.ne.s32.totalorder %s178, %s179
      %p191 = scmp.eq.s32.totalorder %s59, 1
      %p192 = por %p190, %p191
      %p194 = scmp.ne.s32.totalorder %s179, %s193
      %p195 = scmp.eq.s32.totalorder %s59, 0
      %p196 = por %p194, %p195
      %s198 = sadd.s32 %s197, 1
      %p201 = scmp.eq.s32.totalorder %s53, 1
      %p202 = scmp.ne.s32.totalorder %s197, %s199
      %p203 = scmp.eq.s32.totalorder %s53, 0
      %p204 = por %p202, %p203
      %p205 = scmp.ne.s32.totalorder %s197, %s199
      %p206 = scmp.eq.s32.totalorder %s58, 1
      %p207 = por %p205, %p206
      %p208 = scmp.ne.s32.totalorder %s199, %s200
      %p209 = scmp.eq.s32.totalorder %s58, 0
      %p210 = por %p208, %p209
      %p211 = scmp.ne.s32.totalorder %s199, %s200
      %p212 = scmp.eq.s32.totalorder %s59, 1
      %p213 = por %p211, %p212
      %p215 = scmp.ne.s32.totalorder %s200, %s214
      %p216 = scmp.eq.s32.totalorder %s59, 0
      %p217 = por %p215, %p216
      %s219 = sadd.s32 %s218, 1
      %p222 = scmp.eq.s32.totalorder %s53, 1
      %p223 = scmp.ne.s32.totalorder %s218, %s220
      %p224 = scmp.eq.s32.totalorder %s53, 0
      %p225 = por %p223, %p224
      %p226 = scmp.ne.s32.totalorder %s218, %s220
      %p227 = scmp.eq.s32.totalorder %s58, 1
      %p228 = por %p226, %p227
      %p229 = scmp.ne.s32.totalorder %s220, %s221
      %p230 = scmp.eq.s32.totalorder %s58, 0
      %p231 = por %p229, %p230
      %p232 = scmp.ne.s32.totalorder %s220, %s221
      %p233 = scmp.eq.s32.totalorder %s59, 1
      %p234 = por %p232, %p233
      %p236 = scmp.ne.s32.totalorder %s221, %s235
      %p237 = scmp.eq.s32.totalorder %s59, 0
      %p238 = por %p236, %p237
      %s240 = sadd.s32 %s239, 1
      %p243 = scmp.eq.s32.totalorder %s53, 1
      %p244 = scmp.ne.s32.totalorder %s239, %s241
      %p245 = scmp.eq.s32.totalorder %s53, 0
      %p246 = por %p244, %p245
      %p247 = scmp.ne.s32.totalorder %s239, %s241
      %p248 = scmp.eq.s32.totalorder %s58, 1
      %p249 = por %p247, %p248
      %p250 = scmp.ne.s32.totalorder %s241, %s242
      %p251 = scmp.eq.s32.totalorder %s58, 0
      %p252 = por %p250, %p251
      %p253 = scmp.ne.s32.totalorder %s241, %s242
      %p254 = scmp.eq.s32.totalorder %s59, 1
      %p255 = por %p253, %p254
      %p257 = scmp.ne.s32.totalorder %s242, %s256
      %p258 = scmp.eq.s32.totalorder %s59, 0
      %p259 = por %p257, %p258
      %s261 = sadd.s32 %s260, 1
      %p264 = scmp.eq.s32.totalorder %s53, 1
      %p265 = scmp.ne.s32.totalorder %s260, %s262
      %p266 = scmp.eq.s32.totalorder %s53, 0
      %p267 = por %p265, %p266
      %p268 = scmp.ne.s32.totalorder %s260, %s262
      %p269 = scmp.eq.s32.totalorder %s58, 1
      %p270 = por %p268, %p269
      %p271 = scmp.ne.s32.totalorder %s262, %s263
      %p272 = scmp.eq.s32.totalorder %s58, 0
      %p273 = por %p271, %p272
      %p274 = scmp.ne.s32.totalorder %s262, %s263
      %p275 = scmp.eq.s32.totalorder %s59, 1
      %p276 = por %p274, %p275
      %p278 = scmp.ne.s32.totalorder %s263, %s277
      %p279 = scmp.eq.s32.totalorder %s59, 0
      %p280 = por %p278, %p279
      %s282 = sadd.s32 %s281, 1
      %p285 = scmp.eq.s32.totalorder %s53, 1
      %p286 = scmp.ne.s32.totalorder %s281, %s283
      %p287 = scmp.eq.s32.totalorder %s53, 0
      %p288 = por %p286, %p287
      %p289 = scmp.ne.s32.totalorder %s281, %s283
      %p290 = scmp.eq.s32.totalorder %s58, 1
      %p291 = por %p289, %p290
      %p292 = scmp.ne.s32.totalorder %s283, %s284
      %p293 = scmp.eq.s32.totalorder %s58, 0
      %p294 = por %p292, %p293
      %p295 = scmp.ne.s32.totalorder %s283, %s284
      %p296 = scmp.eq.s32.totalorder %s59, 1
      %p297 = por %p295, %p296
      %p299 = scmp.ne.s32.totalorder %s284, %s298
      %p300 = scmp.eq.s32.totalorder %s59, 0
      %p301 = por %p299, %p300
      %s303 = sadd.s32 %s302, 1
      %p306 = scmp.eq.s32.totalorder %s53, 1
      %p307 = scmp.ne.s32.totalorder %s302, %s304
      %p308 = scmp.eq.s32.totalorder %s53, 0
      %p309 = por %p307, %p308
      %p310 = scmp.ne.s32.totalorder %s302, %s304
      %p311 = scmp.eq.s32.totalorder %s58, 1
      %p312 = por %p310, %p311
      %p313 = scmp.ne.s32.totalorder %s304, %s305
      %p314 = scmp.eq.s32.totalorder %s58, 0
      %p315 = por %p313, %p314
      %p316 = scmp.ne.s32.totalorder %s304, %s305
      %p317 = scmp.eq.s32.totalorder %s59, 1
      %p318 = por %p316, %p317
      %p320 = scmp.ne.s32.totalorder %s305, %s319
      %p321 = scmp.eq.s32.totalorder %s59, 0
      %p322 = por %p320, %p321
      %s324 = sadd.s32 %s323, 1
      %p327 = scmp.eq.s32.totalorder %s53, 1
      %p328 = scmp.ne.s32.totalorder %s323, %s325
      %p329 = scmp.eq.s32.totalorder %s53, 0
      %p330 = por %p328, %p329
      %p331 = scmp.ne.s32.totalorder %s323, %s325
      %p332 = scmp.eq.s32.totalorder %s58, 1
      %p333 = por %p331, %p332
      %p334 = scmp.ne.s32.totalorder %s325, %s326
      %p335 = scmp.eq.s32.totalorder %s58, 0
      %p336 = por %p334, %p335
      %p337 = scmp.ne.s32.totalorder %s325, %s326
      %p338 = scmp.eq.s32.totalorder %s59, 1
      %p339 = por %p337, %p338
      %p341 = scmp.ne.s32.totalorder %s326, %s340
      %p342 = scmp.eq.s32.totalorder %s59, 0
      %p343 = por %p341, %p342
      %s345 = sadd.s32 %s344, 1
      %p348 = scmp.eq.s32.totalorder %s53, 1
      %p349 = scmp.ne.s32.totalorder %s344, %s346
      %p350 = scmp.eq.s32.totalorder %s53, 0
      %p351 = por %p349, %p350
      %p352 = scmp.ne.s32.totalorder %s344, %s346
      %p353 = scmp.eq.s32.totalorder %s58, 1
      %p354 = por %p352, %p353
      %p355 = scmp.ne.s32.totalorder %s346, %s347
      %p356 = scmp.eq.s32.totalorder %s58, 0
      %p357 = por %p355, %p356
      %p358 = scmp.ne.s32.totalorder %s346, %s347
      %p359 = scmp.eq.s32.totalorder %s59, 1
      %p360 = por %p358, %p359
      %p362 = scmp.ne.s32.totalorder %s347, %s361
      %p363 = scmp.eq.s32.totalorder %s59, 0
      %p364 = por %p362, %p363
      %s366 = sadd.s32 %s365, 1
      %p369 = scmp.eq.s32.totalorder %s53, 1
      %p370 = scmp.ne.s32.totalorder %s365, %s367
      %p371 = scmp.eq.s32.totalorder %s53, 0
      %p372 = por %p370, %p371
      %p373 = scmp.ne.s32.totalorder %s365, %s367
      %p374 = scmp.eq.s32.totalorder %s58, 1
      %p375 = por %p373, %p374
      %p376 = scmp.ne.s32.totalorder %s367, %s368
      %p377 = scmp.eq.s32.totalorder %s58, 0
      %p378 = por %p376, %p377
      %p379 = scmp.ne.s32.totalorder %s367, %s368
      %p380 = scmp.eq.s32.totalorder %s59, 1
      %p381 = por %p379, %p380
      %p383 = scmp.ne.s32.totalorder %s368, %s382
      %p384 = scmp.eq.s32.totalorder %s59, 0
      %p385 = por %p383, %p384
      %s387 = sadd.s32 %s386, 1
      %p390 = scmp.eq.s32.totalorder %s53, 1
      %p391 = scmp.ne.s32.totalorder %s386, %s388
      %p392 = scmp.eq.s32.totalorder %s53, 0
      %p393 = por %p391, %p392
      %p394 = scmp.ne.s32.totalorder %s386, %s388
      %p395 = scmp.eq.s32.totalorder %s58, 1
      %p396 = por %p394, %p395
      %p397 = scmp.ne.s32.totalorder %s388, %s389
      %p398 = scmp.eq.s32.totalorder %s58, 0
      %p399 = por %p397, %p398
      %p400 = scmp.ne.s32.totalorder %s388, %s389
      %p401 = scmp.eq.s32.totalorder %s59, 1
      %p402 = por %p400, %p401
      %p404 = scmp.ne.s32.totalorder %s389, %s403
      %p405 = scmp.eq.s32.totalorder %s59, 0
      %p406 = por %p404, %p405
      %s408 = sadd.s32 %s407, 1
      %p411 = scmp.eq.s32.totalorder %s53, 1
      %p412 = scmp.ne.s32.totalorder %s407, %s409
      %p413 = scmp.eq.s32.totalorder %s53, 0
      %p414 = por %p412, %p413
      %p415 = scmp.ne.s32.totalorder %s407, %s409
      %p416 = scmp.eq.s32.totalorder %s58, 1
      %p417 = por %p415, %p416
      %p418 = scmp.ne.s32.totalorder %s409, %s410
      %p419 = scmp.eq.s32.totalorder %s58, 0
      %p420 = por %p418, %p419
      %p421 = scmp.ne.s32.totalorder %s409, %s410
      %p422 = scmp.eq.s32.totalorder %s59, 1
      %p423 = por %p421, %p422
      %p425 = scmp.ne.s32.totalorder %s410, %s424
      %p426 = scmp.eq.s32.totalorder %s59, 0
      %p427 = por %p425, %p426
      %s429 = sadd.s32 %s428, 1
      %p432 = scmp.eq.s32.totalorder %s53, 1
      %p433 = scmp.ne.s32.totalorder %s428, %s430
      %p434 = scmp.eq.s32.totalorder %s53, 0
      %p435 = por %p433, %p434
      %p436 = scmp.ne.s32.totalorder %s428, %s430
      %p437 = scmp.eq.s32.totalorder %s58, 1
      %p438 = por %p436, %p437
      %p439 = scmp.ne.s32.totalorder %s430, %s431
      %p440 = scmp.eq.s32.totalorder %s58, 0
      %p441 = por %p439, %p440
      %p442 = scmp.ne.s32.totalorder %s430, %s431
      %p443 = scmp.eq.s32.totalorder %s59, 1
      %p444 = por %p442, %p443
      %p446 = scmp.ne.s32.totalorder %s431, %s445
      %p447 = scmp.eq.s32.totalorder %s59, 0
      %p448 = por %p446, %p447
      %s450 = sadd.s32 %s449, 1
      %p453 = scmp.eq.s32.totalorder %s53, 1
      %p454 = scmp.ne.s32.totalorder %s449, %s451
      %p455 = scmp.eq.s32.totalorder %s53, 0
      %p456 = por %p454, %p455
      %p457 = scmp.ne.s32.totalorder %s449, %s451
      %p458 = scmp.eq.s32.totalorder %s58, 1
      %p459 = por %p457, %p458
      %p460 = scmp.ne.s32.totalorder %s451, %s452
      %p461 = scmp.eq.s32.totalorder %s58, 0
      %p462 = por %p460, %p461
      %p463 = scmp.ne.s32.totalorder %s451, %s452
      %p464 = scmp.eq.s32.totalorder %s59, 1
      %p465 = por %p463, %p464
      %p467 = scmp.ne.s32.totalorder %s452, %s466
      %p468 = scmp.eq.s32.totalorder %s59, 0
      %p469 = por %p467, %p468
      %s471 = sadd.s32 %s470, 1
      %p474 = scmp.eq.s32.totalorder %s53, 1
      %p475 = scmp.ne.s32.totalorder %s470, %s472
      %p476 = scmp.eq.s32.totalorder %s53, 0
      %p477 = por %p475, %p476
      %p478 = scmp.ne.s32.totalorder %s470, %s472
      %p479 = scmp.eq.s32.totalorder %s58, 1
      %p480 = por %p478, %p479
      %p481 = scmp.ne.s32.totalorder %s472, %s473
      %p482 = scmp.eq.s32.totalorder %s58, 0
      %p483 = por %p481, %p482
      %p484 = scmp.ne.s32.totalorder %s472, %s473
      %p485 = scmp.eq.s32.totalorder %s59, 1
      %p486 = por %p484, %p485
      %p488 = scmp.ne.s32.totalorder %s473, %s487
      %p489 = scmp.eq.s32.totalorder %s59, 0
      %p490 = por %p488, %p489
      %s492 = sadd.s32 %s491, 1
      %p495 = scmp.eq.s32.totalorder %s53, 1
      %p496 = scmp.ne.s32.totalorder %s491, %s493
      %p497 = scmp.eq.s32.totalorder %s53, 0
      %p498 = por %p496, %p497
      %p499 = scmp.ne.s32.totalorder %s491, %s493
      %p500 = scmp.eq.s32.totalorder %s58, 1
      %p501 = por %p499, %p500
      %p502 = scmp.ne.s32.totalorder %s493, %s494
      %p503 = scmp.eq.s32.totalorder %s58, 0
      %p504 = por %p502, %p503
      %p505 = scmp.ne.s32.totalorder %s493, %s494
      %p506 = scmp.eq.s32.totalorder %s59, 1
      %p507 = por %p505, %p506
      %p509 = scmp.ne.s32.totalorder %s494, %s508
      %p510 = scmp.eq.s32.totalorder %s59, 0
      %p511 = por %p509, %p510
      %s513 = sadd.s32 %s512, 1
      %p516 = scmp.eq.s32.totalorder %s53, 1
      %p517 = scmp.ne.s32.totalorder %s512, %s514
      %p518 = scmp.eq.s32.totalorder %s53, 0
      %p519 = por %p517, %p518
      %p520 = scmp.ne.s32.totalorder %s512, %s514
      %p521 = scmp.eq.s32.totalorder %s58, 1
      %p522 = por %p520, %p521
      %p523 = scmp.ne.s32.totalorder %s514, %s515
      %p524 = scmp.eq.s32.totalorder %s58, 0
      %p525 = por %p523, %p524
      %p526 = scmp.ne.s32.totalorder %s514, %s515
      %p527 = scmp.eq.s32.totalorder %s59, 1
      %p528 = por %p526, %p527
      %p530 = scmp.ne.s32.totalorder %s515, %s529
      %p531 = scmp.eq.s32.totalorder %s59, 0
      %p532 = por %p530, %p531
      %s534 = sadd.s32 %s533, 1
      %p537 = scmp.eq.s32.totalorder %s53, 1
      %p538 = scmp.ne.s32.totalorder %s533, %s535
      %p539 = scmp.eq.s32.totalorder %s53, 0
      %p540 = por %p538, %p539
      %p541 = scmp.ne.s32.totalorder %s533, %s535
      %p542 = scmp.eq.s32.totalorder %s58, 1
      %p543 = por %p541, %p542
      %p544 = scmp.ne.s32.totalorder %s535, %s536
      %p545 = scmp.eq.s32.totalorder %s58, 0
      %p546 = por %p544, %p545
      %p547 = scmp.ne.s32.totalorder %s535, %s536
      %p548 = scmp.eq.s32.totalorder %s59, 1
      %p549 = por %p547, %p548
      %p551 = scmp.ne.s32.totalorder %s536, %s550
      %p552 = scmp.eq.s32.totalorder %s59, 0
      %p553 = por %p551, %p552
      %s555 = sadd.s32 %s554, 1
      %p558 = scmp.eq.s32.totalorder %s53, 1
      %p559 = scmp.ne.s32.totalorder %s554, %s556
      %p560 = scmp.eq.s32.totalorder %s53, 0
      %p561 = por %p559, %p560
      %p562 = scmp.ne.s32.totalorder %s554, %s556
      %p563 = scmp.eq.s32.totalorder %s58, 1
      %p564 = por %p562, %p563
      %p565 = scmp.ne.s32.totalorder %s556, %s557
      %p566 = scmp.eq.s32.totalorder %s58, 0
      %p567 = por %p565, %p566
      %p568 = scmp.ne.s32.totalorder %s556, %s557
      %p569 = scmp.eq.s32.totalorder %s59, 1
      %p570 = por %p568, %p569
      %p572 = scmp.ne.s32.totalorder %s557, %s571
      %p573 = scmp.eq.s32.totalorder %s59, 0
      %p574 = por %p572, %p573
      %s576 = sadd.s32 %s575, 1
      %p579 = scmp.eq.s32.totalorder %s53, 1
      %p580 = scmp.ne.s32.totalorder %s575, %s577
      %p581 = scmp.eq.s32.totalorder %s53, 0
      %p582 = por %p580, %p581
      %p583 = scmp.ne.s32.totalorder %s575, %s577
      %p584 = scmp.eq.s32.totalorder %s58, 1
      %p585 = por %p583, %p584
      %p586 = scmp.ne.s32.totalorder %s577, %s578
      %p587 = scmp.eq.s32.totalorder %s58, 0
      %p588 = por %p586, %p587
      %p589 = scmp.ne.s32.totalorder %s577, %s578
      %p590 = scmp.eq.s32.totalorder %s59, 1
      %p591 = por %p589, %p590
      %p593 = scmp.ne.s32.totalorder %s578, %s592
      %p594 = scmp.eq.s32.totalorder %s59, 0
      %p595 = por %p593, %p594
      %s596 = ssub.s32 %s53, %s60
      %p597 = scmp.eq.s32.totalorder %s596, 0
      %s599 = sadd.s32 %s598, 1
      %s600 = scalar_select %p597, %s598, %s599
      %p603 = pneg %p597
      %p604 = scmp.eq.s32.totalorder %s53, 1
      %p605 = por %p603, %p604
      %p606 = scmp.ne.s32.totalorder %s598, %s601
      %p607 = scmp.eq.s32.totalorder %s53, 0
      %p608 = por %p606, %p607
      %p609 = scmp.ne.s32.totalorder %s598, %s601
      %p610 = scmp.eq.s32.totalorder %s58, 1
      %p611 = por %p609, %p610
      %p612 = scmp.ne.s32.totalorder %s601, %s602
      %p613 = scmp.eq.s32.totalorder %s58, 0
      %p614 = por %p612, %p613
      %p615 = scmp.ne.s32.totalorder %s601, %s602
      %p616 = scmp.eq.s32.totalorder %s59, 1
      %p617 = por %p615, %p616
      %p619 = scmp.ne.s32.totalorder %s602, %s618
      %p620 = scmp.eq.s32.totalorder %s59, 0
      %p621 = por %p619, %p620
      %s622 = ssub.s32 %s53, %s60
      %p623 = scmp.eq.s32.totalorder %s622, 0
      %s625 = sadd.s32 %s624, 1
      %s626 = scalar_select %p623, %s624, %s625
      %p629 = pneg %p623
      %p630 = scmp.eq.s32.totalorder %s53, 1
      %p631 = por %p629, %p630
      %p632 = scmp.ne.s32.totalorder %s624, %s627
      %p633 = scmp.eq.s32.totalorder %s53, 0
      %p634 = por %p632, %p633
      %p635 = scmp.ne.s32.totalorder %s624, %s627
      %p636 = scmp.eq.s32.totalorder %s58, 1
      %p637 = por %p635, %p636
      %p638 = scmp.ne.s32.totalorder %s627, %s628
      %p639 = scmp.eq.s32.totalorder %s58, 0
      %p640 = por %p638, %p639
      %p641 = scmp.ne.s32.totalorder %s627, %s628
      %p642 = scmp.eq.s32.totalorder %s59, 1
      %p643 = por %p641, %p642
      %p645 = scmp.ne.s32.totalorder %s628, %s644
      %p646 = scmp.eq.s32.totalorder %s59, 0
      %p647 = por %p645, %p646
      %p648 = scmp.le.s32.totalorder 1, %s53
      %p649 = scmp.lt.s32.totalorder %s53, 3
      %p650 = pnand %p648, %p649
      %p651 = pneg %p650
      // Predicated region
      $region9: #{tpu_custom_call.1} parent=5 // pred_check
        _
      $region10: #{tpu_custom_call.1} parent=5 // pred_check_branch
        %653 = sbr.rel (%p650) target = $region12
      $region11: #{tpu_custom_call.1} parent=5 // pred_region
        %s654 = ssub.s32 %s53, 1
        // Predicated region
        $region13: #{tpu_custom_call.1} parent=11 // pred_check
          %p655 = pneg %p126
        $region14: #{tpu_custom_call.1} parent=11 // pred_check_branch
          %657 = sbr.rel (%p655) target = $region16
        $region15: #{tpu_custom_call.1} parent=11 // pred_region
          %659 = vsyncadd [#allocation6], 0
          %s660 = sshll.u32 %s2, 4
          %s661 = int_to_ptr.hbm [resolvable:$true] %s660
          %s662 = sshll.u32 [#allocation7], 4
          %s663 = int_to_ptr.vmem [resolvable:$true] %s662
          %668 = dma.hbm_to_vmem [thread:$0]  %s661, 256, %s663, [#allocation6], 64, 64, 4
        $region16: #{tpu_custom_call.1} parent=11 // pred_fallthru
          _
        // Predicated region
        $region17: #{tpu_custom_call.1} parent=11 // pred_check
          %p669 = pneg %p147
        $region18: #{tpu_custom_call.1} parent=11 // pred_check_branch
          %671 = sbr.rel (%p669) target = $region20
        $region19: #{tpu_custom_call.1} parent=11 // pred_region
          %673 = vsyncadd [#allocation9], 0
          %s674 = sshll.u32 %s3, 4
          %s675 = int_to_ptr.hbm [resolvable:$true] %s674
          %s676 = sshll.u32 [#allocation8], 4
          %s677 = int_to_ptr.vmem [resolvable:$true] %s676
          %682 = dma.hbm_to_vmem [thread:$0]  %s675, 256, %s677, [#allocation9], 64, 64, 4
        $region20: #{tpu_custom_call.1} parent=11 // pred_fallthru
          _
        // Predicated region
        $region21: #{tpu_custom_call.1} parent=11 // pred_check
          %p683 = pneg %p168
        $region22: #{tpu_custom_call.1} parent=11 // pred_check_branch
          %685 = sbr.rel (%p683) target = $region24
        $region23: #{tpu_custom_call.1} parent=11 // pred_region
          %687 = vsyncadd [#allocation9], 0
          %s689 = sshll.u32 %s4, 4
          %s690 = int_to_ptr.hbm [resolvable:$true] %s689
          %s691 = sshll.u32 [#allocation10], 4
          %s692 = int_to_ptr.vmem [resolvable:$true] %s691
          %694 = dma.hbm_to_vmem [thread:$0]  %s690, 16, %s692, [#allocation9]
        $region24: #{tpu_custom_call.1} parent=11 // pred_fallthru
          _
        // Predicated region
        $region25: #{tpu_custom_call.1} parent=11 // pred_check
          %p695 = pneg %p189
        $region26: #{tpu_custom_call.1} parent=11 // pred_check_branch
          %697 = sbr.rel (%p695) target = $region28
        $region27: #{tpu_custom_call.1} parent=11 // pred_region
          %699 = vsyncadd [#allocation12], 0
          %s701 = sshll.u32 %s5, 4
          %s702 = int_to_ptr.hbm [resolvable:$true] %s701
          %s703 = sshll.u32 [#allocation11], 4
          %s704 = int_to_ptr.vmem [resolvable:$true] %s703
          %706 = dma.hbm_to_vmem [thread:$0]  %s702, 16, %s704, [#allocation12]
        $region28: #{tpu_custom_call.1} parent=11 // pred_fallthru
          _
        // Predicated region
        $region29: #{tpu_custom_call.1} parent=11 // pred_check
          %p707 = pneg %p210
        $region30: #{tpu_custom_call.1} parent=11 // pred_check_branch
          %709 = sbr.rel (%p707) target = $region32
        $region31: #{tpu_custom_call.1} parent=11 // pred_region
          %711 = vsyncadd [#allocation12], 0
          %s712 = sshll.u32 %s6, 4
          %s713 = int_to_ptr.hbm [resolvable:$true] %s712
          %s714 = sshll.u32 [#allocation13], 4
          %s715 = int_to_ptr.vmem [resolvable:$true] %s714
          %720 = dma.hbm_to_vmem [thread:$0]  %s713, 256, %s715, [#allocation12], 64, 64, 4
        $region32: #{tpu_custom_call.1} parent=11 // pred_fallthru
          _
        // Predicated region
        $region33: #{tpu_custom_call.1} parent=11 // pred_check
          %p721 = pneg %p231
        $region34: #{tpu_custom_call.1} parent=11 // pred_check_branch
          %723 = sbr.rel (%p721) target = $region36
        $region35: #{tpu_custom_call.1} parent=11 // pred_region
          %725 = vsyncadd [#allocation15], 0
          %s726 = sshll.u32 %s7, 4
          %s727 = int_to_ptr.hbm [resolvable:$true] %s726
          %s728 = sshll.u32 [#allocation14], 4
          %s729 = int_to_ptr.vmem [resolvable:$true] %s728
          %734 = dma.hbm_to_vmem [thread:$0]  %s727, 256, %s729, [#allocation15], 64, 64, 4
        $region36: #{tpu_custom_call.1} parent=11 // pred_fallthru
          _
        // Predicated region
        $region37: #{tpu_custom_call.1} parent=11 // pred_check
          %p735 = pneg %p252
        $region38: #{tpu_custom_call.1} parent=11 // pred_check_branch
          %737 = sbr.rel (%p735) target = $region40
        $region39: #{tpu_custom_call.1} parent=11 // pred_region
          %739 = vsyncadd [#allocation15], 0
          %s741 = sshll.u32 %s8, 4
          %s742 = int_to_ptr.hbm [resolvable:$true] %s741
          %s743 = sshll.u32 [#allocation16], 4
          %s744 = int_to_ptr.vmem [resolvable:$true] %s743
          %746 = dma.hbm_to_vmem [thread:$0]  %s742, 16, %s744, [#allocation15]
        $region40: #{tpu_custom_call.1} parent=11 // pred_fallthru
          _
        // Predicated region
        $region41: #{tpu_custom_call.1} parent=11 // pred_check
          %p747 = pneg %p273
        $region42: #{tpu_custom_call.1} parent=11 // pred_check_branch
          %749 = sbr.rel (%p747) target = $region44
        $region43: #{tpu_custom_call.1} parent=11 // pred_region
          %751 = vsyncadd [#allocation18], 0
          %s753 = sshll.u32 %s9, 4
          %s754 = int_to_ptr.hbm [resolvable:$true] %s753
          %s755 = sshll.u32 [#allocation17], 4
          %s756 = int_to_ptr.vmem [resolvable:$true] %s755
          %758 = dma.hbm_to_vmem [thread:$0]  %s754, 16, %s756, [#allocation18]
        $region44: #{tpu_custom_call.1} parent=11 // pred_fallthru
          _
        // Predicated region
        $region45: #{tpu_custom_call.1} parent=11 // pred_check
          %p759 = pneg %p294
        $region46: #{tpu_custom_call.1} parent=11 // pred_check_branch
          %761 = sbr.rel (%p759) target = $region48
        $region47: #{tpu_custom_call.1} parent=11 // pred_region
          %763 = vsyncadd [#allocation18], 0
          %s764 = sshll.u32 %s10, 4
          %s765 = int_to_ptr.hbm [resolvable:$true] %s764
          %s766 = sshll.u32 [#allocation19], 4
          %s767 = int_to_ptr.vmem [resolvable:$true] %s766
          %772 = dma.hbm_to_vmem [thread:$0]  %s765, 256, %s767, [#allocation18], 64, 64, 4
        $region48: #{tpu_custom_call.1} parent=11 // pred_fallthru
          _
        // Predicated region
        $region49: #{tpu_custom_call.1} parent=11 // pred_check
          %p773 = pneg %p315
        $region50: #{tpu_custom_call.1} parent=11 // pred_check_branch
          %775 = sbr.rel (%p773) target = $region52
        $region51: #{tpu_custom_call.1} parent=11 // pred_region
          %777 = vsyncadd [#allocation21], 0
          %s778 = sshll.u32 %s11, 4
          %s779 = int_to_ptr.hbm [resolvable:$true] %s778
          %s780 = sshll.u32 [#allocation20], 4
          %s781 = int_to_ptr.vmem [resolvable:$true] %s780
          %786 = dma.hbm_to_vmem [thread:$0]  %s779, 256, %s781, [#allocation21], 64, 64, 4
        $region52: #{tpu_custom_call.1} parent=11 // pred_fallthru
          _
        // Predicated region
        $region53: #{tpu_custom_call.1} parent=11 // pred_check
          %p787 = pneg %p336
        $region54: #{tpu_custom_call.1} parent=11 // pred_check_branch
          %789 = sbr.rel (%p787) target = $region56
        $region55: #{tpu_custom_call.1} parent=11 // pred_region
          %791 = vsyncadd [#allocation21], 0
          %s792 = sshll.u32 %s12, 4
          %s793 = int_to_ptr.hbm [resolvable:$true] %s792
          %s794 = sshll.u32 [#allocation22], 4
          %s795 = int_to_ptr.vmem [resolvable:$true] %s794
          %800 = dma.hbm_to_vmem [thread:$0]  %s793, 256, %s795, [#allocation21], 64, 64, 4
        $region56: #{tpu_custom_call.1} parent=11 // pred_fallthru
          _
        // Predicated region
        $region57: #{tpu_custom_call.1} parent=11 // pred_check
          %p801 = pneg %p357
        $region58: #{tpu_custom_call.1} parent=11 // pred_check_branch
          %803 = sbr.rel (%p801) target = $region60
        $region59: #{tpu_custom_call.1} parent=11 // pred_region
          %805 = vsyncadd [#allocation24], 0
          %s806 = sshll.u32 %s13, 4
          %s807 = int_to_ptr.hbm [resolvable:$true] %s806
          %s808 = sshll.u32 [#allocation23], 4
          %s809 = int_to_ptr.vmem [resolvable:$true] %s808
          %814 = dma.hbm_to_vmem [thread:$0]  %s807, 256, %s809, [#allocation24], 64, 64, 4
        $region60: #{tpu_custom_call.1} parent=11 // pred_fallthru
          _
        // Predicated region
        $region61: #{tpu_custom_call.1} parent=11 // pred_check
          %p815 = pneg %p378
        $region62: #{tpu_custom_call.1} parent=11 // pred_check_branch
          %817 = sbr.rel (%p815) target = $region64
        $region63: #{tpu_custom_call.1} parent=11 // pred_region
          %819 = vsyncadd [#allocation24], 0
          %s820 = sshll.u32 %s14, 4
          %s821 = int_to_ptr.hbm [resolvable:$true] %s820
          %s822 = sshll.u32 [#allocation25], 4
          %s823 = int_to_ptr.vmem [resolvable:$true] %s822
          %828 = dma.hbm_to_vmem [thread:$0]  %s821, 256, %s823, [#allocation24], 64, 64, 4
        $region64: #{tpu_custom_call.1} parent=11 // pred_fallthru
          _
        // Predicated region
        $region65: #{tpu_custom_call.1} parent=11 // pred_check
          %p829 = pneg %p399
        $region66: #{tpu_custom_call.1} parent=11 // pred_check_branch
          %831 = sbr.rel (%p829) target = $region68
        $region67: #{tpu_custom_call.1} parent=11 // pred_region
          %833 = vsyncadd [#allocation27], 0
          %s834 = sshll.u32 %s15, 4
          %s835 = int_to_ptr.hbm [resolvable:$true] %s834
          %s836 = sshll.u32 [#allocation26], 4
          %s837 = int_to_ptr.vmem [resolvable:$true] %s836
          %842 = dma.hbm_to_vmem [thread:$0]  %s835, 256, %s837, [#allocation27], 64, 64, 4
        $region68: #{tpu_custom_call.1} parent=11 // pred_fallthru
          _
        // Predicated region
        $region69: #{tpu_custom_call.1} parent=11 // pred_check
          %p843 = pneg %p420
        $region70: #{tpu_custom_call.1} parent=11 // pred_check_branch
          %845 = sbr.rel (%p843) target = $region72
        $region71: #{tpu_custom_call.1} parent=11 // pred_region
          %847 = vsyncadd [#allocation27], 0
          %s849 = sshll.u32 %s16, 4
          %s850 = int_to_ptr.hbm [resolvable:$true] %s849
          %s851 = sshll.u32 [#allocation28], 4
          %s852 = int_to_ptr.vmem [resolvable:$true] %s851
          %854 = dma.hbm_to_vmem [thread:$0]  %s850, 16, %s852, [#allocation27]
        $region72: #{tpu_custom_call.1} parent=11 // pred_fallthru
          _
        // Predicated region
        $region73: #{tpu_custom_call.1} parent=11 // pred_check
          %p855 = pneg %p441
        $region74: #{tpu_custom_call.1} parent=11 // pred_check_branch
          %857 = sbr.rel (%p855) target = $region76
        $region75: #{tpu_custom_call.1} parent=11 // pred_region
          _
        $region76: #{tpu_custom_call.1} parent=11 // pred_fallthru
          _
        // Predicated region
        $region77: #{tpu_custom_call.1} parent=11 // pred_check
          %p858 = pneg %p462
        $region78: #{tpu_custom_call.1} parent=11 // pred_check_branch
          %860 = sbr.rel (%p858) target = $region80
        $region79: #{tpu_custom_call.1} parent=11 // pred_region
          %862 = vsyncadd [#allocation30], 0
          %s863 = sshll.u32 %s18, 4
          %s864 = int_to_ptr.hbm [resolvable:$true] %s863
          %s865 = sshll.u32 [#allocation29], 4
          %s866 = int_to_ptr.vmem [resolvable:$true] %s865
          %871 = dma.hbm_to_vmem [thread:$0]  %s864, 256, %s866, [#allocation30], 64, 64, 4
        $region80: #{tpu_custom_call.1} parent=11 // pred_fallthru
          _
        // Predicated region
        $region81: #{tpu_custom_call.1} parent=11 // pred_check
          %p872 = pneg %p483
        $region82: #{tpu_custom_call.1} parent=11 // pred_check_branch
          %874 = sbr.rel (%p872) target = $region84
        $region83: #{tpu_custom_call.1} parent=11 // pred_region
          _
        $region84: #{tpu_custom_call.1} parent=11 // pred_fallthru
          _
        // Predicated region
        $region85: #{tpu_custom_call.1} parent=11 // pred_check
          %p875 = pneg %p504
        $region86: #{tpu_custom_call.1} parent=11 // pred_check_branch
          %877 = sbr.rel (%p875) target = $region88
        $region87: #{tpu_custom_call.1} parent=11 // pred_region
          %879 = vsyncadd [#allocation30], 0
          %s880 = sshll.u32 %s20, 4
          %s881 = int_to_ptr.hbm [resolvable:$true] %s880
          %s882 = sshll.u32 [#allocation31], 4
          %s883 = int_to_ptr.vmem [resolvable:$true] %s882
          %888 = dma.hbm_to_vmem [thread:$0]  %s881, 512, %s883, [#allocation30], 128, 128, 8
        $region88: #{tpu_custom_call.1} parent=11 // pred_fallthru
          _
        // Predicated region
        $region89: #{tpu_custom_call.1} parent=11 // pred_check
          %p889 = pneg %p525
        $region90: #{tpu_custom_call.1} parent=11 // pred_check_branch
          %891 = sbr.rel (%p889) target = $region92
        $region91: #{tpu_custom_call.1} parent=11 // pred_region
          _
        $region92: #{tpu_custom_call.1} parent=11 // pred_fallthru
          _
        // Predicated region
        $region93: #{tpu_custom_call.1} parent=11 // pred_check
          %p892 = pneg %p546
        $region94: #{tpu_custom_call.1} parent=11 // pred_check_branch
          %894 = sbr.rel (%p892) target = $region96
        $region95: #{tpu_custom_call.1} parent=11 // pred_region
          _
        $region96: #{tpu_custom_call.1} parent=11 // pred_fallthru
          _
        // Predicated region
        $region97: #{tpu_custom_call.1} parent=11 // pred_check
          %p895 = pneg %p567
        $region98: #{tpu_custom_call.1} parent=11 // pred_check_branch
          %897 = sbr.rel (%p895) target = $region100
        $region99: #{tpu_custom_call.1} parent=11 // pred_region
          _
        $region100: #{tpu_custom_call.1} parent=11 // pred_fallthru
          _
        // Predicated region
        $region101: #{tpu_custom_call.1} parent=11 // pred_check
          %p898 = pneg %p588
        $region102: #{tpu_custom_call.1} parent=11 // pred_check_branch
          %900 = sbr.rel (%p898) target = $region104
        $region103: #{tpu_custom_call.1} parent=11 // pred_region
          _
        $region104: #{tpu_custom_call.1} parent=11 // pred_fallthru
          _
      $region12: #{tpu_custom_call.1} parent=5 // pred_fallthru
        _
      %p901 = scmp.lt.s32.totalorder %s53, 2
      // Predicated region
      $region105: #{tpu_custom_call.1} parent=5 // pred_check
        %p902 = pneg %p901
      $region106: #{tpu_custom_call.1} parent=5 // pred_check_branch
        %904 = sbr.rel (%p902) target = $region108
      $region107: #{tpu_custom_call.1} parent=5 // pred_region
        // Predicated region
        $region109: #{tpu_custom_call.1} parent=107 // pred_check
          %p905 = pneg %p73
        $region110: #{tpu_custom_call.1} parent=107 // pred_check_branch
          %907 = sbr.rel (%p905) target = $region112
        $region111: #{tpu_custom_call.1} parent=107 // pred_region
          %s908 = sand.u32 %s63, 1
          %s909 = scalar_lea.sflag [#allocation3], %s908
          %s910 = sand.u32 %s63, 1
          %s911 = smul.addr %s910, 8
          %s912 = scalar_lea.vmem [#allocation2], %s911
          %914 = vsyncadd %s909, 0
          %s915 = smul.addr %s53, 8
          %s916 = scalar_lea.hbm %s0, %s915
          %s918 = sshll.u32 %s916, 4
          %s919 = int_to_ptr.hbm [resolvable:$true] %s918
          %s920 = sshll.u32 %s912, 4
          %s921 = int_to_ptr.vmem [resolvable:$true] %s920
          %923 = dma.hbm_to_vmem [thread:$0]  %s919, 128, %s921, %s909
        $region112: #{tpu_custom_call.1} parent=107 // pred_fallthru
          _
        // Predicated region
        $region113: #{tpu_custom_call.1} parent=107 // pred_check
          %p924 = pneg %p99
        $region114: #{tpu_custom_call.1} parent=107 // pred_check_branch
          %926 = sbr.rel (%p924) target = $region116
        $region115: #{tpu_custom_call.1} parent=107 // pred_region
          %s927 = sand.u32 %s53, 1
          %s928 = scalar_lea.sflag [#allocation6], %s927
          %s929 = sand.u32 %s89, 1
          %s930 = smul.addr %s929, 8
          %s931 = scalar_lea.vmem [#allocation5], %s930
          %933 = vsyncadd %s928, 0
          %s934 = smul.addr %s53, 8
          %s935 = scalar_lea.hbm %s1, %s934
          %s937 = sshll.u32 %s935, 4
          %s938 = int_to_ptr.hbm [resolvable:$true] %s937
          %s939 = sshll.u32 %s931, 4
          %s940 = int_to_ptr.vmem [resolvable:$true] %s939
          %942 = dma.hbm_to_vmem [thread:$0]  %s938, 128, %s940, %s928
        $region116: #{tpu_custom_call.1} parent=107 // pred_fallthru
          _
      $region108: #{tpu_custom_call.1} parent=5 // pred_fallthru
        _
      %p943 = scmp.le.s32.totalorder 1, %s53
      %p944 = scmp.lt.s32.totalorder %s53, 3
      %p945 = pnand %p943, %p944
      %p946 = pneg %p945
      // Predicated region
      $region117: #{tpu_custom_call.1} parent=5 // pred_check
        _
      $region118: #{tpu_custom_call.1} parent=5 // pred_check_branch
        %948 = sbr.rel (%p945) target = $region120
      $region119: #{tpu_custom_call.1} parent=5 // pred_region
        %s949 = ssub.s32 %s53, 1
        %s950 = sand.u32 %s66, 1
        %s951 = scalar_lea.sflag [#allocation3], %s950
        %s952 = sand.u32 %s66, 1
        %s953 = smul.addr %s952, 8
        %s954 = scalar_lea.vmem [#allocation2], %s953
        // Predicated region
        $region121: #{tpu_custom_call.1} parent=119 // pred_check
          %p955 = pneg %p79
        $region122: #{tpu_custom_call.1} parent=119 // pred_check_branch
          %957 = sbr.rel (%p955) target = $region124
        $region123: #{tpu_custom_call.1} parent=119 // pred_region
          %959 = dma.done %s951, 128
        $region124: #{tpu_custom_call.1} parent=119 // pred_fallthru
          _
        %s960 = sand.u32 %s58, 1
        %s961 = scalar_lea.sflag [#allocation6], %s960
        %s962 = sand.u32 %s92, 1
        %s963 = smul.addr %s962, 8
        %s964 = scalar_lea.vmem [#allocation5], %s963
        // Predicated region
        $region125: #{tpu_custom_call.1} parent=119 // pred_check
          %p965 = pneg %p105
        $region126: #{tpu_custom_call.1} parent=119 // pred_check_branch
          %967 = sbr.rel (%p965) target = $region128
        $region127: #{tpu_custom_call.1} parent=119 // pred_region
          %969 = dma.done %s961, 128
        $region128: #{tpu_custom_call.1} parent=119 // pred_fallthru
          _
        // Predicated region
        $region129: #{tpu_custom_call.1} parent=119 // pred_check
          %p970 = pneg %p126
        $region130: #{tpu_custom_call.1} parent=119 // pred_check_branch
          %972 = sbr.rel (%p970) target = $region132
        $region131: #{tpu_custom_call.1} parent=119 // pred_region
          %974 = dma.done [#allocation6], 256
        $region132: #{tpu_custom_call.1} parent=119 // pred_fallthru
          _
        // Predicated region
        $region133: #{tpu_custom_call.1} parent=119 // pred_check
          %p975 = pneg %p147
        $region134: #{tpu_custom_call.1} parent=119 // pred_check_branch
          %977 = sbr.rel (%p975) target = $region136
        $region135: #{tpu_custom_call.1} parent=119 // pred_region
          %979 = dma.done [#allocation9], 256
        $region136: #{tpu_custom_call.1} parent=119 // pred_fallthru
          _
        // Predicated region
        $region137: #{tpu_custom_call.1} parent=119 // pred_check
          %p980 = pneg %p168
        $region138: #{tpu_custom_call.1} parent=119 // pred_check_branch
          %982 = sbr.rel (%p980) target = $region140
        $region139: #{tpu_custom_call.1} parent=119 // pred_region
          %984 = dma.done [#allocation9], 16
        $region140: #{tpu_custom_call.1} parent=119 // pred_fallthru
          _
        // Predicated region
        $region141: #{tpu_custom_call.1} parent=119 // pred_check
          %p985 = pneg %p189
        $region142: #{tpu_custom_call.1} parent=119 // pred_check_branch
          %987 = sbr.rel (%p985) target = $region144
        $region143: #{tpu_custom_call.1} parent=119 // pred_region
          %989 = dma.done [#allocation12], 16
        $region144: #{tpu_custom_call.1} parent=119 // pred_fallthru
          _
        // Predicated region
        $region145: #{tpu_custom_call.1} parent=119 // pred_check
          %p990 = pneg %p210
        $region146: #{tpu_custom_call.1} parent=119 // pred_check_branch
          %992 = sbr.rel (%p990) target = $region148
        $region147: #{tpu_custom_call.1} parent=119 // pred_region
          %994 = dma.done [#allocation12], 256
        $region148: #{tpu_custom_call.1} parent=119 // pred_fallthru
          _
        // Predicated region
        $region149: #{tpu_custom_call.1} parent=119 // pred_check
          %p995 = pneg %p231
        $region150: #{tpu_custom_call.1} parent=119 // pred_check_branch
          %997 = sbr.rel (%p995) target = $region152
        $region151: #{tpu_custom_call.1} parent=119 // pred_region
          %999 = dma.done [#allocation15], 256
        $region152: #{tpu_custom_call.1} parent=119 // pred_fallthru
          _
        // Predicated region
        $region153: #{tpu_custom_call.1} parent=119 // pred_check
          %p1000 = pneg %p252
        $region154: #{tpu_custom_call.1} parent=119 // pred_check_branch
          %1002 = sbr.rel (%p1000) target = $region156
        $region155: #{tpu_custom_call.1} parent=119 // pred_region
          %1004 = dma.done [#allocation15], 16
        $region156: #{tpu_custom_call.1} parent=119 // pred_fallthru
          _
        // Predicated region
        $region157: #{tpu_custom_call.1} parent=119 // pred_check
          %p1005 = pneg %p273
        $region158: #{tpu_custom_call.1} parent=119 // pred_check_branch
          %1007 = sbr.rel (%p1005) target = $region160
        $region159: #{tpu_custom_call.1} parent=119 // pred_region
          %1009 = dma.done [#allocation18], 16
        $region160: #{tpu_custom_call.1} parent=119 // pred_fallthru
          _
        // Predicated region
        $region161: #{tpu_custom_call.1} parent=119 // pred_check
          %p1010 = pneg %p294
        $region162: #{tpu_custom_call.1} parent=119 // pred_check_branch
          %1012 = sbr.rel (%p1010) target = $region164
        $region163: #{tpu_custom_call.1} parent=119 // pred_region
          %1014 = dma.done [#allocation18], 256
        $region164: #{tpu_custom_call.1} parent=119 // pred_fallthru
          _
        // Predicated region
        $region165: #{tpu_custom_call.1} parent=119 // pred_check
          %p1015 = pneg %p315
        $region166: #{tpu_custom_call.1} parent=119 // pred_check_branch
          %1017 = sbr.rel (%p1015) target = $region168
        $region167: #{tpu_custom_call.1} parent=119 // pred_region
          %1019 = dma.done [#allocation21], 256
        $region168: #{tpu_custom_call.1} parent=119 // pred_fallthru
          _
        // Predicated region
        $region169: #{tpu_custom_call.1} parent=119 // pred_check
          %p1020 = pneg %p336
        $region170: #{tpu_custom_call.1} parent=119 // pred_check_branch
          %1022 = sbr.rel (%p1020) target = $region172
        $region171: #{tpu_custom_call.1} parent=119 // pred_region
          %1024 = dma.done [#allocation21], 256
        $region172: #{tpu_custom_call.1} parent=119 // pred_fallthru
          _
        // Predicated region
        $region173: #{tpu_custom_call.1} parent=119 // pred_check
          %p1025 = pneg %p357
        $region174: #{tpu_custom_call.1} parent=119 // pred_check_branch
          %1027 = sbr.rel (%p1025) target = $region176
        $region175: #{tpu_custom_call.1} parent=119 // pred_region
          %1029 = dma.done [#allocation24], 256
        $region176: #{tpu_custom_call.1} parent=119 // pred_fallthru
          _
        // Predicated region
        $region177: #{tpu_custom_call.1} parent=119 // pred_check
          %p1030 = pneg %p378
        $region178: #{tpu_custom_call.1} parent=119 // pred_check_branch
          %1032 = sbr.rel (%p1030) target = $region180
        $region179: #{tpu_custom_call.1} parent=119 // pred_region
          %1034 = dma.done [#allocation24], 256
        $region180: #{tpu_custom_call.1} parent=119 // pred_fallthru
          _
        // Predicated region
        $region181: #{tpu_custom_call.1} parent=119 // pred_check
          %p1035 = pneg %p399
        $region182: #{tpu_custom_call.1} parent=119 // pred_check_branch
          %1037 = sbr.rel (%p1035) target = $region184
        $region183: #{tpu_custom_call.1} parent=119 // pred_region
          %1039 = dma.done [#allocation27], 256
        $region184: #{tpu_custom_call.1} parent=119 // pred_fallthru
          _
        // Predicated region
        $region185: #{tpu_custom_call.1} parent=119 // pred_check
          %p1040 = pneg %p420
        $region186: #{tpu_custom_call.1} parent=119 // pred_check_branch
          %1042 = sbr.rel (%p1040) target = $region188
        $region187: #{tpu_custom_call.1} parent=119 // pred_region
          %1044 = dma.done [#allocation27], 16
        $region188: #{tpu_custom_call.1} parent=119 // pred_fallthru
          _
        // Predicated region
        $region189: #{tpu_custom_call.1} parent=119 // pred_check
          %p1045 = pneg %p462
        $region190: #{tpu_custom_call.1} parent=119 // pred_check_branch
          %1047 = sbr.rel (%p1045) target = $region192
        $region191: #{tpu_custom_call.1} parent=119 // pred_region
          %1049 = dma.done [#allocation30], 256
        $region192: #{tpu_custom_call.1} parent=119 // pred_fallthru
          _
        // Predicated region
        $region193: #{tpu_custom_call.1} parent=119 // pred_check
          %p1050 = pneg %p504
        $region194: #{tpu_custom_call.1} parent=119 // pred_check_branch
          %1052 = sbr.rel (%p1050) target = $region196
        $region195: #{tpu_custom_call.1} parent=119 // pred_region
          %1054 = dma.done [#allocation30], 512
        $region196: #{tpu_custom_call.1} parent=119 // pred_fallthru
          _
        %s1055 = sand.u32 %s66, 1
        %s1056 = scalar_lea.sflag [#allocation3], %s1055
        %s1057 = sand.u32 %s66, 1
        %s1058 = smul.addr %s1057, 8
        %s1059 = scalar_lea.vmem [#allocation2], %s1058
        %p1060 = pneg %p79
        %p1061 = pneg %p76
        %s1062 = sand.u32 %s58, 1
        %s1063 = scalar_lea.sflag [#allocation6], %s1062
        %s1064 = sand.u32 %s92, 1
        %s1065 = smul.addr %s1064, 8
        %s1066 = scalar_lea.vmem [#allocation5], %s1065
        %p1067 = pneg %p105
        %p1068 = pneg %p102
        %p1069 = pneg %p126
        %p1070 = pneg %p123
        %p1071 = pneg %p147
        %p1072 = pneg %p144
        %p1073 = pneg %p168
        %p1074 = pneg %p165
        %p1075 = pneg %p189
        %p1076 = pneg %p186
        %p1077 = pneg %p210
        %p1078 = pneg %p207
        %p1079 = pneg %p231
        %p1080 = pneg %p228
        %p1081 = pneg %p252
        %p1082 = pneg %p249
        %p1083 = pneg %p273
        %p1084 = pneg %p270
        %p1085 = pneg %p294
        %p1086 = pneg %p291
        %p1087 = pneg %p315
        %p1088 = pneg %p312
        %p1089 = pneg %p336
        %p1090 = pneg %p333
        %p1091 = pneg %p357
        %p1092 = pneg %p354
        %p1093 = pneg %p378
        %p1094 = pneg %p375
        %p1095 = pneg %p399
        %p1096 = pneg %p396
        %p1097 = pneg %p420
        %p1098 = pneg %p417
        %p1099 = pneg %p441
        %p1100 = pneg %p438
        %p1101 = pneg %p462
        %p1102 = pneg %p459
        %p1103 = pneg %p483
        %p1104 = pneg %p480
        %p1105 = pneg %p504
        %p1106 = pneg %p501
        %p1107 = pneg %p525
        %p1108 = pneg %p522
        %p1109 = pneg %p546
        %p1110 = pneg %p543
        %p1111 = pneg %p567
        %p1112 = pneg %p564
        %p1113 = pneg %p588
        %p1114 = pneg %p585
        %p1115 = pneg %p614
        %p1116 = pneg %p611
        %s1117 = sand.u32 %s601, 1
        %s1118 = scalar_lea.sflag [#allocation4], %s1117
        %s1119 = sand.u32 %s601, 1
        %s1120 = smul.addr %s1119, 8
        %s1121 = scalar_lea.vmem [#allocation32], %s1120
        %p1122 = pneg %p640
        %p1123 = pneg %p637
        %s1124 = sand.u32 %s627, 1
        %s1125 = scalar_lea.sflag [#allocation34], %s1124
        %s1126 = sand.u32 %s627, 1
        %s1127 = smul.addr %s1126, 8
        %s1128 = scalar_lea.vmem [#allocation33], %s1127
        %v1130 = vld [vmem:[%s954] sm:$0xff]
        %v1131 = vpack.c.bf16 %v1130, %v1130
        %v1132 = vld [vmem:[%s964] sm:$0xff]
        %v1133 = vpack.c.bf16 %v1132, %v1132
        %v1134 = vld [vmem:[#allocation8] sm:$0xf]
        %v1135 = vld [vmem:[#allocation8 + $0x4] sm:$0xf]
        %v1136 = vld [vmem:[#allocation8 + $0x8] sm:$0xf]
        %v1137 = vld [vmem:[#allocation8 + $0xc] sm:$0xf]
        %v1138 = vld [vmem:[#allocation11] sm:$0x1]
        %v1140 = vperm.slane %v1138, 0
        %v1146 = vunpack.c.l.b16 %v1134
        %v1147 = vunpack.c.l.b16 %v1135
        %v1148 = vunpack.c.l.b16 %v1136
        %v1149 = vunpack.c.l.b16 %v1137
        %v1150 = vpack.c.b16 %v1147, %v1146
        %v1151 = vpack.c.b16 %v1149, %v1148
        %vm1154 = vcmask 261120
        %v1156 = vsel %vm1154, %v1131, 0
        %1158 = vmatpush.bf16.msra.mxu0 0
        %1159 = vmatpush.bf16.msra.mxu0 0
        %1160 = vmatpush.bf16.msra.mxu0 0
        %1161 = vmatpush.bf16.msra.mxu0 0
        %1162 = vmatpush.bf16.msra.mxu0 0
        %1163 = vmatpush.bf16.msra.mxu0 0
        %1164 = vmatpush.bf16.msra.mxu0 %v1151
        %1165 = vmatpush.bf16.msra.mxu0 %v1150
        %1166 = vmatmul.bf16.gmra.mxu0 %v1156
        %v1167 = vpop.f32.mrf.mxu0
        %v1168 = vadd.f32 %v1140, %v1167
        %v1169 = vpop.f32.mrf.mxu0
        %1170 = vdwg.mxu0
        %v1171 = vmax.f32 %v1168, 0.0
        %v1172 = vld [vmem:[#allocation7] sm:$0xf]
        %v1173 = vld [vmem:[#allocation7 + $0x4] sm:$0xf]
        %v1174 = vld [vmem:[#allocation7 + $0x8] sm:$0xf]
        %v1175 = vld [vmem:[#allocation7 + $0xc] sm:$0xf]
        %v1176 = vld [vmem:[#allocation10] sm:$0x1]
        %v1178 = vperm.slane %v1176, 0
        %v1184 = vunpack.c.l.b16 %v1172
        %v1185 = vunpack.c.l.b16 %v1173
        %v1186 = vunpack.c.l.b16 %v1174
        %v1187 = vunpack.c.l.b16 %v1175
        %v1188 = vpack.c.b16 %v1185, %v1184
        %v1189 = vpack.c.b16 %v1187, %v1186
        %1192 = vmatpush.bf16.msra.mxu0 0
        %1193 = vmatpush.bf16.msra.mxu0 0
        %1194 = vmatpush.bf16.msra.mxu0 0
        %1195 = vmatpush.bf16.msra.mxu0 0
        %1196 = vmatpush.bf16.msra.mxu0 0
        %1197 = vmatpush.bf16.msra.mxu0 0
        %1198 = vmatpush.bf16.msra.mxu0 %v1189
        %1199 = vmatpush.bf16.msra.mxu0 %v1188
        %1200 = vmatmul.bf16.gmra.mxu0 %v1156
        %v1201 = vpop.f32.mrf.mxu0
        %v1202 = vadd.f32 %v1178, %v1201
        %v1203 = vpop.f32.mrf.mxu0
        %1204 = vdwg.mxu0
        %v1205 = vmax.f32 %v1202, 0.0
        %v1206 = vld [vmem:[#allocation14] sm:$0xf]
        %v1207 = vld [vmem:[#allocation14 + $0x4] sm:$0xf]
        %v1208 = vld [vmem:[#allocation14 + $0x8] sm:$0xf]
        %v1209 = vld [vmem:[#allocation14 + $0xc] sm:$0xf]
        %v1210 = vld [vmem:[#allocation17] sm:$0x1]
        %v1212 = vperm.slane %v1210, 0
        %v1218 = vunpack.c.l.b16 %v1206
        %v1219 = vunpack.c.l.b16 %v1207
        %v1220 = vunpack.c.l.b16 %v1208
        %v1221 = vunpack.c.l.b16 %v1209
        %v1222 = vpack.c.b16 %v1219, %v1218
        %v1223 = vpack.c.b16 %v1221, %v1220
        %v1227 = vsel %vm1154, %v1133, 0
        %1229 = vmatpush.bf16.msra.mxu0 0
        %1230 = vmatpush.bf16.msra.mxu0 0
        %1231 = vmatpush.bf16.msra.mxu0 0
        %1232 = vmatpush.bf16.msra.mxu0 0
        %1233 = vmatpush.bf16.msra.mxu0 0
        %1234 = vmatpush.bf16.msra.mxu0 0
        %1235 = vmatpush.bf16.msra.mxu0 %v1223
        %1236 = vmatpush.bf16.msra.mxu0 %v1222
        %1237 = vmatmul.bf16.gmra.mxu0 %v1227
        %v1238 = vpop.f32.mrf.mxu0
        %v1239 = vadd.f32 %v1212, %v1238
        %v1240 = vpop.f32.mrf.mxu0
        %1241 = vdwg.mxu0
        %v1242 = vmax.f32 %v1239, 0.0
        %v1243 = vld [vmem:[#allocation13] sm:$0xf]
        %v1244 = vld [vmem:[#allocation13 + $0x4] sm:$0xf]
        %v1245 = vld [vmem:[#allocation13 + $0x8] sm:$0xf]
        %v1246 = vld [vmem:[#allocation13 + $0xc] sm:$0xf]
        %v1247 = vld [vmem:[#allocation16] sm:$0x1]
        %v1249 = vperm.slane %v1247, 0
        %v1255 = vunpack.c.l.b16 %v1243
        %v1256 = vunpack.c.l.b16 %v1244
        %v1257 = vunpack.c.l.b16 %v1245
        %v1258 = vunpack.c.l.b16 %v1246
        %v1259 = vpack.c.b16 %v1256, %v1255
        %v1260 = vpack.c.b16 %v1258, %v1257
        %1263 = vmatpush.bf16.msra.mxu0 0
        %1264 = vmatpush.bf16.msra.mxu0 0
        %1265 = vmatpush.bf16.msra.mxu0 0
        %1266 = vmatpush.bf16.msra.mxu0 0
        %1267 = vmatpush.bf16.msra.mxu0 0
        %1268 = vmatpush.bf16.msra.mxu0 0
        %1269 = vmatpush.bf16.msra.mxu0 %v1260
        %1270 = vmatpush.bf16.msra.mxu0 %v1259
        %1271 = vmatmul.bf16.gmra.mxu0 %v1227
        %v1272 = vpop.f32.mrf.mxu0
        %v1273 = vadd.f32 %v1249, %v1272
        %v1274 = vpop.f32.mrf.mxu0
        %1275 = vdwg.mxu0
        %v1276 = vmax.f32 %v1273, 0.0
        %v1277 = vpack.c.bf16 %v1171, %v1171
        %v1278 = vpack.c.bf16 %v1242, %v1242
        %v1279 = vld [vmem:[#allocation19] sm:$0xf]
        %v1280 = vld [vmem:[#allocation19 + $0x4] sm:$0xf]
        %v1281 = vld [vmem:[#allocation19 + $0x8] sm:$0xf]
        %v1282 = vld [vmem:[#allocation19 + $0xc] sm:$0xf]
        %v1287 = vunpack.c.l.b16 %v1279
        %v1288 = vunpack.c.l.b16 %v1280
        %v1289 = vunpack.c.l.b16 %v1281
        %v1290 = vunpack.c.l.b16 %v1282
        %v1291 = vpack.c.b16 %v1288, %v1287
        %v1292 = vpack.c.b16 %v1290, %v1289
        %v1296 = vsel %vm1154, %v1277, 0
        %1298 = vmatpush.bf16.msra.mxu0 0
        %1299 = vmatpush.bf16.msra.mxu0 0
        %1300 = vmatpush.bf16.msra.mxu0 0
        %1301 = vmatpush.bf16.msra.mxu0 0
        %1302 = vmatpush.bf16.msra.mxu0 0
        %1303 = vmatpush.bf16.msra.mxu0 0
        %1304 = vmatpush.bf16.msra.mxu0 %v1292
        %1305 = vmatpush.bf16.msra.mxu0 %v1291
        %1306 = vmatmul.bf16.gmra.mxu0 %v1296
        %v1307 = vpop.f32.mrf.mxu0
        %v1308 = vadd.f32 0.0, %v1307
        %v1309 = vpop.f32.mrf.mxu0
        %1310 = vdwg.mxu0
        %v1311 = vld [vmem:[#allocation20] sm:$0xf]
        %v1312 = vld [vmem:[#allocation20 + $0x4] sm:$0xf]
        %v1313 = vld [vmem:[#allocation20 + $0x8] sm:$0xf]
        %v1314 = vld [vmem:[#allocation20 + $0xc] sm:$0xf]
        %v1319 = vunpack.c.l.b16 %v1311
        %v1320 = vunpack.c.l.b16 %v1312
        %v1321 = vunpack.c.l.b16 %v1313
        %v1322 = vunpack.c.l.b16 %v1314
        %v1323 = vpack.c.b16 %v1320, %v1319
        %v1324 = vpack.c.b16 %v1322, %v1321
        %1327 = vmatpush.bf16.msra.mxu0 0
        %1328 = vmatpush.bf16.msra.mxu0 0
        %1329 = vmatpush.bf16.msra.mxu0 0
        %1330 = vmatpush.bf16.msra.mxu0 0
        %1331 = vmatpush.bf16.msra.mxu0 0
        %1332 = vmatpush.bf16.msra.mxu0 0
        %1333 = vmatpush.bf16.msra.mxu0 %v1324
        %1334 = vmatpush.bf16.msra.mxu0 %v1323
        %1335 = vmatmul.bf16.gmra.mxu0 %v1296
        %v1336 = vpop.f32.mrf.mxu0
        %v1337 = vadd.f32 0.0, %v1336
        %v1338 = vpop.f32.mrf.mxu0
        %1339 = vdwg.mxu0
        %v1340 = vld [vmem:[#allocation22] sm:$0xf]
        %v1341 = vld [vmem:[#allocation22 + $0x4] sm:$0xf]
        %v1342 = vld [vmem:[#allocation22 + $0x8] sm:$0xf]
        %v1343 = vld [vmem:[#allocation22 + $0xc] sm:$0xf]
        %v1348 = vunpack.c.l.b16 %v1340
        %v1349 = vunpack.c.l.b16 %v1341
        %v1350 = vunpack.c.l.b16 %v1342
        %v1351 = vunpack.c.l.b16 %v1343
        %v1352 = vpack.c.b16 %v1349, %v1348
        %v1353 = vpack.c.b16 %v1351, %v1350
        %v1357 = vsel %vm1154, %v1278, 0
        %1359 = vmatpush.bf16.msra.mxu0 0
        %1360 = vmatpush.bf16.msra.mxu0 0
        %1361 = vmatpush.bf16.msra.mxu0 0
        %1362 = vmatpush.bf16.msra.mxu0 0
        %1363 = vmatpush.bf16.msra.mxu0 0
        %1364 = vmatpush.bf16.msra.mxu0 0
        %1365 = vmatpush.bf16.msra.mxu0 %v1353
        %1366 = vmatpush.bf16.msra.mxu0 %v1352
        %1367 = vmatmul.bf16.gmra.mxu0 %v1357
        %v1368 = vpop.f32.mrf.mxu0
        %v1369 = vadd.f32 0.0, %v1368
        %v1370 = vpop.f32.mrf.mxu0
        %1371 = vdwg.mxu0
        %v1372 = vld [vmem:[#allocation23] sm:$0xf]
        %v1373 = vld [vmem:[#allocation23 + $0x4] sm:$0xf]
        %v1374 = vld [vmem:[#allocation23 + $0x8] sm:$0xf]
        %v1375 = vld [vmem:[#allocation23 + $0xc] sm:$0xf]
        %v1380 = vunpack.c.l.b16 %v1372
        %v1381 = vunpack.c.l.b16 %v1373
        %v1382 = vunpack.c.l.b16 %v1374
        %v1383 = vunpack.c.l.b16 %v1375
        %v1384 = vpack.c.b16 %v1381, %v1380
        %v1385 = vpack.c.b16 %v1383, %v1382
        %1388 = vmatpush.bf16.msra.mxu0 0
        %1389 = vmatpush.bf16.msra.mxu0 0
        %1390 = vmatpush.bf16.msra.mxu0 0
        %1391 = vmatpush.bf16.msra.mxu0 0
        %1392 = vmatpush.bf16.msra.mxu0 0
        %1393 = vmatpush.bf16.msra.mxu0 0
        %1394 = vmatpush.bf16.msra.mxu0 %v1385
        %1395 = vmatpush.bf16.msra.mxu0 %v1384
        %1396 = vmatmul.bf16.gmra.mxu0 %v1357
        %v1397 = vpop.f32.mrf.mxu0
        %v1398 = vadd.f32 0.0, %v1397
        %v1399 = vpop.f32.mrf.mxu0
        %1400 = vdwg.mxu0
        %v1401 = vld [vmem:[#allocation31] sm:$0xff]
        %v1402 = vld [vmem:[#allocation31 + $0x8] sm:$0xff]
        %v1403 = vld [vmem:[#allocation31 + $0x10] sm:$0xff]
        %v1404 = vld [vmem:[#allocation31 + $0x18] sm:$0xff]
        %v1405 = vpack.c.bf16 %v1308, %v1308
        %v1406 = vpack.c.bf16 %v1337, %v1337
        %1407 = vxpose.xlu0.c.b16.start [1/8] %v1405, 128
        %1408 = vxpose.xlu0.c.b16.cont [2/8] 0, 128
        %1409 = vxpose.xlu0.c.b16.cont [3/8] 0, 128
        %1410 = vxpose.xlu0.c.b16.cont [4/8] 0, 128
        %1411 = vxpose.xlu0.c.b16.cont [5/8] 0, 128
        %1412 = vxpose.xlu0.c.b16.cont [6/8] 0, 128
        %1413 = vxpose.xlu0.c.b16.cont [7/8] 0, 128
        %1414 = vxpose.xlu0.c.b16.end [8/8] 0, 128
        %v1415 = vpop.trf.xlu0
        %v1416 = vpop.trf.xlu0
        %v1417 = vpop.trf.xlu0
        %v1418 = vpop.trf.xlu0
        %v1419 = vpop.trf.xlu0
        %v1420 = vpop.trf.xlu0
        %v1421 = vpop.trf.xlu0
        %v1422 = vpop.trf.xlu0
        %vm1423 = vcmask 64512
        %v1425 = vsel %vm1423, %v1415, 0
        %v1428 = vsel %vm1423, %v1416, 0
        %vm1430 = vcmask 1043456
        %v1432 = vsel %vm1430, %v1406, 0
        %1434 = vmatpush.bf16.msra.mxu0 0
        %1435 = vmatpush.bf16.msra.mxu0 0
        %1436 = vmatpush.bf16.msra.mxu0 0
        %1437 = vmatpush.bf16.msra.mxu0 0
        %1438 = vmatpush.bf16.msra.mxu0 0
        %1439 = vmatpush.bf16.msra.mxu0 0
        %1440 = vmatpush.bf16.msra.mxu0 0
        %1441 = vmatpush.bf16.msra.mxu0 %v1432
        %1442 = vmatmul.bf16.gmra.mxu0 %v1425
        %v1443 = vpop.f32.mrf.mxu0
        %v1444 = vadd.f32 %v1401, %v1443
        %v1445 = vpop.f32.mrf.mxu0
        %v1446 = vadd.f32 %v1402, %v1445
        %1447 = vmatmul.bf16.gmra.mxu0 %v1428
        %v1448 = vpop.f32.mrf.mxu0
        %v1449 = vadd.f32 %v1403, %v1448
        %v1450 = vpop.f32.mrf.mxu0
        %v1451 = vadd.f32 %v1404, %v1450
        %1452 = vdwg.mxu0
        %v1453 = vsel %vm1154, %v1444, -inf
        %v1454 = vsel %vm1154, %v1446, -inf
        %v1455 = vsel %vm1154, %v1449, -inf
        %v1456 = vsel %vm1154, %v1451, -inf
        %v1457 = vmax.f32 %v1453, %v1454
        %v1458 = vmax.f32 %v1455, %v1456
        %v1459 = vmax.f32 %v1457, %v1458
        %v1460 = vrot.slane %v1459, 4
        %v1461 = vmax.f32 %v1459, %v1460
        %v1462 = vrot.slane %v1461, 2
        %v1463 = vmax.f32 %v1461, %v1462
        %v1464 = vrot.slane %v1463, 1
        %v1465 = vmax.f32 %v1463, %v1464
        %v1466 = vsub.f32 %v1444, %v1465
        %v1467 = vsub.f32 %v1446, %v1465
        %v1468 = vsub.f32 %v1449, %v1465
        %v1469 = vsub.f32 %v1451, %v1465
        %v1470 = vmul.f32 %v1466, 1.442695
        %v1471 = vpow.pop %v1470
        %v1472 = vmul.f32 %v1467, 1.442695
        %v1473 = vpow.pop %v1472
        %v1474 = vmul.f32 %v1468, 1.442695
        %v1475 = vpow.pop %v1474
        %v1476 = vmul.f32 %v1469, 1.442695
        %v1477 = vpow.pop %v1476
        %v1478 = vsel %vm1154, %v1471, 0.0
        %v1479 = vsel %vm1154, %v1473, 0.0
        %v1480 = vadd.f32 %v1478, %v1479
        %v1481 = vsel %vm1154, %v1475, 0.0
        %v1482 = vadd.f32 %v1480, %v1481
        %v1483 = vsel %vm1154, %v1477, 0.0
        %v1484 = vadd.f32 %v1482, %v1483
        %v1485 = vrot.slane %v1484, 4
        %v1486 = vadd.f32 %v1484, %v1485
        %v1487 = vrot.slane %v1486, 2
        %v1488 = vadd.f32 %v1486, %v1487
        %v1489 = vrot.slane %v1488, 1
        %v1490 = vadd.f32 %v1488, %v1489
        %v1491 = vrcp.pop %v1490
        %v1492 = vmul.f32 %v1471, %v1491
        %v1493 = vmul.f32 %v1473, %v1491
        %v1494 = vmul.f32 %v1475, %v1491
        %v1495 = vmul.f32 %v1477, %v1491
        %v1496 = vpack.c.bf16 %v1492, %v1492
        %v1497 = vpack.c.bf16 %v1493, %v1493
        %v1498 = vpack.c.bf16 %v1494, %v1494
        %v1499 = vpack.c.bf16 %v1495, %v1495
        %v1500 = vpack.c.bf16 %v1369, %v1369
        %v1501 = vpack.c.bf16 %v1398, %v1398
        %1502 = vxpose.xlu0.c.b16.start [1/8] %v1500, 128
        %1503 = vxpose.xlu0.c.b16.cont [2/8] 0, 128
        %1504 = vxpose.xlu0.c.b16.cont [3/8] 0, 128
        %1505 = vxpose.xlu0.c.b16.cont [4/8] 0, 128
        %1506 = vxpose.xlu0.c.b16.cont [5/8] 0, 128
        %1507 = vxpose.xlu0.c.b16.cont [6/8] 0, 128
        %1508 = vxpose.xlu0.c.b16.cont [7/8] 0, 128
        %1509 = vxpose.xlu0.c.b16.end [8/8] 0, 128
        %v1510 = vpop.trf.xlu0
        %v1511 = vpop.trf.xlu0
        %v1512 = vpop.trf.xlu0
        %v1513 = vpop.trf.xlu0
        %v1514 = vpop.trf.xlu0
        %v1515 = vpop.trf.xlu0
        %v1516 = vpop.trf.xlu0
        %v1517 = vpop.trf.xlu0
        %v1519 = vsel %vm1423, %v1510, 0
        %v1522 = vsel %vm1423, %v1511, 0
        %v1525 = vsel %vm1430, %v1501, 0
        %1527 = vmatpush.bf16.msra.mxu0 0
        %1528 = vmatpush.bf16.msra.mxu0 0
        %1529 = vmatpush.bf16.msra.mxu0 0
        %1530 = vmatpush.bf16.msra.mxu0 0
        %1531 = vmatpush.bf16.msra.mxu0 0
        %1532 = vmatpush.bf16.msra.mxu0 0
        %1533 = vmatpush.bf16.msra.mxu0 0
        %1534 = vmatpush.bf16.msra.mxu0 %v1525
        %1535 = vmatmul.bf16.gmra.mxu0 %v1519
        %v1536 = vpop.f32.mrf.mxu0
        %v1537 = vadd.f32 %v1401, %v1536
        %v1538 = vpop.f32.mrf.mxu0
        %v1539 = vadd.f32 %v1402, %v1538
        %1540 = vmatmul.bf16.gmra.mxu0 %v1522
        %v1541 = vpop.f32.mrf.mxu0
        %v1542 = vadd.f32 %v1403, %v1541
        %v1543 = vpop.f32.mrf.mxu0
        %v1544 = vadd.f32 %v1404, %v1543
        %1545 = vdwg.mxu0
        %v1546 = vsel %vm1154, %v1537, -inf
        %v1547 = vsel %vm1154, %v1539, -inf
        %v1548 = vsel %vm1154, %v1542, -inf
        %v1549 = vsel %vm1154, %v1544, -inf
        %v1550 = vmax.f32 %v1546, %v1547
        %v1551 = vmax.f32 %v1548, %v1549
        %v1552 = vmax.f32 %v1550, %v1551
        %v1553 = vrot.slane %v1552, 4
        %v1554 = vmax.f32 %v1552, %v1553
        %v1555 = vrot.slane %v1554, 2
        %v1556 = vmax.f32 %v1554, %v1555
        %v1557 = vrot.slane %v1556, 1
        %v1558 = vmax.f32 %v1556, %v1557
        %v1559 = vsub.f32 %v1537, %v1558
        %v1560 = vsub.f32 %v1539, %v1558
        %v1561 = vsub.f32 %v1542, %v1558
        %v1562 = vsub.f32 %v1544, %v1558
        %v1563 = vmul.f32 %v1559, 1.442695
        %v1564 = vpow.pop %v1563
        %v1565 = vmul.f32 %v1560, 1.442695
        %v1566 = vpow.pop %v1565
        %v1567 = vmul.f32 %v1561, 1.442695
        %v1568 = vpow.pop %v1567
        %v1569 = vmul.f32 %v1562, 1.442695
        %v1570 = vpow.pop %v1569
        %v1571 = vsel %vm1154, %v1564, 0.0
        %v1572 = vsel %vm1154, %v1566, 0.0
        %v1573 = vadd.f32 %v1571, %v1572
        %v1574 = vsel %vm1154, %v1568, 0.0
        %v1575 = vadd.f32 %v1573, %v1574
        %v1576 = vsel %vm1154, %v1570, 0.0
        %v1577 = vadd.f32 %v1575, %v1576
        %v1578 = vrot.slane %v1577, 4
        %v1579 = vadd.f32 %v1577, %v1578
        %v1580 = vrot.slane %v1579, 2
        %v1581 = vadd.f32 %v1579, %v1580
        %v1582 = vrot.slane %v1581, 1
        %v1583 = vadd.f32 %v1581, %v1582
        %v1584 = vrcp.pop %v1583
        %v1585 = vmul.f32 %v1564, %v1584
        %v1586 = vmul.f32 %v1566, %v1584
        %v1587 = vmul.f32 %v1568, %v1584
        %v1588 = vmul.f32 %v1570, %v1584
        %v1589 = vpack.c.bf16 %v1585, %v1585
        %v1590 = vpack.c.bf16 %v1586, %v1586
        %v1591 = vpack.c.bf16 %v1587, %v1587
        %v1592 = vpack.c.bf16 %v1588, %v1588
        %v1597 = vunpack.c.l.b16 %v1589
        %v1598 = vunpack.c.l.b16 %v1590
        %v1599 = vunpack.c.l.b16 %v1591
        %v1600 = vunpack.c.l.b16 %v1592
        %v1601 = vpack.c.b16 %v1598, %v1597
        %v1602 = vpack.c.b16 %v1600, %v1599
        %1605 = vmatpush.bf16.msra.mxu0 0
        %1606 = vmatpush.bf16.msra.mxu0 0
        %1607 = vmatpush.bf16.msra.mxu0 0
        %1608 = vmatpush.bf16.msra.mxu0 0
        %1609 = vmatpush.bf16.msra.mxu0 0
        %1610 = vmatpush.bf16.msra.mxu0 0
        %1611 = vmatpush.bf16.msra.mxu0 %v1602
        %1612 = vmatpush.bf16.msra.mxu0 %v1601
        %1613 = vmatmul.bf16.gmra.mxu0 %v1296
        %v1614 = vpop.f32.mrf.mxu0
        %v1615 = vadd.f32 0.0, %v1614
        %v1616 = vpop.f32.mrf.mxu0
        %1617 = vdwg.mxu0
        %v1622 = vunpack.c.l.b16 %v1496
        %v1623 = vunpack.c.l.b16 %v1497
        %v1624 = vunpack.c.l.b16 %v1498
        %v1625 = vunpack.c.l.b16 %v1499
        %v1626 = vpack.c.b16 %v1623, %v1622
        %v1627 = vpack.c.b16 %v1625, %v1624
        %1630 = vmatpush.bf16.msra.mxu0 0
        %1631 = vmatpush.bf16.msra.mxu0 0
        %1632 = vmatpush.bf16.msra.mxu0 0
        %1633 = vmatpush.bf16.msra.mxu0 0
        %1634 = vmatpush.bf16.msra.mxu0 0
        %1635 = vmatpush.bf16.msra.mxu0 0
        %1636 = vmatpush.bf16.msra.mxu0 %v1627
        %1637 = vmatpush.bf16.msra.mxu0 %v1626
        %1638 = vmatmul.bf16.gmra.mxu0 %v1357
        %v1639 = vpop.f32.mrf.mxu0
        %v1640 = vadd.f32 0.0, %v1639
        %v1641 = vpop.f32.mrf.mxu0
        %1642 = vdwg.mxu0
        %v1643 = vpack.c.bf16 %v1205, %v1205
        %v1644 = vld [vmem:[#allocation25] sm:$0xf]
        %v1645 = vld [vmem:[#allocation25 + $0x4] sm:$0xf]
        %v1646 = vld [vmem:[#allocation25 + $0x8] sm:$0xf]
        %v1647 = vld [vmem:[#allocation25 + $0xc] sm:$0xf]
        %v1648 = vpack.c.bf16 %v1615, %v1615
        %v1649 = vld [vmem:[#allocation26] sm:$0xf]
        %v1650 = vld [vmem:[#allocation26 + $0x4] sm:$0xf]
        %v1651 = vld [vmem:[#allocation26 + $0x8] sm:$0xf]
        %v1652 = vld [vmem:[#allocation26 + $0xc] sm:$0xf]
        %v1657 = vunpack.c.l.b16 %v1649
        %v1658 = vunpack.c.l.b16 %v1650
        %v1659 = vunpack.c.l.b16 %v1651
        %v1660 = vunpack.c.l.b16 %v1652
        %v1661 = vpack.c.b16 %v1658, %v1657
        %v1662 = vpack.c.b16 %v1660, %v1659
        %v1666 = vsel %vm1154, %v1648, 0
        %1668 = vmatpush.bf16.msra.mxu0 0
        %1669 = vmatpush.bf16.msra.mxu0 0
        %1670 = vmatpush.bf16.msra.mxu0 0
        %1671 = vmatpush.bf16.msra.mxu0 0
        %1672 = vmatpush.bf16.msra.mxu0 0
        %1673 = vmatpush.bf16.msra.mxu0 0
        %1674 = vmatpush.bf16.msra.mxu0 %v1662
        %1675 = vmatpush.bf16.msra.mxu0 %v1661
        %1676 = vmatmul.bf16.gmra.mxu0 %v1666
        %v1677 = vpop.f32.mrf.mxu0
        %v1678 = vadd.f32 0.0, %v1677
        %v1679 = vpop.f32.mrf.mxu0
        %1680 = vdwg.mxu0
        %v1685 = vunpack.c.l.b16 %v1644
        %v1686 = vunpack.c.l.b16 %v1645
        %v1687 = vunpack.c.l.b16 %v1646
        %v1688 = vunpack.c.l.b16 %v1647
        %v1689 = vpack.c.b16 %v1686, %v1685
        %v1690 = vpack.c.b16 %v1688, %v1687
        %v1694 = vsel %vm1154, %v1643, 0
        %1696 = vmatpush.bf16.msra.mxu0 0
        %1697 = vmatpush.bf16.msra.mxu0 0
        %1698 = vmatpush.bf16.msra.mxu0 0
        %1699 = vmatpush.bf16.msra.mxu0 0
        %1700 = vmatpush.bf16.msra.mxu0 0
        %1701 = vmatpush.bf16.msra.mxu0 0
        %1702 = vmatpush.bf16.msra.mxu0 %v1690
        %1703 = vmatpush.bf16.msra.mxu0 %v1689
        %1704 = vmatmul.bf16.gmra.mxu0 %v1694
        %v1705 = vpop.f32.mrf.mxu0
        %v1706 = vadd.f32 %v1678, %v1705
        %v1707 = vpop.f32.mrf.mxu0
        %1708 = vdwg.mxu0
        %v1709 = vld [vmem:[#allocation28] sm:$0x1]
        %v1711 = vperm.slane %v1709, 0
        %v1713 = vadd.f32 %v1706, %v1711
        %v1714 = vpack.c.bf16 %v1276, %v1276
        %v1715 = vld [vmem:[%s17] sm:$0xf]
        %v1716 = vld [vmem:[%s17 + $0x4] sm:$0xf]
        %v1717 = vld [vmem:[%s17 + $0x8] sm:$0xf]
        %v1718 = vld [vmem:[%s17 + $0xc] sm:$0xf]
        %v1719 = vpack.c.bf16 %v1640, %v1640
        %v1720 = vld [vmem:[#allocation29] sm:$0xf]
        %v1721 = vld [vmem:[#allocation29 + $0x4] sm:$0xf]
        %v1722 = vld [vmem:[#allocation29 + $0x8] sm:$0xf]
        %v1723 = vld [vmem:[#allocation29 + $0xc] sm:$0xf]
        %v1728 = vunpack.c.l.b16 %v1720
        %v1729 = vunpack.c.l.b16 %v1721
        %v1730 = vunpack.c.l.b16 %v1722
        %v1731 = vunpack.c.l.b16 %v1723
        %v1732 = vpack.c.b16 %v1729, %v1728
        %v1733 = vpack.c.b16 %v1731, %v1730
        %v1737 = vsel %vm1154, %v1719, 0
        %1739 = vmatpush.bf16.msra.mxu0 0
        %1740 = vmatpush.bf16.msra.mxu0 0
        %1741 = vmatpush.bf16.msra.mxu0 0
        %1742 = vmatpush.bf16.msra.mxu0 0
        %1743 = vmatpush.bf16.msra.mxu0 0
        %1744 = vmatpush.bf16.msra.mxu0 0
        %1745 = vmatpush.bf16.msra.mxu0 %v1733
        %1746 = vmatpush.bf16.msra.mxu0 %v1732
        %1747 = vmatmul.bf16.gmra.mxu0 %v1737
        %v1748 = vpop.f32.mrf.mxu0
        %v1749 = vadd.f32 0.0, %v1748
        %v1750 = vpop.f32.mrf.mxu0
        %1751 = vdwg.mxu0
        %v1756 = vunpack.c.l.b16 %v1715
        %v1757 = vunpack.c.l.b16 %v1716
        %v1758 = vunpack.c.l.b16 %v1717
        %v1759 = vunpack.c.l.b16 %v1718
        %v1760 = vpack.c.b16 %v1757, %v1756
        %v1761 = vpack.c.b16 %v1759, %v1758
        %v1765 = vsel %vm1154, %v1714, 0
        %1767 = vmatpush.bf16.msra.mxu0 0
        %1768 = vmatpush.bf16.msra.mxu0 0
        %1769 = vmatpush.bf16.msra.mxu0 0
        %1770 = vmatpush.bf16.msra.mxu0 0
        %1771 = vmatpush.bf16.msra.mxu0 0
        %1772 = vmatpush.bf16.msra.mxu0 0
        %1773 = vmatpush.bf16.msra.mxu0 %v1761
        %1774 = vmatpush.bf16.msra.mxu0 %v1760
        %1775 = vmatmul.bf16.gmra.mxu0 %v1765
        %v1776 = vpop.f32.mrf.mxu0
        %v1777 = vadd.f32 %v1749, %v1776
        %v1778 = vpop.f32.mrf.mxu0
        %1779 = vdwg.mxu0
        %v1780 = vld [vmem:[%s19] sm:$0x1]
        %v1782 = vperm.slane %v1780, 0
        %v1784 = vadd.f32 %v1777, %v1782
        %v1785 = vld [vmem:[%s954] sm:$0xff]
        %v1786 = vadd.f32 %v1785, %v1713
        %v1787 = vld [vmem:[%s964] sm:$0xff]
        %v1788 = vadd.f32 %v1787, %v1784
        %v1789 = vld [vmem:[%s21] sm:$0x1]
        %v1790 = vld [vmem:[%s22] sm:$0x1]
        %v1791 = vsel %vm1154, %v1786, 0.0
        %1792 = vadd.xlane.f32.xlu0 %v1791
        %v1793 = vpop.xlane.xlu0 %1792
        %v1794 = vrcp.pop 32.0
        %v1795 = vmul.f32 32.0, %v1794
        %v1796 = vsub.f32 1.0, %v1795
        %v1797 = vmul.f32 %v1794, %v1796
        %v1798 = vadd.f32 %v1794, %v1797
        %vm1799 = vweird.f32 %v1794
        %v1800 = vsel %vm1799, %v1794, %v1798
        %v1801 = vmul.f32 %v1793, %v1800
        %v1802 = vmul.f32 %v1786, %v1786
        %v1803 = vsel %vm1154, %v1802, 0.0
        %1804 = vadd.xlane.f32.xlu0 %v1803
        %v1805 = vpop.xlane.xlu0 %1804
        %v1806 = vmul.f32 %v1805, %v1800
        %v1807 = vmul.f32 %v1801, %v1801
        %v1808 = vsub.f32 %v1806, %v1807
        %v1809 = vmax.f32 %v1808, 0.0
        %v1810 = vsub.f32 %v1786, %v1801
        %v1811 = vadd.f32 %v1809, 1e-05
        %v1812 = vrsqrt.pop %v1811
        %v1813 = vmul.f32 %v1812, %v1811
        %v1814 = vmul.f32 %v1813, %v1812
        %v1815 = vmul.f32 0.5, %v1814
        %v1816 = vsub.f32 1.5, %v1815
        %v1817 = vmul.f32 %v1812, %v1816
        %vm1818 = vweird.f32 %v1811
        %vm1819 = vweird.f32 %v1812
        %vm1820 = vmor %vm1818, %vm1819
        %v1821 = vsel %vm1820, %v1812, %v1817
        %v1822 = vmul.f32 %v1810, %v1821
        %v1824 = vperm.slane %v1789, 0
        %v1826 = vmul.f32 %v1822, %v1824
        %v1828 = vperm.slane %v1790, 0
        %v1830 = vadd.f32 %v1826, %v1828
        %1831 = vst.msk [vmem:[%s1121] sm:$0xff] %vm1154, %v1830
        %v1832 = vld [vmem:[%s23] sm:$0x1]
        %v1833 = vld [vmem:[%s24] sm:$0x1]
        %v1834 = vsel %vm1154, %v1788, 0.0
        %1835 = vadd.xlane.f32.xlu0 %v1834
        %v1836 = vpop.xlane.xlu0 %1835
        %v1837 = vmul.f32 %v1836, %v1800
        %v1838 = vmul.f32 %v1788, %v1788
        %v1839 = vsel %vm1154, %v1838, 0.0
        %1840 = vadd.xlane.f32.xlu0 %v1839
        %v1841 = vpop.xlane.xlu0 %1840
        %v1842 = vmul.f32 %v1841, %v1800
        %v1843 = vmul.f32 %v1837, %v1837
        %v1844 = vsub.f32 %v1842, %v1843
        %v1845 = vmax.f32 %v1844, 0.0
        %v1846 = vsub.f32 %v1788, %v1837
        %v1847 = vadd.f32 %v1845, 1e-05
        %v1848 = vrsqrt.pop %v1847
        %v1849 = vmul.f32 %v1848, %v1847
        %v1850 = vmul.f32 %v1849, %v1848
        %v1851 = vmul.f32 0.5, %v1850
        %v1852 = vsub.f32 1.5, %v1851
        %v1853 = vmul.f32 %v1848, %v1852
        %vm1854 = vweird.f32 %v1847
        %vm1855 = vweird.f32 %v1848
        %vm1856 = vmor %vm1854, %vm1855
        %v1857 = vsel %vm1856, %v1848, %v1853
        %v1858 = vmul.f32 %v1846, %v1857
        %v1860 = vperm.slane %v1832, 0
        %v1862 = vmul.f32 %v1858, %v1860
        %v1864 = vperm.slane %v1833, 0
        %v1866 = vadd.f32 %v1862, %v1864
        %1867 = vst.msk [vmem:[%s1128] sm:$0xff] %vm1154, %v1866
        %s1868 = sand.u32 %s601, 1
        %s1869 = scalar_lea.sflag [#allocation4], %s1868
        %s1870 = sand.u32 %s601, 1
        %s1871 = smul.addr %s1870, 8
        %s1872 = scalar_lea.vmem [#allocation32], %s1871
        %s1873 = sand.u32 %s627, 1
        %s1874 = scalar_lea.sflag [#allocation34], %s1873
        %s1875 = sand.u32 %s627, 1
        %s1876 = smul.addr %s1875, 8
        %s1877 = scalar_lea.vmem [#allocation33], %s1876
        // Predicated region
        $region197: #{tpu_custom_call.1} parent=119 // pred_check
          %p1878 = pneg %p611
        $region198: #{tpu_custom_call.1} parent=119 // pred_check_branch
          %1880 = sbr.rel (%p1878) target = $region200
        $region199: #{tpu_custom_call.1} parent=119 // pred_region
          %1882 = vsyncadd %s1869, 0
          %s1883 = smul.addr %s58, 8
          %s1884 = scalar_lea.hbm %s25, %s1883
          %s1886 = sshll.u32 %s1872, 4
          %s1887 = int_to_ptr.vmem [resolvable:$true] %s1886
          %s1888 = sshll.u32 %s1884, 4
          %s1889 = int_to_ptr.hbm [resolvable:$true] %s1888
          %1891 = dma.vmem_to_hbm [thread:$0]  %s1887, 128, %s1889, %s1869
        $region200: #{tpu_custom_call.1} parent=119 // pred_fallthru
          _
        // Predicated region
        $region201: #{tpu_custom_call.1} parent=119 // pred_check
          %p1892 = pneg %p637
        $region202: #{tpu_custom_call.1} parent=119 // pred_check_branch
          %1894 = sbr.rel (%p1892) target = $region204
        $region203: #{tpu_custom_call.1} parent=119 // pred_region
          %1896 = vsyncadd %s1874, 0
          %s1897 = smul.addr %s58, 8
          %s1898 = scalar_lea.hbm %s26, %s1897
          %s1900 = sshll.u32 %s1877, 4
          %s1901 = int_to_ptr.vmem [resolvable:$true] %s1900
          %s1902 = sshll.u32 %s1898, 4
          %s1903 = int_to_ptr.hbm [resolvable:$true] %s1902
          %1905 = dma.vmem_to_hbm [thread:$0]  %s1901, 128, %s1903, %s1874
        $region204: #{tpu_custom_call.1} parent=119 // pred_fallthru
          _
      $region120: #{tpu_custom_call.1} parent=5 // pred_fallthru
        _
      %p1906 = scmp.le.s32.totalorder 2, %s53
      // Predicated region
      $region205: #{tpu_custom_call.1} parent=5 // pred_check
        %p1907 = pneg %p1906
      $region206: #{tpu_custom_call.1} parent=5 // pred_check_branch
        %1909 = sbr.rel (%p1907) target = $region208
      $region207: #{tpu_custom_call.1} parent=5 // pred_region
        %s1910 = ssub.s32 %s53, 2
        // Predicated region
        $region209: #{tpu_custom_call.1} parent=207 // pred_check
          %p1911 = pneg %p617
        $region210: #{tpu_custom_call.1} parent=207 // pred_check_branch
          %1913 = sbr.rel (%p1911) target = $region212
        $region211: #{tpu_custom_call.1} parent=207 // pred_region
          %s1914 = sand.u32 %s602, 1
          %s1915 = scalar_lea.sflag [#allocation4], %s1914
          %s1916 = sand.u32 %s602, 1
          %s1917 = smul.addr %s1916, 8
          %s1918 = scalar_lea.vmem [#allocation32], %s1917
          %1920 = dma.done %s1915, 128
        $region212: #{tpu_custom_call.1} parent=207 // pred_fallthru
          _
        // Predicated region
        $region213: #{tpu_custom_call.1} parent=207 // pred_check
          %p1921 = pneg %p643
        $region214: #{tpu_custom_call.1} parent=207 // pred_check_branch
          %1923 = sbr.rel (%p1921) target = $region216
        $region215: #{tpu_custom_call.1} parent=207 // pred_region
          %s1924 = sand.u32 %s628, 1
          %s1925 = scalar_lea.sflag [#allocation34], %s1924
          %s1926 = sand.u32 %s628, 1
          %s1927 = smul.addr %s1926, 8
          %s1928 = scalar_lea.vmem [#allocation33], %s1927
          %1930 = dma.done %s1925, 128
        $region216: #{tpu_custom_call.1} parent=207 // pred_fallthru
          _
      $region208: #{tpu_custom_call.1} parent=5 // pred_fallthru
        _
    $region6: #{tpu_custom_call.1} parent=1 // loop_footer
      %s57 = sadd.s32 1, %s53
    $region7: #{tpu_custom_call.1} parent=1 // loop_footer_branch
      %52 = sbr.rel target = $region3
    $region8: #{tpu_custom_call.1} parent=1 // loop_exit
      _
    %1931 = vsyncpa [#allocation3], 1
    %s1932 = scalar_lea.sflag [#allocation3], 1
    %1933 = vsyncpa %s1932, 1
    %1934 = vsyncpa [#allocation6], 1
    %s1935 = scalar_lea.sflag [#allocation6], 1
    %1936 = vsyncpa %s1935, 1
    %1937 = vsyncpa [#allocation9], 1
    %1938 = vsyncpa [#allocation12], 1
    %1939 = vsyncpa [#allocation15], 1
    %1940 = vsyncpa [#allocation18], 1
    %1941 = vsyncpa [#allocation21], 1
    %1942 = vsyncpa [#allocation24], 1
    %1943 = vsyncpa [#allocation27], 1
    %1944 = vsyncpa [#allocation30], 1
    %1945 = vsyncpa [#allocation4], 1
    %s1946 = scalar_lea.sflag [#allocation4], 1
    %1947 = vsyncpa %s1946, 1
    %1948 = vsyncpa [#allocation34], 1
    %s1949 = scalar_lea.sflag [#allocation34], 1
    %1950 = vsyncpa %s1949, 1

</llo_original>
